<compile_context>
chip_gen: v7x
topology: tpu7x:2x2x1
jax: 0.10.0
libtpu: 0.0.40
codegen_flags: <defaults>
</compile_context>

<pallas_src>
import jax
import jax.numpy as jnp
from jax import lax
from jax.experimental import pallas as pl
from jax.experimental.pallas import tpu as pltpu


MXU_DTYPE = jnp.bfloat16          # bf16 MXU operands, f32 accumulation
# Explicit scoped-VMEM budget: required on v5e (16 MiB default), safely under
# v7x's 64 MiB physical VMEM; could be raised to ~96 MiB on v5e/v6e.
_VMEM_LIMIT = 48 * 1024 * 1024
_NEG_BIG = -1e30                  # logit for padded vocab columns (exp -> 0)


def _round_up(x, m):
    return (x + m - 1) // m * m


def _pick_tile(n, candidates):
    """Largest candidate that divides n (falls back to n itself)."""
    for c in candidates:
        if n % c == 0:
            return c
    return n


# -----------------------------------------------------------------------------
# Kernel 1: row-tiled linear layer for the hoisted LSTM input projection
# gates = x @ W_ih + (b_ih + b_hh).  Emits bf16, lane-dense (rows x 4H).
# -----------------------------------------------------------------------------
def linear_kernel(x_ref, w_ref, b_ref, o_ref):
    o_ref[...] = (jnp.dot(x_ref[...], w_ref[...],
                          preferred_element_type=jnp.float32)
                  + b_ref[...]).astype(o_ref.dtype)


def run_linear(x2d, w, b):
    """x2d: (N, D), w: (D, C), b: (1, C) f32 -> (N, C) bf16 (f32 accumulate)."""
    N, D = x2d.shape
    C = w.shape[1]
    tn = _pick_tile(N, (512, 256, 128, 64, 32, 16))
    # TODO(synk): mark the invariant weight BlockSpec pipeline_mode=pl.Buffered(1)
    # (constant index_map needs no double buffer) to halve its VMEM residency.
    return pl.pallas_call(
        linear_kernel,
        out_shape=jax.ShapeDtypeStruct((N, C), MXU_DTYPE),
        grid_spec=pltpu.PrefetchScalarGridSpec(
            num_scalar_prefetch=0,
            grid=(N // tn,),
            in_specs=[
                pl.BlockSpec((tn, D), lambda i: (i, 0)),
                pl.BlockSpec((D, C), lambda i: (0, 0)),
                pl.BlockSpec((1, C), lambda i: (0, 0)),
            ],
            out_specs=pl.BlockSpec((tn, C), lambda i: (i, 0)),
        ),
        compiler_params=pltpu.CompilerParams(
            dimension_semantics=("parallel",),
            vmem_limit_bytes=_VMEM_LIMIT),
    )(x2d.astype(MXU_DTYPE), w.astype(MXU_DTYPE), b)


# -----------------------------------------------------------------------------
# Kernel 2: LSTM recurrence.  Time loop runs inside the kernel over a T-chunk
# (unrolled lax.fori_loop); per step only one fused bf16 (tb,H)x(H,4H) MXU
# matmul.  h/c state is f32 in VMEM scratch and persists across time chunks.
# Grid = (batch_tiles ["parallel"], time_chunks ["arbitrary"]).
# -----------------------------------------------------------------------------
def lstm_chunk_kernel(gin_ref, whh_ref, y_ref, h_scr, c_scr):
    # First time-chunk of each batch tile: reset the recurrent state.
    @pl.when(pl.program_id(1) == 0)
    def _():
        h_scr[...] = jnp.zeros_like(h_scr)
        c_scr[...] = jnp.zeros_like(c_scr)

    t_chunk = gin_ref.shape[0]
    H = h_scr.shape[-1]

    def step(t, carry):
        h, c = carry                                    # (tb, H) f32
        # One fused MXU matmul for all four gates: bf16 operands, f32 accum.
        # Gate order [i|f|g|o]; slices at H multiples are 128-lane aligned.
        pre = gin_ref[t].astype(jnp.float32) + jnp.dot(
            h.astype(MXU_DTYPE), whh_ref[...],
            preferred_element_type=jnp.float32)         # (tb, 4H) f32
        i_g = jax.nn.sigmoid(pre[:, 0 * H:1 * H])
        f_g = jax.nn.sigmoid(pre[:, 1 * H:2 * H])
        g_g = jnp.tanh(pre[:, 2 * H:3 * H])
        o_g = jax.nn.sigmoid(pre[:, 3 * H:4 * H])
        c_new = f_g * c + i_g * g_g
        h_new = o_g * jnp.tanh(c_new)
        y_ref[t] = h_new.astype(y_ref.dtype)            # bf16 output sequence
        return h_new, c_new

    if t_chunk <= 16:
        unroll = True          # full unroll: LLO overlaps VPU/EUP tail w/ MXU
    elif t_chunk % 4 == 0:
        unroll = 4
    elif t_chunk % 2 == 0:
        unroll = 2
    else:
        unroll = 1
    h_fin, c_fin = lax.fori_loop(0, t_chunk, step,
                                 (h_scr[...], c_scr[...]), unroll=unroll)
    h_scr[...] = h_fin
    c_scr[...] = c_fin


def run_lstm_recurrence(gates, w_hh):
    """gates: (T, Bp, 4H) bf16 precomputed x@W_ih + bias (gate-major columns).
    w_hh: (H, 4H) f32 (cast to bf16 here).  Returns (T, Bp, H) bf16."""
    T, Bp, G4H = gates.shape
    H = w_hh.shape[0]
    assert G4H == 4 * H and Bp % 16 == 0 and H % 128 == 0

    # Batch tile: largest divisor of Bp (256 fills the v6e/v7x 256-tall MXU).
    # TODO(synk): on v7x cap tb at Bp//2 (>=16) so both TensorCores get work.
    tb = _pick_tile(Bp, (256, 128, 64, 32, 16))

    # Time-chunk: as large as the VMEM budget allows (amortize ~0.35us
    # per-grid-step overhead), capped at 32, preferring divisors of T.
    per_t = 2 * (tb * 4 * H * 2) + 2 * (tb * H * 2)    # gates-in + y-out (x2 bufs)
    fixed = 2 * (H * 4 * H * 2) + 2 * (tb * H * 4)     # whh (x2 bufs) + h/c scratch
    avail = _VMEM_LIMIT - fixed
    t_cap = max(1, avail // per_t) if avail > per_t else 1
    t_chunk = min(T, 32, t_cap)
    for cand in range(t_chunk, max(1, t_chunk // 2), -1):
        if T % cand == 0:
            t_chunk = cand
            break

    t_pad = _round_up(T, t_chunk)
    if t_pad != T:
        gates = jnp.pad(gates, ((0, t_pad - T), (0, 0), (0, 0)))

    out = pl.pallas_call(
        lstm_chunk_kernel,
        out_shape=jax.ShapeDtypeStruct((t_pad, Bp, H), MXU_DTYPE),
        grid_spec=pltpu.PrefetchScalarGridSpec(
            num_scalar_prefetch=0,
            grid=(Bp // tb, t_pad // t_chunk),
            in_specs=[
                pl.BlockSpec((t_chunk, tb, 4 * H), lambda b, t: (t, b, 0)),
                pl.BlockSpec((H, 4 * H), lambda b, t: (0, 0)),
            ],
            out_specs=pl.BlockSpec((t_chunk, tb, H), lambda b, t: (t, b, 0)),
            scratch_shapes=[
                pltpu.VMEM((tb, H), jnp.float32),   # h state (f32 precision)
                pltpu.VMEM((tb, H), jnp.float32),   # c state
            ],
        ),
        compiler_params=pltpu.CompilerParams(
            dimension_semantics=("parallel", "arbitrary"),
            vmem_limit_bytes=_VMEM_LIMIT),
    )(gates.astype(MXU_DTYPE), w_hh.astype(MXU_DTYPE))
    return out[:T] if t_pad != T else out


# -----------------------------------------------------------------------------
# Kernel 3: vocab-tiled projection + softmax (two passes).
#   Pass 1: logits tile = x @ W + b, with online (max, sum) accumulation over
#           the vocab ("arbitrary") axis into resident (rows,1) output blocks.
#   Pass 2: probs = exp(logits - m) * 1/l  (EUP approx reciprocal).
# -----------------------------------------------------------------------------
def proj_logits_kernel(x_ref, w_ref, b_ref, logits_ref, m_ref, l_ref):
    @pl.when(pl.program_id(1) == 0)
    def _():
        m_ref[...] = jnp.full_like(m_ref, -jnp.inf)
        l_ref[...] = jnp.zeros_like(l_ref)

    logits = (jnp.dot(x_ref[...], w_ref[...],
                      preferred_element_type=jnp.float32) + b_ref[...])
    logits_ref[...] = logits

    m_prev = m_ref[...]
    m_new = jnp.maximum(m_prev, jnp.max(logits, axis=-1, keepdims=True))
    l_ref[...] = (l_ref[...] * jnp.exp(m_prev - m_new)
                  + jnp.sum(jnp.exp(logits - m_new), axis=-1, keepdims=True))
    m_ref[...] = m_new


def softmax_norm_kernel(logits_ref, m_ref, l_ref, o_ref):
    o_ref[...] = (jnp.exp(logits_ref[...] - m_ref[...])
                  * pl.reciprocal(l_ref[...], approx=True))


def run_proj_softmax(x2d, w, b):
    """x2d: (N, H), w: (H, V), b: (1, V) -> (N, V) f32 softmax probabilities."""
    N, H = x2d.shape
    V = w.shape[1]
    tn = _pick_tile(N, (256, 128, 64, 32, 16))
    tv = _pick_tile(V, (2048, 1024, 512, 256, 128))
    n_rows, n_vt = N // tn, V // tv

    cost = pl.CostEstimate(
        flops=2 * N * H * V, transcendentals=2 * N * V,
        bytes_accessed=2 * N * H + 2 * H * V + 8 * N * V)

    logits, m, l = pl.pallas_call(
        proj_logits_kernel,
        out_shape=(jax.ShapeDtypeStruct((N, V), jnp.float32),
                   jax.ShapeDtypeStruct((N, 1), jnp.float32),
                   jax.ShapeDtypeStruct((N, 1), jnp.float32)),
        grid_spec=pltpu.PrefetchScalarGridSpec(
            num_scalar_prefetch=0,
            grid=(n_rows, n_vt),
            in_specs=[
                pl.BlockSpec((tn, H), lambda i, j: (i, 0)),
                pl.BlockSpec((H, tv), lambda i, j: (0, j)),
                pl.BlockSpec((1, tv), lambda i, j: (0, j)),
            ],
            out_specs=[
                pl.BlockSpec((tn, tv), lambda i, j: (i, j)),
                pl.BlockSpec((tn, 1), lambda i, j: (i, 0)),
                pl.BlockSpec((tn, 1), lambda i, j: (i, 0)),
            ],
        ),
        compiler_params=pltpu.CompilerParams(
            dimension_semantics=("parallel", "arbitrary"),
            vmem_limit_bytes=_VMEM_LIMIT),
        cost_estimate=cost,
    )(x2d.astype(MXU_DTYPE), w.astype(MXU_DTYPE), b)

    return pl.pallas_call(
        softmax_norm_kernel,
        out_shape=jax.ShapeDtypeStruct((N, V), jnp.float32),
        grid_spec=pltpu.PrefetchScalarGridSpec(
            num_scalar_prefetch=0,
            grid=(n_rows, n_vt),
            in_specs=[
                pl.BlockSpec((tn, tv), lambda i, j: (i, j)),
                pl.BlockSpec((tn, 1), lambda i, j: (i, 0)),
                pl.BlockSpec((tn, 1), lambda i, j: (i, 0)),
            ],
            out_specs=pl.BlockSpec((tn, tv), lambda i, j: (i, j)),
        ),
        compiler_params=pltpu.CompilerParams(
            dimension_semantics=("parallel", "parallel"),
            vmem_limit_bytes=_VMEM_LIMIT),
    )(logits, m, l)


# -----------------------------------------------------------------------------
# Parameter construction (deterministic, PyTorch-like uniform init).
# Gate-structured layouts so the forward pass can pad each gate to H_pad:
#   w_ih: (d_in, 4, H),  w_hh: (H, 4, H),  bias = b_ih + b_hh: (4, H).
# -----------------------------------------------------------------------------
def init_params(key, vocab_size, embed_size, hidden_size, n_layers):
    params = {}
    keys = jax.random.split(key, 3 + 4 * n_layers)
    ki = iter(keys)

    # nn.Embedding: N(0, 1)
    params["embed"] = jax.random.normal(next(ki), (vocab_size, embed_size),
                                        dtype=jnp.float32)

    # nn.LSTM: uniform(-1/sqrt(H), 1/sqrt(H)), gate order [i|f|g|o].
    bound = 1.0 / jnp.sqrt(jnp.float32(hidden_size))
    layers = []
    for layer in range(n_layers):
        d_in = embed_size if layer == 0 else hidden_size
        w_ih = jax.random.uniform(next(ki), (d_in, 4, hidden_size),
                                  minval=-bound, maxval=bound, dtype=jnp.float32)
        w_hh = jax.random.uniform(next(ki), (hidden_size, 4, hidden_size),
                                  minval=-bound, maxval=bound, dtype=jnp.float32)
        b_ih = jax.random.uniform(next(ki), (4, hidden_size),
                                  minval=-bound, maxval=bound, dtype=jnp.float32)
        b_hh = jax.random.uniform(next(ki), (4, hidden_size),
                                  minval=-bound, maxval=bound, dtype=jnp.float32)
        layers.append((w_ih, w_hh, b_ih + b_hh))
    params["lstm"] = layers

    # nn.Linear: uniform(-1/sqrt(in), 1/sqrt(in)); stored transposed (H, V).
    lb = 1.0 / jnp.sqrt(jnp.float32(hidden_size))
    params["proj_w"] = jax.random.uniform(next(ki), (hidden_size, vocab_size),
                                          minval=-lb, maxval=lb, dtype=jnp.float32)
    params["proj_b"] = jax.random.uniform(next(ki), (1, vocab_size),
                                          minval=-lb, maxval=lb, dtype=jnp.float32)
    return params


# -----------------------------------------------------------------------------
# Full forward pass (glue in JAX, hot path in Pallas kernels).
# -----------------------------------------------------------------------------
@jax.jit
def lstm_decoder_forward(params, token_ids):
    # token_ids: (seq_len, batch) int32 -> (seq_len, batch, vocab) probs.
    T, B = token_ids.shape
    V, E = params["embed"].shape
    H = params["proj_w"].shape[0]

    # Lane/sublane-friendly padded dims: features to 128 (lane-dense blocks,
    # no masked vst), batch to 16 (bf16 sublane packing).
    E_pad, H_pad, V_pad = (_round_up(d, 128) for d in (E, H, V))
    B_pad = _round_up(B, 16)

    # Embedding lookup (gather) — glue, plain XLA.
    # TODO(synk): a Pallas DMA-gather embedding kernel is possible but not
    # worthwhile at these sizes; XLA's gather is used instead.
    embed_p = jnp.pad(params["embed"], ((0, 0), (0, E_pad - E)))
    x = jnp.take(embed_p, token_ids, axis=0)                  # (T, B, E_pad)
    x = jnp.pad(x, ((0, 0), (0, B_pad - B), (0, 0)))          # (T, B_pad, E_pad)
    x = x.astype(MXU_DTYPE)

    # Stacked LSTM layers.
    for (w_ih, w_hh, bias) in params["lstm"]:
        d_in = w_ih.shape[0]
        d_in_pad = _round_up(d_in, 128)
        # Gate-major padded weights: each gate's H columns padded to H_pad so
        # in-kernel gate slices stay 128-lane aligned.  Zero padding keeps the
        # padded hidden units exactly zero through the recurrence.
        w_ih_p = jnp.pad(w_ih, ((0, d_in_pad - d_in), (0, 0),
                                (0, H_pad - H))).reshape(d_in_pad, 4 * H_pad)
        w_hh_p = jnp.pad(w_hh, ((0, H_pad - H), (0, 0),
                                (0, H_pad - H))).reshape(H_pad, 4 * H_pad)
        bias_p = jnp.pad(bias, ((0, 0), (0, H_pad - H))).reshape(1, 4 * H_pad)

        # (1) Hoisted input projection: one big row-tiled bf16 MXU matmul over
        #     T*B_pad rows, emitted directly in the (T, Bp, 4H) layout the
        #     recurrence consumes (free reshape, no XLA transpose).
        gates = run_linear(x.reshape(T * B_pad, d_in_pad),
                           w_ih_p, bias_p).reshape(T, B_pad, 4 * H_pad)
        # (2) Serial recurrence: one fused bf16 h@W_hh dot per time step.
        x = run_lstm_recurrence(gates, w_hh_p)                # (T, B_pad, H_pad) bf16

    # Projection + softmax on the padded rows (cheap filler); padding is
    # sliced off only at the very end.  Padded vocab columns get a -1e30 bias
    # so they contribute exp(.)==0 to the softmax normalizer.
    proj_w_p = jnp.pad(params["proj_w"], ((0, H_pad - H), (0, V_pad - V)))
    proj_b_p = jnp.pad(params["proj_b"], ((0, 0), (0, V_pad - V)),
                       constant_values=_NEG_BIG)
    probs = run_proj_softmax(x.reshape(T * B_pad, H_pad), proj_w_p, proj_b_p)
    return probs.reshape(T, B_pad, V_pad)[:, :B, :V]          # (T, B, vocab)


if __name__ == "__main__":
    # Small, self-consistent config.
    vocab_size = 32
    embed_size = 16
    hidden_size = 32
    n_layers = 2
    seq_len = 8
    batch = 2

    key = jax.random.PRNGKey(0)
    k_param, k_data = jax.random.split(key)

    params = init_params(k_param, vocab_size, embed_size, hidden_size, n_layers)
    token_ids = jax.random.randint(k_data, (seq_len, batch), 0, vocab_size,
                                   dtype=jnp.int32)

    out = lstm_decoder_forward(params, token_ids)
    out = jax.block_until_ready(out)

    assert out.shape == (seq_len, batch, vocab_size)
    # Softmax rows sum to ~1 (loose tolerance: bf16 MXU + EUP approx reciprocal).
    assert bool(jnp.allclose(jnp.sum(out, axis=-1), 1.0, atol=5e-3))
    print("KERNEL_OK")
</pallas_src>

<mosaic_0001>
module attributes {stable_mosaic.version = 11 : i64} {
  func.func @linear_kernel(%arg0: i32, %arg1: memref<128x128xbf16, #tpu.memory_space<vmem>>, %arg2: memref<128x512xbf16, #tpu.memory_space<vmem>>, %arg3: memref<1x512xf32, #tpu.memory_space<vmem>>, %arg4: memref<128x512xbf16, #tpu.memory_space<vmem>>) attributes {dimension_semantics = [#tpu.dimension_semantics<parallel>], iteration_bounds = array<i64: 1>, scalar_prefetch = 0 : i64, scratch_operands = 0 : i64, tpu.core_type = #tpu.core_type<tc>, window_params = [{transform_indices = @transform_0, window_bounds = array<i64: 128, 128>}, {pipeline_mode = #tpu.pipeline_mode<synchronous>, transform_indices = @transform_1, window_bounds = array<i64: 128, 512>}, {pipeline_mode = #tpu.pipeline_mode<synchronous>, transform_indices = @transform_2, window_bounds = array<i64: 1, 512>}, {transform_indices = @transform_3, window_bounds = array<i64: 128, 512>}]} {
    %c0 = arith.constant 0 : index
    %c0_0 = arith.constant 0 : index
    %0 = vector.load %arg1[%c0, %c0_0] : memref<128x128xbf16, #tpu.memory_space<vmem>>, vector<128x128xbf16>
    %c0_1 = arith.constant 0 : index
    %c0_2 = arith.constant 0 : index
    %1 = vector.load %arg2[%c0_1, %c0_2] : memref<128x512xbf16, #tpu.memory_space<vmem>>, vector<128x512xbf16>
    %cst = arith.constant dense<0.000000e+00> : vector<128x512xf32>
    %2 = tpu.matmul %0, %1, %cst {dimension_numbers = #tpu.dot_dimension_numbers<[1], [0], [0], [1], [0, 0, 1, 1], [], []>} : vector<128x128xbf16>, vector<128x512xbf16>, vector<128x512xf32> -> vector<128x512xf32>
    %c0_3 = arith.constant 0 : index
    %c0_4 = arith.constant 0 : index
    %3 = vector.load %arg3[%c0_3, %c0_4] : memref<1x512xf32, #tpu.memory_space<vmem>>, vector<1x512xf32>
    %4 = vector.broadcast %3 : vector<1x512xf32> to vector<128x512xf32>
    %5 = arith.addf %2, %4 : vector<128x512xf32>
    %6 = arith.truncf %5 : vector<128x512xf32> to vector<128x512xbf16>
    %c0_5 = arith.constant 0 : index
    %c0_6 = arith.constant 0 : index
    %7 = vector.load %arg4[%c0_5, %c0_6] : memref<128x512xbf16, #tpu.memory_space<vmem>>, vector<128x512xbf16>
    tpu.vector_store %arg4[%c0_5, %c0_6], %6 {strides = array<i32>} : memref<128x512xbf16, #tpu.memory_space<vmem>>, vector<128x512xbf16>,
    return
  }
  func.func @transform_0(%arg0: i32) -> (i32, i32) {
    %c0_i32 = arith.constant 0 : i32
    %c0_i32_0 = arith.constant 0 : i32
    return %arg0, %c0_i32 : i32, i32
  }
  func.func @transform_1(%arg0: i32) -> (i32, i32) {
    %c0_i32 = arith.constant 0 : i32
    %c0_i32_0 = arith.constant 0 : i32
    %c0_i32_1 = arith.constant 0 : i32
    return %c0_i32, %c0_i32_0 : i32, i32
  }
  func.func @transform_2(%arg0: i32) -> (i32, i32) {
    %c0_i32 = arith.constant 0 : i32
    %c0_i32_0 = arith.constant 0 : i32
    %c0_i32_1 = arith.constant 0 : i32
    return %c0_i32, %c0_i32_0 : i32, i32
  }
  func.func @transform_3(%arg0: i32) -> (i32, i32) {
    %c0_i32 = arith.constant 0 : i32
    %c0_i32_0 = arith.constant 0 : i32
    return %arg0, %c0_i32 : i32, i32
  }
}

module attributes {stable_mosaic.version = 11 : i64} {
  func.func @lstm_chunk_kernel(%arg0: i32, %arg1: i32, %arg2: memref<8x16x512xbf16, #tpu.memory_space<vmem>>, %arg3: memref<128x512xbf16, #tpu.memory_space<vmem>>, %arg4: memref<8x16x128xbf16, #tpu.memory_space<vmem>>, %arg5: memref<16x128xf32, #tpu.memory_space<vmem>>, %arg6: memref<16x128xf32, #tpu.memory_space<vmem>>) attributes {dimension_semantics = [#tpu.dimension_semantics<parallel>, #tpu.dimension_semantics<arbitrary>], iteration_bounds = array<i64: 1, 1>, scalar_prefetch = 0 : i64, scratch_operands = 2 : i64, tpu.core_type = #tpu.core_type<tc>, window_params = [{transform_indices = @transform_0, window_bounds = array<i64: 8, 16, 512>}, {pipeline_mode = #tpu.pipeline_mode<synchronous>, transform_indices = @transform_1, window_bounds = array<i64: 128, 512>}, {transform_indices = @transform_2, window_bounds = array<i64: 8, 16, 128>}]} {
    %c0_i32 = arith.constant 0 : i32
    %0 = arith.cmpi eq, %arg1, %c0_i32 : i32
    %1 = arith.extui %0 : i1 to i32
    %c0_i32_0 = arith.constant 0 : i32
    %2 = arith.cmpi ne, %1, %c0_i32_0 : i32
    scf.if %2 {
      %cst_88 = arith.constant 0.000000e+00 : f32
      %311 = vector.broadcast %cst_88 : f32 to vector<16x128xf32>
      %c0_89 = arith.constant 0 : index
      %c0_90 = arith.constant 0 : index
      %312 = vector.load %arg5[%c0_89, %c0_90] : memref<16x128xf32, #tpu.memory_space<vmem>>, vector<16x128xf32>
      tpu.vector_store %arg5[%c0_89, %c0_90], %311 {strides = array<i32>} : memref<16x128xf32, #tpu.memory_space<vmem>>, vector<16x128xf32>,
      %cst_91 = arith.constant 0.000000e+00 : f32
      %313 = vector.broadcast %cst_91 : f32 to vector<16x128xf32>
      %c0_92 = arith.constant 0 : index
      %c0_93 = arith.constant 0 : index
      %314 = vector.load %arg6[%c0_92, %c0_93] : memref<16x128xf32, #tpu.memory_space<vmem>>, vector<16x128xf32>
      tpu.vector_store %arg6[%c0_92, %c0_93], %313 {strides = array<i32>} : memref<16x128xf32, #tpu.memory_space<vmem>>, vector<16x128xf32>,
    } else {
    }
    %c0 = arith.constant 0 : index
    %c0_1 = arith.constant 0 : index
    %3 = vector.load %arg5[%c0, %c0_1] : memref<16x128xf32, #tpu.memory_space<vmem>>, vector<16x128xf32>
    %c0_2 = arith.constant 0 : index
    %c0_3 = arith.constant 0 : index
    %4 = vector.load %arg6[%c0_2, %c0_3] : memref<16x128xf32, #tpu.memory_space<vmem>>, vector<16x128xf32>
    %c0_i32_4 = arith.constant 0 : i32
    %5 = arith.index_cast %c0_i32_4 : i32 to index
    %c0_5 = arith.constant 0 : index
    %c0_6 = arith.constant 0 : index
    %6 = vector.load %arg2[%5, %c0_5, %c0_6] : memref<8x16x512xbf16, #tpu.memory_space<vmem>>, vector<1x16x512xbf16>
    %7 = vector.shape_cast %6 : vector<1x16x512xbf16> to vector<16x512xbf16>
    %8 = arith.extf %7 : vector<16x512xbf16> to vector<16x512xf32>
    %9 = arith.truncf %3 : vector<16x128xf32> to vector<16x128xbf16>
    %c0_7 = arith.constant 0 : index
    %c0_8 = arith.constant 0 : index
    %10 = vector.load %arg3[%c0_7, %c0_8] : memref<128x512xbf16, #tpu.memory_space<vmem>>, vector<128x512xbf16>
    %cst = arith.constant dense<0.000000e+00> : vector<16x512xf32>
    %11 = tpu.matmul %9, %10, %cst {dimension_numbers = #tpu.dot_dimension_numbers<[1], [0], [0], [1], [0, 0, 1, 1], [], []>} : vector<16x128xbf16>, vector<128x512xbf16>, vector<16x512xf32> -> vector<16x512xf32>
    %12 = arith.addf %8, %11 : vector<16x512xf32>
    %13 = vector.extract_strided_slice %12 {offsets = [0, 0], sizes = [16, 128], strides = [1, 1]} : vector<16x512xf32> to vector<16x128xf32>
    %14 = arith.negf %13 : vector<16x128xf32>
    %15 = math.exp %14 : vector<16x128xf32>
    %cst_9 = arith.constant 1.000000e+00 : f32
    %16 = vector.broadcast %cst_9 : f32 to vector<16x128xf32>
    %17 = arith.addf %16, %15 : vector<16x128xf32>
    %18 = arith.divf %16, %17 : vector<16x128xf32>
    %19 = vector.extract_strided_slice %12 {offsets = [0, 128], sizes = [16, 128], strides = [1, 1]} : vector<16x512xf32> to vector<16x128xf32>
    %20 = arith.negf %19 : vector<16x128xf32>
    %21 = math.exp %20 : vector<16x128xf32>
    %cst_10 = arith.constant 1.000000e+00 : f32
    %22 = vector.broadcast %cst_10 : f32 to vector<16x128xf32>
    %23 = arith.addf %22, %21 : vector<16x128xf32>
    %24 = arith.divf %22, %23 : vector<16x128xf32>
    %25 = vector.extract_strided_slice %12 {offsets = [0, 256], sizes = [16, 128], strides = [1, 1]} : vector<16x512xf32> to vector<16x128xf32>
    %26 = math.tanh %25 : vector<16x128xf32>
    %27 = vector.extract_strided_slice %12 {offsets = [0, 384], sizes = [16, 128], strides = [1, 1]} : vector<16x512xf32> to vector<16x128xf32>
    %28 = arith.negf %27 : vector<16x128xf32>
    %29 = math.exp %28 : vector<16x128xf32>
    %cst_11 = arith.constant 1.000000e+00 : f32
    %30 = vector.broadcast %cst_11 : f32 to vector<16x128xf32>
    %31 = arith.addf %30, %29 : vector<16x128xf32>
    %32 = arith.divf %30, %31 : vector<16x128xf32>
    %33 = arith.mulf %24, %4 : vector<16x128xf32>
    %34 = arith.mulf %18, %26 : vector<16x128xf32>
    %35 = arith.addf %33, %34 : vector<16x128xf32>
    %36 = math.tanh %35 : vector<16x128xf32>
    %37 = arith.mulf %32, %36 : vector<16x128xf32>
    %38 = arith.truncf %37 : vector<16x128xf32> to vector<16x128xbf16>
    %39 = arith.index_cast %c0_i32_4 : i32 to index
    %c0_12 = arith.constant 0 : index
    %c0_13 = arith.constant 0 : index
    %40 = vector.load %arg4[%39, %c0_12, %c0_13] : memref<8x16x128xbf16, #tpu.memory_space<vmem>>, vector<1x16x128xbf16>
    %41 = vector.shape_cast %40 : vector<1x16x128xbf16> to vector<16x128xbf16>
    %42 = vector.shape_cast %38 : vector<16x128xbf16> to vector<1x16x128xbf16>
    tpu.vector_store %arg4[%39, %c0_12, %c0_13], %42 {strides = array<i32>} : memref<8x16x128xbf16, #tpu.memory_space<vmem>>, vector<1x16x128xbf16>,
    %c1_i32 = arith.constant 1 : i32
    %43 = arith.index_cast %c1_i32 : i32 to index
    %c0_14 = arith.constant 0 : index
    %c0_15 = arith.constant 0 : index
    %44 = vector.load %arg2[%43, %c0_14, %c0_15] : memref<8x16x512xbf16, #tpu.memory_space<vmem>>, vector<1x16x512xbf16>
    %45 = vector.shape_cast %44 : vector<1x16x512xbf16> to vector<16x512xbf16>
    %46 = arith.extf %45 : vector<16x512xbf16> to vector<16x512xf32>
    %47 = arith.truncf %37 : vector<16x128xf32> to vector<16x128xbf16>
    %c0_16 = arith.constant 0 : index
    %c0_17 = arith.constant 0 : index
    %48 = vector.load %arg3[%c0_16, %c0_17] : memref<128x512xbf16, #tpu.memory_space<vmem>>, vector<128x512xbf16>
    %cst_18 = arith.constant dense<0.000000e+00> : vector<16x512xf32>
    %49 = tpu.matmul %47, %48, %cst_18 {dimension_numbers = #tpu.dot_dimension_numbers<[1], [0], [0], [1], [0, 0, 1, 1], [], []>} : vector<16x128xbf16>, vector<128x512xbf16>, vector<16x512xf32> -> vector<16x512xf32>
    %50 = arith.addf %46, %49 : vector<16x512xf32>
    %51 = vector.extract_strided_slice %50 {offsets = [0, 0], sizes = [16, 128], strides = [1, 1]} : vector<16x512xf32> to vector<16x128xf32>
    %52 = arith.negf %51 : vector<16x128xf32>
    %53 = math.exp %52 : vector<16x128xf32>
    %cst_19 = arith.constant 1.000000e+00 : f32
    %54 = vector.broadcast %cst_19 : f32 to vector<16x128xf32>
    %55 = arith.addf %54, %53 : vector<16x128xf32>
    %56 = arith.divf %54, %55 : vector<16x128xf32>
    %57 = vector.extract_strided_slice %50 {offsets = [0, 128], sizes = [16, 128], strides = [1, 1]} : vector<16x512xf32> to vector<16x128xf32>
    %58 = arith.negf %57 : vector<16x128xf32>
    %59 = math.exp %58 : vector<16x128xf32>
    %cst_20 = arith.constant 1.000000e+00 : f32
    %60 = vector.broadcast %cst_20 : f32 to vector<16x128xf32>
    %61 = arith.addf %60, %59 : vector<16x128xf32>
    %62 = arith.divf %60, %61 : vector<16x128xf32>
    %63 = vector.extract_strided_slice %50 {offsets = [0, 256], sizes = [16, 128], strides = [1, 1]} : vector<16x512xf32> to vector<16x128xf32>
    %64 = math.tanh %63 : vector<16x128xf32>
    %65 = vector.extract_strided_slice %50 {offsets = [0, 384], sizes = [16, 128], strides = [1, 1]} : vector<16x512xf32> to vector<16x128xf32>
    %66 = arith.negf %65 : vector<16x128xf32>
    %67 = math.exp %66 : vector<16x128xf32>
    %cst_21 = arith.constant 1.000000e+00 : f32
    %68 = vector.broadcast %cst_21 : f32 to vector<16x128xf32>
    %69 = arith.addf %68, %67 : vector<16x128xf32>
    %70 = arith.divf %68, %69 : vector<16x128xf32>
    %71 = arith.mulf %62, %35 : vector<16x128xf32>
    %72 = arith.mulf %56, %64 : vector<16x128xf32>
    %73 = arith.addf %71, %72 : vector<16x128xf32>
    %74 = math.tanh %73 : vector<16x128xf32>
    %75 = arith.mulf %70, %74 : vector<16x128xf32>
    %76 = arith.truncf %75 : vector<16x128xf32> to vector<16x128xbf16>
    %77 = arith.index_cast %c1_i32 : i32 to index
    %c0_22 = arith.constant 0 : index
    %c0_23 = arith.constant 0 : index
    %78 = vector.load %arg4[%77, %c0_22, %c0_23] : memref<8x16x128xbf16, #tpu.memory_space<vmem>>, vector<1x16x128xbf16>
    %79 = vector.shape_cast %78 : vector<1x16x128xbf16> to vector<16x128xbf16>
    %80 = vector.shape_cast %76 : vector<16x128xbf16> to vector<1x16x128xbf16>
    tpu.vector_store %arg4[%77, %c0_22, %c0_23], %80 {strides = array<i32>} : memref<8x16x128xbf16, #tpu.memory_space<vmem>>, vector<1x16x128xbf16>,
    %c2_i32 = arith.constant 2 : i32
    %81 = arith.index_cast %c2_i32 : i32 to index
    %c0_24 = arith.constant 0 : index
    %c0_25 = arith.constant 0 : index
    %82 = vector.load %arg2[%81, %c0_24, %c0_25] : memref<8x16x512xbf16, #tpu.memory_space<vmem>>, vector<1x16x512xbf16>
    %83 = vector.shape_cast %82 : vector<1x16x512xbf16> to vector<16x512xbf16>
    %84 = arith.extf %83 : vector<16x512xbf16> to vector<16x512xf32>
    %85 = arith.truncf %75 : vector<16x128xf32> to vector<16x128xbf16>
    %c0_26 = arith.constant 0 : index
    %c0_27 = arith.constant 0 : index
    %86 = vector.load %arg3[%c0_26, %c0_27] : memref<128x512xbf16, #tpu.memory_space<vmem>>, vector<128x512xbf16>
    %cst_28 = arith.constant dense<0.000000e+00> : vector<16x512xf32>
    %87 = tpu.matmul %85, %86, %cst_28 {dimension_numbers = #tpu.dot_dimension_numbers<[1], [0], [0], [1], [0, 0, 1, 1], [], []>} : vector<16x128xbf16>, vector<128x512xbf16>, vector<16x512xf32> -> vector<16x512xf32>
    %88 = arith.addf %84, %87 : vector<16x512xf32>
    %89 = vector.extract_strided_slice %88 {offsets = [0, 0], sizes = [16, 128], strides = [1, 1]} : vector<16x512xf32> to vector<16x128xf32>
    %90 = arith.negf %89 : vector<16x128xf32>
    %91 = math.exp %90 : vector<16x128xf32>
    %cst_29 = arith.constant 1.000000e+00 : f32
    %92 = vector.broadcast %cst_29 : f32 to vector<16x128xf32>
    %93 = arith.addf %92, %91 : vector<16x128xf32>
    %94 = arith.divf %92, %93 : vector<16x128xf32>
    %95 = vector.extract_strided_slice %88 {offsets = [0, 128], sizes = [16, 128], strides = [1, 1]} : vector<16x512xf32> to vector<16x128xf32>
    %96 = arith.negf %95 : vector<16x128xf32>
    %97 = math.exp %96 : vector<16x128xf32>
    %cst_30 = arith.constant 1.000000e+00 : f32
    %98 = vector.broadcast %cst_30 : f32 to vector<16x128xf32>
    %99 = arith.addf %98, %97 : vector<16x128xf32>
    %100 = arith.divf %98, %99 : vector<16x128xf32>
    %101 = vector.extract_strided_slice %88 {offsets = [0, 256], sizes = [16, 128], strides = [1, 1]} : vector<16x512xf32> to vector<16x128xf32>
    %102 = math.tanh %101 : vector<16x128xf32>
    %103 = vector.extract_strided_slice %88 {offsets = [0, 384], sizes = [16, 128], strides = [1, 1]} : vector<16x512xf32> to vector<16x128xf32>
    %104 = arith.negf %103 : vector<16x128xf32>
    %105 = math.exp %104 : vector<16x128xf32>
    %cst_31 = arith.constant 1.000000e+00 : f32
    %106 = vector.broadcast %cst_31 : f32 to vector<16x128xf32>
    %107 = arith.addf %106, %105 : vector<16x128xf32>
    %108 = arith.divf %106, %107 : vector<16x128xf32>
    %109 = arith.mulf %100, %73 : vector<16x128xf32>
    %110 = arith.mulf %94, %102 : vector<16x128xf32>
    %111 = arith.addf %109, %110 : vector<16x128xf32>
    %112 = math.tanh %111 : vector<16x128xf32>
    %113 = arith.mulf %108, %112 : vector<16x128xf32>
    %114 = arith.truncf %113 : vector<16x128xf32> to vector<16x128xbf16>
    %115 = arith.index_cast %c2_i32 : i32 to index
    %c0_32 = arith.constant 0 : index
    %c0_33 = arith.constant 0 : index
    %116 = vector.load %arg4[%115, %c0_32, %c0_33] : memref<8x16x128xbf16, #tpu.memory_space<vmem>>, vector<1x16x128xbf16>
    %117 = vector.shape_cast %116 : vector<1x16x128xbf16> to vector<16x128xbf16>
    %118 = vector.shape_cast %114 : vector<16x128xbf16> to vector<1x16x128xbf16>
    tpu.vector_store %arg4[%115, %c0_32, %c0_33], %118 {strides = array<i32>} : memref<8x16x128xbf16, #tpu.memory_space<vmem>>, vector<1x16x128xbf16>,
    %c3_i32 = arith.constant 3 : i32
    %119 = arith.index_cast %c3_i32 : i32 to index
    %c0_34 = arith.constant 0 : index
    %c0_35 = arith.constant 0 : index
    %120 = vector.load %arg2[%119, %c0_34, %c0_35] : memref<8x16x512xbf16, #tpu.memory_space<vmem>>, vector<1x16x512xbf16>
    %121 = vector.shape_cast %120 : vector<1x16x512xbf16> to vector<16x512xbf16>
    %122 = arith.extf %121 : vector<16x512xbf16> to vector<16x512xf32>
    %123 = arith.truncf %113 : vector<16x128xf32> to vector<16x128xbf16>
    %c0_36 = arith.constant 0 : index
    %c0_37 = arith.constant 0 : index
    %124 = vector.load %arg3[%c0_36, %c0_37] : memref<128x512xbf16, #tpu.memory_space<vmem>>, vector<128x512xbf16>
    %cst_38 = arith.constant dense<0.000000e+00> : vector<16x512xf32>
    %125 = tpu.matmul %123, %124, %cst_38 {dimension_numbers = #tpu.dot_dimension_numbers<[1], [0], [0], [1], [0, 0, 1, 1], [], []>} : vector<16x128xbf16>, vector<128x512xbf16>, vector<16x512xf32> -> vector<16x512xf32>
    %126 = arith.addf %122, %125 : vector<16x512xf32>
    %127 = vector.extract_strided_slice %126 {offsets = [0, 0], sizes = [16, 128], strides = [1, 1]} : vector<16x512xf32> to vector<16x128xf32>
    %128 = arith.negf %127 : vector<16x128xf32>
    %129 = math.exp %128 : vector<16x128xf32>
    %cst_39 = arith.constant 1.000000e+00 : f32
    %130 = vector.broadcast %cst_39 : f32 to vector<16x128xf32>
    %131 = arith.addf %130, %129 : vector<16x128xf32>
    %132 = arith.divf %130, %131 : vector<16x128xf32>
    %133 = vector.extract_strided_slice %126 {offsets = [0, 128], sizes = [16, 128], strides = [1, 1]} : vector<16x512xf32> to vector<16x128xf32>
    %134 = arith.negf %133 : vector<16x128xf32>
    %135 = math.exp %134 : vector<16x128xf32>
    %cst_40 = arith.constant 1.000000e+00 : f32
    %136 = vector.broadcast %cst_40 : f32 to vector<16x128xf32>
    %137 = arith.addf %136, %135 : vector<16x128xf32>
    %138 = arith.divf %136, %137 : vector<16x128xf32>
    %139 = vector.extract_strided_slice %126 {offsets = [0, 256], sizes = [16, 128], strides = [1, 1]} : vector<16x512xf32> to vector<16x128xf32>
    %140 = math.tanh %139 : vector<16x128xf32>
    %141 = vector.extract_strided_slice %126 {offsets = [0, 384], sizes = [16, 128], strides = [1, 1]} : vector<16x512xf32> to vector<16x128xf32>
    %142 = arith.negf %141 : vector<16x128xf32>
    %143 = math.exp %142 : vector<16x128xf32>
    %cst_41 = arith.constant 1.000000e+00 : f32
    %144 = vector.broadcast %cst_41 : f32 to vector<16x128xf32>
    %145 = arith.addf %144, %143 : vector<16x128xf32>
    %146 = arith.divf %144, %145 : vector<16x128xf32>
    %147 = arith.mulf %138, %111 : vector<16x128xf32>
    %148 = arith.mulf %132, %140 : vector<16x128xf32>
    %149 = arith.addf %147, %148 : vector<16x128xf32>
    %150 = math.tanh %149 : vector<16x128xf32>
    %151 = arith.mulf %146, %150 : vector<16x128xf32>
    %152 = arith.truncf %151 : vector<16x128xf32> to vector<16x128xbf16>
    %153 = arith.index_cast %c3_i32 : i32 to index
    %c0_42 = arith.constant 0 : index
    %c0_43 = arith.constant 0 : index
    %154 = vector.load %arg4[%153, %c0_42, %c0_43] : memref<8x16x128xbf16, #tpu.memory_space<vmem>>, vector<1x16x128xbf16>
    %155 = vector.shape_cast %154 : vector<1x16x128xbf16> to vector<16x128xbf16>
    %156 = vector.shape_cast %152 : vector<16x128xbf16> to vector<1x16x128xbf16>
    tpu.vector_store %arg4[%153, %c0_42, %c0_43], %156 {strides = array<i32>} : memref<8x16x128xbf16, #tpu.memory_space<vmem>>, vector<1x16x128xbf16>,
    %c4_i32 = arith.constant 4 : i32
    %157 = arith.index_cast %c4_i32 : i32 to index
    %c0_44 = arith.constant 0 : index
    %c0_45 = arith.constant 0 : index
    %158 = vector.load %arg2[%157, %c0_44, %c0_45] : memref<8x16x512xbf16, #tpu.memory_space<vmem>>, vector<1x16x512xbf16>
    %159 = vector.shape_cast %158 : vector<1x16x512xbf16> to vector<16x512xbf16>
    %160 = arith.extf %159 : vector<16x512xbf16> to vector<16x512xf32>
    %161 = arith.truncf %151 : vector<16x128xf32> to vector<16x128xbf16>
    %c0_46 = arith.constant 0 : index
    %c0_47 = arith.constant 0 : index
    %162 = vector.load %arg3[%c0_46, %c0_47] : memref<128x512xbf16, #tpu.memory_space<vmem>>, vector<128x512xbf16>
    %cst_48 = arith.constant dense<0.000000e+00> : vector<16x512xf32>
    %163 = tpu.matmul %161, %162, %cst_48 {dimension_numbers = #tpu.dot_dimension_numbers<[1], [0], [0], [1], [0, 0, 1, 1], [], []>} : vector<16x128xbf16>, vector<128x512xbf16>, vector<16x512xf32> -> vector<16x512xf32>
    %164 = arith.addf %160, %163 : vector<16x512xf32>
    %165 = vector.extract_strided_slice %164 {offsets = [0, 0], sizes = [16, 128], strides = [1, 1]} : vector<16x512xf32> to vector<16x128xf32>
    %166 = arith.negf %165 : vector<16x128xf32>
    %167 = math.exp %166 : vector<16x128xf32>
    %cst_49 = arith.constant 1.000000e+00 : f32
    %168 = vector.broadcast %cst_49 : f32 to vector<16x128xf32>
    %169 = arith.addf %168, %167 : vector<16x128xf32>
    %170 = arith.divf %168, %169 : vector<16x128xf32>
    %171 = vector.extract_strided_slice %164 {offsets = [0, 128], sizes = [16, 128], strides = [1, 1]} : vector<16x512xf32> to vector<16x128xf32>
    %172 = arith.negf %171 : vector<16x128xf32>
    %173 = math.exp %172 : vector<16x128xf32>
    %cst_50 = arith.constant 1.000000e+00 : f32
    %174 = vector.broadcast %cst_50 : f32 to vector<16x128xf32>
    %175 = arith.addf %174, %173 : vector<16x128xf32>
    %176 = arith.divf %174, %175 : vector<16x128xf32>
    %177 = vector.extract_strided_slice %164 {offsets = [0, 256], sizes = [16, 128], strides = [1, 1]} : vector<16x512xf32> to vector<16x128xf32>
    %178 = math.tanh %177 : vector<16x128xf32>
    %179 = vector.extract_strided_slice %164 {offsets = [0, 384], sizes = [16, 128], strides = [1, 1]} : vector<16x512xf32> to vector<16x128xf32>
    %180 = arith.negf %179 : vector<16x128xf32>
    %181 = math.exp %180 : vector<16x128xf32>
    %cst_51 = arith.constant 1.000000e+00 : f32
    %182 = vector.broadcast %cst_51 : f32 to vector<16x128xf32>
    %183 = arith.addf %182, %181 : vector<16x128xf32>
    %184 = arith.divf %182, %183 : vector<16x128xf32>
    %185 = arith.mulf %176, %149 : vector<16x128xf32>
    %186 = arith.mulf %170, %178 : vector<16x128xf32>
    %187 = arith.addf %185, %186 : vector<16x128xf32>
    %188 = math.tanh %187 : vector<16x128xf32>
    %189 = arith.mulf %184, %188 : vector<16x128xf32>
    %190 = arith.truncf %189 : vector<16x128xf32> to vector<16x128xbf16>
    %191 = arith.index_cast %c4_i32 : i32 to index
    %c0_52 = arith.constant 0 : index
    %c0_53 = arith.constant 0 : index
    %192 = vector.load %arg4[%191, %c0_52, %c0_53] : memref<8x16x128xbf16, #tpu.memory_space<vmem>>, vector<1x16x128xbf16>
    %193 = vector.shape_cast %192 : vector<1x16x128xbf16> to vector<16x128xbf16>
    %194 = vector.shape_cast %190 : vector<16x128xbf16> to vector<1x16x128xbf16>
    tpu.vector_store %arg4[%191, %c0_52, %c0_53], %194 {strides = array<i32>} : memref<8x16x128xbf16, #tpu.memory_space<vmem>>, vector<1x16x128xbf16>,
    %c5_i32 = arith.constant 5 : i32
    %195 = arith.index_cast %c5_i32 : i32 to index
    %c0_54 = arith.constant 0 : index
    %c0_55 = arith.constant 0 : index
    %196 = vector.load %arg2[%195, %c0_54, %c0_55] : memref<8x16x512xbf16, #tpu.memory_space<vmem>>, vector<1x16x512xbf16>
    %197 = vector.shape_cast %196 : vector<1x16x512xbf16> to vector<16x512xbf16>
    %198 = arith.extf %197 : vector<16x512xbf16> to vector<16x512xf32>
    %199 = arith.truncf %189 : vector<16x128xf32> to vector<16x128xbf16>
    %c0_56 = arith.constant 0 : index
    %c0_57 = arith.constant 0 : index
    %200 = vector.load %arg3[%c0_56, %c0_57] : memref<128x512xbf16, #tpu.memory_space<vmem>>, vector<128x512xbf16>
    %cst_58 = arith.constant dense<0.000000e+00> : vector<16x512xf32>
    %201 = tpu.matmul %199, %200, %cst_58 {dimension_numbers = #tpu.dot_dimension_numbers<[1], [0], [0], [1], [0, 0, 1, 1], [], []>} : vector<16x128xbf16>, vector<128x512xbf16>, vector<16x512xf32> -> vector<16x512xf32>
    %202 = arith.addf %198, %201 : vector<16x512xf32>
    %203 = vector.extract_strided_slice %202 {offsets = [0, 0], sizes = [16, 128], strides = [1, 1]} : vector<16x512xf32> to vector<16x128xf32>
    %204 = arith.negf %203 : vector<16x128xf32>
    %205 = math.exp %204 : vector<16x128xf32>
    %cst_59 = arith.constant 1.000000e+00 : f32
    %206 = vector.broadcast %cst_59 : f32 to vector<16x128xf32>
    %207 = arith.addf %206, %205 : vector<16x128xf32>
    %208 = arith.divf %206, %207 : vector<16x128xf32>
    %209 = vector.extract_strided_slice %202 {offsets = [0, 128], sizes = [16, 128], strides = [1, 1]} : vector<16x512xf32> to vector<16x128xf32>
    %210 = arith.negf %209 : vector<16x128xf32>
    %211 = math.exp %210 : vector<16x128xf32>
    %cst_60 = arith.constant 1.000000e+00 : f32
    %212 = vector.broadcast %cst_60 : f32 to vector<16x128xf32>
    %213 = arith.addf %212, %211 : vector<16x128xf32>
    %214 = arith.divf %212, %213 : vector<16x128xf32>
    %215 = vector.extract_strided_slice %202 {offsets = [0, 256], sizes = [16, 128], strides = [1, 1]} : vector<16x512xf32> to vector<16x128xf32>
    %216 = math.tanh %215 : vector<16x128xf32>
    %217 = vector.extract_strided_slice %202 {offsets = [0, 384], sizes = [16, 128], strides = [1, 1]} : vector<16x512xf32> to vector<16x128xf32>
    %218 = arith.negf %217 : vector<16x128xf32>
    %219 = math.exp %218 : vector<16x128xf32>
    %cst_61 = arith.constant 1.000000e+00 : f32
    %220 = vector.broadcast %cst_61 : f32 to vector<16x128xf32>
    %221 = arith.addf %220, %219 : vector<16x128xf32>
    %222 = arith.divf %220, %221 : vector<16x128xf32>
    %223 = arith.mulf %214, %187 : vector<16x128xf32>
    %224 = arith.mulf %208, %216 : vector<16x128xf32>
    %225 = arith.addf %223, %224 : vector<16x128xf32>
    %226 = math.tanh %225 : vector<16x128xf32>
    %227 = arith.mulf %222, %226 : vector<16x128xf32>
    %228 = arith.truncf %227 : vector<16x128xf32> to vector<16x128xbf16>
    %229 = arith.index_cast %c5_i32 : i32 to index
    %c0_62 = arith.constant 0 : index
    %c0_63 = arith.constant 0 : index
    %230 = vector.load %arg4[%229, %c0_62, %c0_63] : memref<8x16x128xbf16, #tpu.memory_space<vmem>>, vector<1x16x128xbf16>
    %231 = vector.shape_cast %230 : vector<1x16x128xbf16> to vector<16x128xbf16>
    %232 = vector.shape_cast %228 : vector<16x128xbf16> to vector<1x16x128xbf16>
    tpu.vector_store %arg4[%229, %c0_62, %c0_63], %232 {strides = array<i32>} : memref<8x16x128xbf16, #tpu.memory_space<vmem>>, vector<1x16x128xbf16>,
    %c6_i32 = arith.constant 6 : i32
    %233 = arith.index_cast %c6_i32 : i32 to index
    %c0_64 = arith.constant 0 : index
    %c0_65 = arith.constant 0 : index
    %234 = vector.load %arg2[%233, %c0_64, %c0_65] : memref<8x16x512xbf16, #tpu.memory_space<vmem>>, vector<1x16x512xbf16>
    %235 = vector.shape_cast %234 : vector<1x16x512xbf16> to vector<16x512xbf16>
    %236 = arith.extf %235 : vector<16x512xbf16> to vector<16x512xf32>
    %237 = arith.truncf %227 : vector<16x128xf32> to vector<16x128xbf16>
    %c0_66 = arith.constant 0 : index
    %c0_67 = arith.constant 0 : index
    %238 = vector.load %arg3[%c0_66, %c0_67] : memref<128x512xbf16, #tpu.memory_space<vmem>>, vector<128x512xbf16>
    %cst_68 = arith.constant dense<0.000000e+00> : vector<16x512xf32>
    %239 = tpu.matmul %237, %238, %cst_68 {dimension_numbers = #tpu.dot_dimension_numbers<[1], [0], [0], [1], [0, 0, 1, 1], [], []>} : vector<16x128xbf16>, vector<128x512xbf16>, vector<16x512xf32> -> vector<16x512xf32>
    %240 = arith.addf %236, %239 : vector<16x512xf32>
    %241 = vector.extract_strided_slice %240 {offsets = [0, 0], sizes = [16, 128], strides = [1, 1]} : vector<16x512xf32> to vector<16x128xf32>
    %242 = arith.negf %241 : vector<16x128xf32>
    %243 = math.exp %242 : vector<16x128xf32>
    %cst_69 = arith.constant 1.000000e+00 : f32
    %244 = vector.broadcast %cst_69 : f32 to vector<16x128xf32>
    %245 = arith.addf %244, %243 : vector<16x128xf32>
    %246 = arith.divf %244, %245 : vector<16x128xf32>
    %247 = vector.extract_strided_slice %240 {offsets = [0, 128], sizes = [16, 128], strides = [1, 1]} : vector<16x512xf32> to vector<16x128xf32>
    %248 = arith.negf %247 : vector<16x128xf32>
    %249 = math.exp %248 : vector<16x128xf32>
    %cst_70 = arith.constant 1.000000e+00 : f32
    %250 = vector.broadcast %cst_70 : f32 to vector<16x128xf32>
    %251 = arith.addf %250, %249 : vector<16x128xf32>
    %252 = arith.divf %250, %251 : vector<16x128xf32>
    %253 = vector.extract_strided_slice %240 {offsets = [0, 256], sizes = [16, 128], strides = [1, 1]} : vector<16x512xf32> to vector<16x128xf32>
    %254 = math.tanh %253 : vector<16x128xf32>
    %255 = vector.extract_strided_slice %240 {offsets = [0, 384], sizes = [16, 128], strides = [1, 1]} : vector<16x512xf32> to vector<16x128xf32>
    %256 = arith.negf %255 : vector<16x128xf32>
    %257 = math.exp %256 : vector<16x128xf32>
    %cst_71 = arith.constant 1.000000e+00 : f32
    %258 = vector.broadcast %cst_71 : f32 to vector<16x128xf32>
    %259 = arith.addf %258, %257 : vector<16x128xf32>
    %260 = arith.divf %258, %259 : vector<16x128xf32>
    %261 = arith.mulf %252, %225 : vector<16x128xf32>
    %262 = arith.mulf %246, %254 : vector<16x128xf32>
    %263 = arith.addf %261, %262 : vector<16x128xf32>
    %264 = math.tanh %263 : vector<16x128xf32>
    %265 = arith.mulf %260, %264 : vector<16x128xf32>
    %266 = arith.truncf %265 : vector<16x128xf32> to vector<16x128xbf16>
    %267 = arith.index_cast %c6_i32 : i32 to index
    %c0_72 = arith.constant 0 : index
    %c0_73 = arith.constant 0 : index
    %268 = vector.load %arg4[%267, %c0_72, %c0_73] : memref<8x16x128xbf16, #tpu.memory_space<vmem>>, vector<1x16x128xbf16>
    %269 = vector.shape_cast %268 : vector<1x16x128xbf16> to vector<16x128xbf16>
    %270 = vector.shape_cast %266 : vector<16x128xbf16> to vector<1x16x128xbf16>
    tpu.vector_store %arg4[%267, %c0_72, %c0_73], %270 {strides = array<i32>} : memref<8x16x128xbf16, #tpu.memory_space<vmem>>, vector<1x16x128xbf16>,
    %c7_i32 = arith.constant 7 : i32
    %271 = arith.index_cast %c7_i32 : i32 to index
    %c0_74 = arith.constant 0 : index
    %c0_75 = arith.constant 0 : index
    %272 = vector.load %arg2[%271, %c0_74, %c0_75] : memref<8x16x512xbf16, #tpu.memory_space<vmem>>, vector<1x16x512xbf16>
    %273 = vector.shape_cast %272 : vector<1x16x512xbf16> to vector<16x512xbf16>
    %274 = arith.extf %273 : vector<16x512xbf16> to vector<16x512xf32>
    %275 = arith.truncf %265 : vector<16x128xf32> to vector<16x128xbf16>
    %c0_76 = arith.constant 0 : index
    %c0_77 = arith.constant 0 : index
    %276 = vector.load %arg3[%c0_76, %c0_77] : memref<128x512xbf16, #tpu.memory_space<vmem>>, vector<128x512xbf16>
    %cst_78 = arith.constant dense<0.000000e+00> : vector<16x512xf32>
    %277 = tpu.matmul %275, %276, %cst_78 {dimension_numbers = #tpu.dot_dimension_numbers<[1], [0], [0], [1], [0, 0, 1, 1], [], []>} : vector<16x128xbf16>, vector<128x512xbf16>, vector<16x512xf32> -> vector<16x512xf32>
    %278 = arith.addf %274, %277 : vector<16x512xf32>
    %279 = vector.extract_strided_slice %278 {offsets = [0, 0], sizes = [16, 128], strides = [1, 1]} : vector<16x512xf32> to vector<16x128xf32>
    %280 = arith.negf %279 : vector<16x128xf32>
    %281 = math.exp %280 : vector<16x128xf32>
    %cst_79 = arith.constant 1.000000e+00 : f32
    %282 = vector.broadcast %cst_79 : f32 to vector<16x128xf32>
    %283 = arith.addf %282, %281 : vector<16x128xf32>
    %284 = arith.divf %282, %283 : vector<16x128xf32>
    %285 = vector.extract_strided_slice %278 {offsets = [0, 128], sizes = [16, 128], strides = [1, 1]} : vector<16x512xf32> to vector<16x128xf32>
    %286 = arith.negf %285 : vector<16x128xf32>
    %287 = math.exp %286 : vector<16x128xf32>
    %cst_80 = arith.constant 1.000000e+00 : f32
    %288 = vector.broadcast %cst_80 : f32 to vector<16x128xf32>
    %289 = arith.addf %288, %287 : vector<16x128xf32>
    %290 = arith.divf %288, %289 : vector<16x128xf32>
    %291 = vector.extract_strided_slice %278 {offsets = [0, 256], sizes = [16, 128], strides = [1, 1]} : vector<16x512xf32> to vector<16x128xf32>
    %292 = math.tanh %291 : vector<16x128xf32>
    %293 = vector.extract_strided_slice %278 {offsets = [0, 384], sizes = [16, 128], strides = [1, 1]} : vector<16x512xf32> to vector<16x128xf32>
    %294 = arith.negf %293 : vector<16x128xf32>
    %295 = math.exp %294 : vector<16x128xf32>
    %cst_81 = arith.constant 1.000000e+00 : f32
    %296 = vector.broadcast %cst_81 : f32 to vector<16x128xf32>
    %297 = arith.addf %296, %295 : vector<16x128xf32>
    %298 = arith.divf %296, %297 : vector<16x128xf32>
    %299 = arith.mulf %290, %263 : vector<16x128xf32>
    %300 = arith.mulf %284, %292 : vector<16x128xf32>
    %301 = arith.addf %299, %300 : vector<16x128xf32>
    %302 = math.tanh %301 : vector<16x128xf32>
    %303 = arith.mulf %298, %302 : vector<16x128xf32>
    %304 = arith.truncf %303 : vector<16x128xf32> to vector<16x128xbf16>
    %305 = arith.index_cast %c7_i32 : i32 to index
    %c0_82 = arith.constant 0 : index
    %c0_83 = arith.constant 0 : index
    %306 = vector.load %arg4[%305, %c0_82, %c0_83] : memref<8x16x128xbf16, #tpu.memory_space<vmem>>, vector<1x16x128xbf16>
    %307 = vector.shape_cast %306 : vector<1x16x128xbf16> to vector<16x128xbf16>
    %308 = vector.shape_cast %304 : vector<16x128xbf16> to vector<1x16x128xbf16>
    tpu.vector_store %arg4[%305, %c0_82, %c0_83], %308 {strides = array<i32>} : memref<8x16x128xbf16, #tpu.memory_space<vmem>>, vector<1x16x128xbf16>,
    %c8_i32 = arith.constant 8 : i32
    %c0_84 = arith.constant 0 : index
    %c0_85 = arith.constant 0 : index
    %309 = vector.load %arg5[%c0_84, %c0_85] : memref<16x128xf32, #tpu.memory_space<vmem>>, vector<16x128xf32>
    tpu.vector_store %arg5[%c0_84, %c0_85], %303 {strides = array<i32>} : memref<16x128xf32, #tpu.memory_space<vmem>>, vector<16x128xf32>,
    %c0_86 = arith.constant 0 : index
    %c0_87 = arith.constant 0 : index
    %310 = vector.load %arg6[%c0_86, %c0_87] : memref<16x128xf32, #tpu.memory_space<vmem>>, vector<16x128xf32>
    tpu.vector_store %arg6[%c0_86, %c0_87], %301 {strides = array<i32>} : memref<16x128xf32, #tpu.memory_space<vmem>>, vector<16x128xf32>,
    return
  }
  func.func @transform_0(%arg0: i32, %arg1: i32) -> (i32, i32, i32) {
    %c0_i32 = arith.constant 0 : i32
    %c0_i32_0 = arith.constant 0 : i32
    return %arg1, %arg0, %c0_i32 : i32, i32, i32
  }
  func.func @transform_1(%arg0: i32, %arg1: i32) -> (i32, i32) {
    %c0_i32 = arith.constant 0 : i32
    %c0_i32_0 = arith.constant 0 : i32
    %c0_i32_1 = arith.constant 0 : i32
    return %c0_i32, %c0_i32_0 : i32, i32
  }
  func.func @transform_2(%arg0: i32, %arg1: i32) -> (i32, i32, i32) {
    %c0_i32 = arith.constant 0 : i32
    %c0_i32_0 = arith.constant 0 : i32
    return %arg1, %arg0, %c0_i32 : i32, i32, i32
  }
}

module attributes {stable_mosaic.version = 11 : i64} {
  func.func @proj_logits_kernel(%arg0: i32, %arg1: i32, %arg2: memref<128x128xbf16, #tpu.memory_space<vmem>>, %arg3: memref<128x128xbf16, #tpu.memory_space<vmem>>, %arg4: memref<1x128xf32, #tpu.memory_space<vmem>>, %arg5: memref<128x128xf32, #tpu.memory_space<vmem>>, %arg6: memref<128x1xf32, #tpu.memory_space<vmem>>, %arg7: memref<128x1xf32, #tpu.memory_space<vmem>>) attributes {dimension_semantics = [#tpu.dimension_semantics<parallel>, #tpu.dimension_semantics<arbitrary>], iteration_bounds = array<i64: 1, 1>, scalar_prefetch = 0 : i64, scratch_operands = 0 : i64, tpu.core_type = #tpu.core_type<tc>, window_params = [{transform_indices = @transform_0, window_bounds = array<i64: 128, 128>}, {transform_indices = @transform_1, window_bounds = array<i64: 128, 128>}, {transform_indices = @transform_2, window_bounds = array<i64: 1, 128>}, {transform_indices = @transform_3, window_bounds = array<i64: 128, 128>}, {transform_indices = @transform_4, window_bounds = array<i64: 128, 1>}, {transform_indices = @transform_5, window_bounds = array<i64: 128, 1>}]} {
    %c0_i32 = arith.constant 0 : i32
    %0 = arith.cmpi eq, %arg1, %c0_i32 : i32
    %1 = arith.extui %0 : i1 to i32
    %c0_i32_0 = arith.constant 0 : i32
    %2 = arith.cmpi ne, %1, %c0_i32_0 : i32
    scf.if %2 {
      %cst_18 = arith.constant 0xFF800000 : f32
      %26 = vector.broadcast %cst_18 : f32 to vector<128x1xf32>
      %c0_19 = arith.constant 0 : index
      %c0_20 = arith.constant 0 : index
      %27 = vector.load %arg6[%c0_19, %c0_20] : memref<128x1xf32, #tpu.memory_space<vmem>>, vector<128x1xf32>
      tpu.vector_store %arg6[%c0_19, %c0_20], %26 {strides = array<i32>} : memref<128x1xf32, #tpu.memory_space<vmem>>, vector<128x1xf32>,
      %cst_21 = arith.constant 0.000000e+00 : f32
      %28 = vector.broadcast %cst_21 : f32 to vector<128x1xf32>
      %c0_22 = arith.constant 0 : index
      %c0_23 = arith.constant 0 : index
      %29 = vector.load %arg7[%c0_22, %c0_23] : memref<128x1xf32, #tpu.memory_space<vmem>>, vector<128x1xf32>
      tpu.vector_store %arg7[%c0_22, %c0_23], %28 {strides = array<i32>} : memref<128x1xf32, #tpu.memory_space<vmem>>, vector<128x1xf32>,
    } else {
    }
    %c0 = arith.constant 0 : index
    %c0_1 = arith.constant 0 : index
    %3 = vector.load %arg2[%c0, %c0_1] : memref<128x128xbf16, #tpu.memory_space<vmem>>, vector<128x128xbf16>
    %c0_2 = arith.constant 0 : index
    %c0_3 = arith.constant 0 : index
    %4 = vector.load %arg3[%c0_2, %c0_3] : memref<128x128xbf16, #tpu.memory_space<vmem>>, vector<128x128xbf16>
    %cst = arith.constant dense<0.000000e+00> : vector<128x128xf32>
    %5 = tpu.matmul %3, %4, %cst {dimension_numbers = #tpu.dot_dimension_numbers<[1], [0], [0], [1], [0, 0, 1, 1], [], []>} : vector<128x128xbf16>, vector<128x128xbf16>, vector<128x128xf32> -> vector<128x128xf32>
    %c0_4 = arith.constant 0 : index
    %c0_5 = arith.constant 0 : index
    %6 = vector.load %arg4[%c0_4, %c0_5] : memref<1x128xf32, #tpu.memory_space<vmem>>, vector<1x128xf32>
    %7 = vector.broadcast %6 : vector<1x128xf32> to vector<128x128xf32>
    %8 = arith.addf %5, %7 : vector<128x128xf32>
    %c0_6 = arith.constant 0 : index
    %c0_7 = arith.constant 0 : index
    %9 = vector.load %arg5[%c0_6, %c0_7] : memref<128x128xf32, #tpu.memory_space<vmem>>, vector<128x128xf32>
    tpu.vector_store %arg5[%c0_6, %c0_7], %8 {strides = array<i32>} : memref<128x128xf32, #tpu.memory_space<vmem>>, vector<128x128xf32>,
    %c0_8 = arith.constant 0 : index
    %c0_9 = arith.constant 0 : index
    %10 = vector.load %arg6[%c0_8, %c0_9] : memref<128x1xf32, #tpu.memory_space<vmem>>, vector<128x1xf32>
    %cst_10 = arith.constant dense<0xFF800000> : vector<128xf32>
    %11 = vector.multi_reduction <maximumf>, %8, %cst_10 [1] : vector<128x128xf32> to vector<128xf32>
    %12 = vector.shape_cast %11 : vector<128xf32> to vector<128x1xf32>
    %13 = arith.maximumf %10, %12 : vector<128x1xf32>
    %c0_11 = arith.constant 0 : index
    %c0_12 = arith.constant 0 : index
    %14 = vector.load %arg7[%c0_11, %c0_12] : memref<128x1xf32, #tpu.memory_space<vmem>>, vector<128x1xf32>
    %15 = arith.subf %10, %13 : vector<128x1xf32>
    %16 = math.exp %15 : vector<128x1xf32>
    %17 = arith.mulf %14, %16 : vector<128x1xf32>
    %18 = vector.broadcast %13 : vector<128x1xf32> to vector<128x128xf32>
    %19 = arith.subf %8, %18 : vector<128x128xf32>
    %20 = math.exp %19 : vector<128x128xf32>
    %cst_13 = arith.constant dense<0.000000e+00> : vector<128xf32>
    %21 = vector.multi_reduction <add>, %20, %cst_13 [1] : vector<128x128xf32> to vector<128xf32>
    %22 = vector.shape_cast %21 : vector<128xf32> to vector<128x1xf32>
    %23 = arith.addf %17, %22 : vector<128x1xf32>
    %c0_14 = arith.constant 0 : index
    %c0_15 = arith.constant 0 : index
    %24 = vector.load %arg7[%c0_14, %c0_15] : memref<128x1xf32, #tpu.memory_space<vmem>>, vector<128x1xf32>
    tpu.vector_store %arg7[%c0_14, %c0_15], %23 {strides = array<i32>} : memref<128x1xf32, #tpu.memory_space<vmem>>, vector<128x1xf32>,
    %c0_16 = arith.constant 0 : index
    %c0_17 = arith.constant 0 : index
    %25 = vector.load %arg6[%c0_16, %c0_17] : memref<128x1xf32, #tpu.memory_space<vmem>>, vector<128x1xf32>
    tpu.vector_store %arg6[%c0_16, %c0_17], %13 {strides = array<i32>} : memref<128x1xf32, #tpu.memory_space<vmem>>, vector<128x1xf32>,
    return
  }
  func.func @transform_0(%arg0: i32, %arg1: i32) -> (i32, i32) {
    %c0_i32 = arith.constant 0 : i32
    %c0_i32_0 = arith.constant 0 : i32
    return %arg0, %c0_i32 : i32, i32
  }
  func.func @transform_1(%arg0: i32, %arg1: i32) -> (i32, i32) {
    %c0_i32 = arith.constant 0 : i32
    %c0_i32_0 = arith.constant 0 : i32
    return %c0_i32, %arg1 : i32, i32
  }
  func.func @transform_2(%arg0: i32, %arg1: i32) -> (i32, i32) {
    %c0_i32 = arith.constant 0 : i32
    %c0_i32_0 = arith.constant 0 : i32
    return %c0_i32, %arg1 : i32, i32
  }
  func.func @transform_3(%arg0: i32, %arg1: i32) -> (i32, i32) {
    %c0_i32 = arith.constant 0 : i32
    return %arg0, %arg1 : i32, i32
  }
  func.func @transform_4(%arg0: i32, %arg1: i32) -> (i32, i32) {
    %c0_i32 = arith.constant 0 : i32
    %c0_i32_0 = arith.constant 0 : i32
    return %arg0, %c0_i32 : i32, i32
  }
  func.func @transform_5(%arg0: i32, %arg1: i32) -> (i32, i32) {
    %c0_i32 = arith.constant 0 : i32
    %c0_i32_0 = arith.constant 0 : i32
    return %arg0, %c0_i32 : i32, i32
  }
}

module attributes {stable_mosaic.version = 11 : i64} {
  func.func @softmax_norm_kernel(%arg0: i32, %arg1: i32, %arg2: memref<128x128xf32, #tpu.memory_space<vmem>>, %arg3: memref<128x1xf32, #tpu.memory_space<vmem>>, %arg4: memref<128x1xf32, #tpu.memory_space<vmem>>, %arg5: memref<128x128xf32, #tpu.memory_space<vmem>>) attributes {dimension_semantics = [#tpu.dimension_semantics<parallel>, #tpu.dimension_semantics<parallel>], iteration_bounds = array<i64: 1, 1>, scalar_prefetch = 0 : i64, scratch_operands = 0 : i64, tpu.core_type = #tpu.core_type<tc>, window_params = [{transform_indices = @transform_0, window_bounds = array<i64: 128, 128>}, {transform_indices = @transform_1, window_bounds = array<i64: 128, 1>}, {transform_indices = @transform_2, window_bounds = array<i64: 128, 1>}, {transform_indices = @transform_3, window_bounds = array<i64: 128, 128>}]} {
    %c0 = arith.constant 0 : index
    %c0_0 = arith.constant 0 : index
    %0 = vector.load %arg2[%c0, %c0_0] : memref<128x128xf32, #tpu.memory_space<vmem>>, vector<128x128xf32>
    %c0_1 = arith.constant 0 : index
    %c0_2 = arith.constant 0 : index
    %1 = vector.load %arg3[%c0_1, %c0_2] : memref<128x1xf32, #tpu.memory_space<vmem>>, vector<128x1xf32>
    %2 = vector.broadcast %1 : vector<128x1xf32> to vector<128x128xf32>
    %3 = arith.subf %0, %2 : vector<128x128xf32>
    %4 = math.exp %3 : vector<128x128xf32>
    %c0_3 = arith.constant 0 : index
    %c0_4 = arith.constant 0 : index
    %5 = vector.load %arg4[%c0_3, %c0_4] : memref<128x1xf32, #tpu.memory_space<vmem>>, vector<128x1xf32>
    %6 = tpu.reciprocal %5 {approx = true} : vector<128x1xf32> -> vector<128x1xf32>
    %7 = vector.broadcast %6 : vector<128x1xf32> to vector<128x128xf32>
    %8 = arith.mulf %4, %7 : vector<128x128xf32>
    %c0_5 = arith.constant 0 : index
    %c0_6 = arith.constant 0 : index
    %9 = vector.load %arg5[%c0_5, %c0_6] : memref<128x128xf32, #tpu.memory_space<vmem>>, vector<128x128xf32>
    tpu.vector_store %arg5[%c0_5, %c0_6], %8 {strides = array<i32>} : memref<128x128xf32, #tpu.memory_space<vmem>>, vector<128x128xf32>,
    return
  }
  func.func @transform_0(%arg0: i32, %arg1: i32) -> (i32, i32) {
    %c0_i32 = arith.constant 0 : i32
    return %arg0, %arg1 : i32, i32
  }
  func.func @transform_1(%arg0: i32, %arg1: i32) -> (i32, i32) {
    %c0_i32 = arith.constant 0 : i32
    %c0_i32_0 = arith.constant 0 : i32
    return %arg0, %c0_i32 : i32, i32
  }
  func.func @transform_2(%arg0: i32, %arg1: i32) -> (i32, i32) {
    %c0_i32 = arith.constant 0 : i32
    %c0_i32_0 = arith.constant 0 : i32
    return %arg0, %c0_i32 : i32, i32
  }
  func.func @transform_3(%arg0: i32, %arg1: i32) -> (i32, i32) {
    %c0_i32 = arith.constant 0 : i32
    return %arg0, %arg1 : i32, i32
  }
}

</mosaic_0001>

<llo_original>
// kernel: lstm_decoder_forward.11
$region0: #{lstm_decoder_forward.11}
  #allocation0 [shape = 'u32[]', space=smem, size = 0x4, offset = 0x4, fixed_abs, tag = 'smem constant byte address 0x4 - core index']
  #allocation1 [shape = 'u32[144,128]{1,0:T(1,128)}', space=vmem, size = 0x12000, scoped, tag = 'internal scratch']
  %s0 = inlined_call_operand.vmem [shape: f32[128,128], index: 0, kind: input, shape index: {}]
  %s1 = inlined_call_operand.vmem [shape: f32[128,1], index: 1, kind: input, shape index: {}]
  %s2 = inlined_call_operand.vmem [shape: f32[128,1], index: 2, kind: input, shape index: {}]
  %s3 = inlined_call_operand.vmem [shape: f32[128,128], index: 3, kind: output, shape index: {}]
  %s4 = sld [smem:[#allocation0]]
  $region22: #{lstm_decoder_forward.11} parent=0
    _
  %s6 = ssub.s32 1, %s4
  %s7 = scalar_select 0, %s6, %s4
  // Predicated region
  $region2: #{lstm_decoder_forward.11} parent=0 // pred_check
    _
  $region3: #{lstm_decoder_forward.11} parent=0 // pred_check_branch
    %9 = sbr.rel (0) target = $region5
  $region4: #{lstm_decoder_forward.11} parent=0 // pred_region
    _
  $region5: #{lstm_decoder_forward.11} parent=0 // pred_fallthru
    _
  // Predicated region
  $region6: #{lstm_decoder_forward.11} parent=0 // pred_check
    _
  $region7: #{lstm_decoder_forward.11} parent=0 // pred_check_branch
    %11 = sbr.rel (0) target = $region9
  $region8: #{lstm_decoder_forward.11} parent=0 // pred_region
    _
  $region9: #{lstm_decoder_forward.11} parent=0 // pred_fallthru
    _
  // Predicated region
  $region10: #{lstm_decoder_forward.11} parent=0 // pred_check
    _
  $region11: #{lstm_decoder_forward.11} parent=0 // pred_check_branch
    %13 = sbr.rel (0) target = $region13
  $region12: #{lstm_decoder_forward.11} parent=0 // pred_region
    _
  $region13: #{lstm_decoder_forward.11} parent=0 // pred_fallthru
    _
  %v14 = vld [vmem:[%s0] sm:$0xff]
  %v15 = vld [vmem:[%s0 + $0x8] sm:$0xff]
  %v16 = vld [vmem:[%s0 + $0x10] sm:$0xff]
  %v17 = vld [vmem:[%s0 + $0x18] sm:$0xff]
  %v18 = vld [vmem:[%s0 + $0x20] sm:$0xff]
  %v19 = vld [vmem:[%s0 + $0x28] sm:$0xff]
  %v20 = vld [vmem:[%s0 + $0x30] sm:$0xff]
  %v21 = vld [vmem:[%s0 + $0x38] sm:$0xff]
  %v22 = vld [vmem:[%s0 + $0x40] sm:$0xff]
  %v23 = vld [vmem:[%s0 + $0x48] sm:$0xff]
  %v24 = vld [vmem:[%s0 + $0x50] sm:$0xff]
  %v25 = vld [vmem:[%s0 + $0x58] sm:$0xff]
  %v26 = vld [vmem:[%s0 + $0x60] sm:$0xff]
  %v27 = vld [vmem:[%s0 + $0x68] sm:$0xff]
  %v28 = vld [vmem:[%s0 + $0x70] sm:$0xff]
  %v29 = vld [vmem:[%s0 + $0x78] sm:$0xff]
  %v30 = vld [vmem:[%s1] sm:$0xff]
  %v31 = vld [vmem:[%s1 + $0x8] sm:$0xff]
  %v32 = vld [vmem:[%s1 + $0x10] sm:$0xff]
  %v33 = vld [vmem:[%s1 + $0x18] sm:$0xff]
  %v34 = vld [vmem:[%s1 + $0x20] sm:$0xff]
  %v35 = vld [vmem:[%s1 + $0x28] sm:$0xff]
  %v36 = vld [vmem:[%s1 + $0x30] sm:$0xff]
  %v37 = vld [vmem:[%s1 + $0x38] sm:$0xff]
  %v38 = vld [vmem:[%s1 + $0x40] sm:$0xff]
  %v39 = vld [vmem:[%s1 + $0x48] sm:$0xff]
  %v40 = vld [vmem:[%s1 + $0x50] sm:$0xff]
  %v41 = vld [vmem:[%s1 + $0x58] sm:$0xff]
  %v42 = vld [vmem:[%s1 + $0x60] sm:$0xff]
  %v43 = vld [vmem:[%s1 + $0x68] sm:$0xff]
  %v44 = vld [vmem:[%s1 + $0x70] sm:$0xff]
  %v45 = vld [vmem:[%s1 + $0x78] sm:$0xff]
  %47 = vset.pattern.permute.xlu0 0
  %48 = vperm.xlu0 %47, %v30
  %v49 = vpop.permute.xlu0 %48
  %52 = vset.pattern.permute.xlu0 0
  %53 = vperm.xlu0 %52, %v31
  %v54 = vpop.permute.xlu0 %53
  %57 = vset.pattern.permute.xlu0 0
  %58 = vperm.xlu0 %57, %v32
  %v59 = vpop.permute.xlu0 %58
  %62 = vset.pattern.permute.xlu0 0
  %63 = vperm.xlu0 %62, %v33
  %v64 = vpop.permute.xlu0 %63
  %67 = vset.pattern.permute.xlu0 0
  %68 = vperm.xlu0 %67, %v34
  %v69 = vpop.permute.xlu0 %68
  %72 = vset.pattern.permute.xlu0 0
  %73 = vperm.xlu0 %72, %v35
  %v74 = vpop.permute.xlu0 %73
  %77 = vset.pattern.permute.xlu0 0
  %78 = vperm.xlu0 %77, %v36
  %v79 = vpop.permute.xlu0 %78
  %82 = vset.pattern.permute.xlu0 0
  %83 = vperm.xlu0 %82, %v37
  %v84 = vpop.permute.xlu0 %83
  %87 = vset.pattern.permute.xlu0 0
  %88 = vperm.xlu0 %87, %v38
  %v89 = vpop.permute.xlu0 %88
  %92 = vset.pattern.permute.xlu0 0
  %93 = vperm.xlu0 %92, %v39
  %v94 = vpop.permute.xlu0 %93
  %97 = vset.pattern.permute.xlu0 0
  %98 = vperm.xlu0 %97, %v40
  %v99 = vpop.permute.xlu0 %98
  %102 = vset.pattern.permute.xlu0 0
  %103 = vperm.xlu0 %102, %v41
  %v104 = vpop.permute.xlu0 %103
  %107 = vset.pattern.permute.xlu0 0
  %108 = vperm.xlu0 %107, %v42
  %v109 = vpop.permute.xlu0 %108
  %112 = vset.pattern.permute.xlu0 0
  %113 = vperm.xlu0 %112, %v43
  %v114 = vpop.permute.xlu0 %113
  %117 = vset.pattern.permute.xlu0 0
  %118 = vperm.xlu0 %117, %v44
  %v119 = vpop.permute.xlu0 %118
  %122 = vset.pattern.permute.xlu0 0
  %123 = vperm.xlu0 %122, %v45
  %v124 = vpop.permute.xlu0 %123
  %v126 = vsub.f32 %v14, %v49
  %v127 = vsub.f32 %v15, %v54
  %v128 = vsub.f32 %v16, %v59
  %v129 = vsub.f32 %v17, %v64
  %v130 = vsub.f32 %v18, %v69
  %v131 = vsub.f32 %v19, %v74
  %v132 = vsub.f32 %v20, %v79
  %v133 = vsub.f32 %v21, %v84
  %v134 = vsub.f32 %v22, %v89
  %v135 = vsub.f32 %v23, %v94
  %v136 = vsub.f32 %v24, %v99
  %v137 = vsub.f32 %v25, %v104
  %v138 = vsub.f32 %v26, %v109
  %v139 = vsub.f32 %v27, %v114
  %v140 = vsub.f32 %v28, %v119
  %v141 = vsub.f32 %v29, %v124
  %v142 = vmul.f32 %v126, 1.442695
  %v143 = vpow.pop %v142
  %v144 = vmul.f32 %v127, 1.442695
  %v145 = vpow.pop %v144
  %v146 = vmul.f32 %v128, 1.442695
  %v147 = vpow.pop %v146
  %v148 = vmul.f32 %v129, 1.442695
  %v149 = vpow.pop %v148
  %v150 = vmul.f32 %v130, 1.442695
  %v151 = vpow.pop %v150
  %v152 = vmul.f32 %v131, 1.442695
  %v153 = vpow.pop %v152
  %v154 = vmul.f32 %v132, 1.442695
  %v155 = vpow.pop %v154
  %v156 = vmul.f32 %v133, 1.442695
  %v157 = vpow.pop %v156
  %v158 = vmul.f32 %v134, 1.442695
  %v159 = vpow.pop %v158
  %v160 = vmul.f32 %v135, 1.442695
  %v161 = vpow.pop %v160
  %v162 = vmul.f32 %v136, 1.442695
  %v163 = vpow.pop %v162
  %v164 = vmul.f32 %v137, 1.442695
  %v165 = vpow.pop %v164
  %v166 = vmul.f32 %v138, 1.442695
  %v167 = vpow.pop %v166
  %v168 = vmul.f32 %v139, 1.442695
  %v169 = vpow.pop %v168
  %v170 = vmul.f32 %v140, 1.442695
  %v171 = vpow.pop %v170
  %v172 = vmul.f32 %v141, 1.442695
  %v173 = vpow.pop %v172
  %v174 = vld [vmem:[%s2] sm:$0xff]
  %v175 = vld [vmem:[%s2 + $0x8] sm:$0xff]
  %v176 = vld [vmem:[%s2 + $0x10] sm:$0xff]
  %v177 = vld [vmem:[%s2 + $0x18] sm:$0xff]
  %v178 = vld [vmem:[%s2 + $0x20] sm:$0xff]
  %v179 = vld [vmem:[%s2 + $0x28] sm:$0xff]
  %v180 = vld [vmem:[%s2 + $0x30] sm:$0xff]
  %v181 = vld [vmem:[%s2 + $0x38] sm:$0xff]
  %v182 = vld [vmem:[%s2 + $0x40] sm:$0xff]
  %v183 = vld [vmem:[%s2 + $0x48] sm:$0xff]
  %v184 = vld [vmem:[%s2 + $0x50] sm:$0xff]
  %v185 = vld [vmem:[%s2 + $0x58] sm:$0xff]
  %v186 = vld [vmem:[%s2 + $0x60] sm:$0xff]
  %v187 = vld [vmem:[%s2 + $0x68] sm:$0xff]
  %v188 = vld [vmem:[%s2 + $0x70] sm:$0xff]
  %v189 = vld [vmem:[%s2 + $0x78] sm:$0xff]
  %v190 = vrcp.pop %v174
  %v191 = vrcp.pop %v175
  %v192 = vrcp.pop %v176
  %v193 = vrcp.pop %v177
  %v194 = vrcp.pop %v178
  %v195 = vrcp.pop %v179
  %v196 = vrcp.pop %v180
  %v197 = vrcp.pop %v181
  %v198 = vrcp.pop %v182
  %v199 = vrcp.pop %v183
  %v200 = vrcp.pop %v184
  %v201 = vrcp.pop %v185
  %v202 = vrcp.pop %v186
  %v203 = vrcp.pop %v187
  %v204 = vrcp.pop %v188
  %v205 = vrcp.pop %v189
  %207 = vset.pattern.permute.xlu0 0
  %208 = vperm.xlu0 %207, %v190
  %v209 = vpop.permute.xlu0 %208
  %212 = vset.pattern.permute.xlu0 0
  %213 = vperm.xlu0 %212, %v191
  %v214 = vpop.permute.xlu0 %213
  %217 = vset.pattern.permute.xlu0 0
  %218 = vperm.xlu0 %217, %v192
  %v219 = vpop.permute.xlu0 %218
  %222 = vset.pattern.permute.xlu0 0
  %223 = vperm.xlu0 %222, %v193
  %v224 = vpop.permute.xlu0 %223
  %227 = vset.pattern.permute.xlu0 0
  %228 = vperm.xlu0 %227, %v194
  %v229 = vpop.permute.xlu0 %228
  %232 = vset.pattern.permute.xlu0 0
  %233 = vperm.xlu0 %232, %v195
  %v234 = vpop.permute.xlu0 %233
  %237 = vset.pattern.permute.xlu0 0
  %238 = vperm.xlu0 %237, %v196
  %v239 = vpop.permute.xlu0 %238
  %242 = vset.pattern.permute.xlu0 0
  %243 = vperm.xlu0 %242, %v197
  %v244 = vpop.permute.xlu0 %243
  %247 = vset.pattern.permute.xlu0 0
  %248 = vperm.xlu0 %247, %v198
  %v249 = vpop.permute.xlu0 %248
  %252 = vset.pattern.permute.xlu0 0
  %253 = vperm.xlu0 %252, %v199
  %v254 = vpop.permute.xlu0 %253
  %257 = vset.pattern.permute.xlu0 0
  %258 = vperm.xlu0 %257, %v200
  %v259 = vpop.permute.xlu0 %258
  %262 = vset.pattern.permute.xlu0 0
  %263 = vperm.xlu0 %262, %v201
  %v264 = vpop.permute.xlu0 %263
  %267 = vset.pattern.permute.xlu0 0
  %268 = vperm.xlu0 %267, %v202
  %v269 = vpop.permute.xlu0 %268
  %272 = vset.pattern.permute.xlu0 0
  %273 = vperm.xlu0 %272, %v203
  %v274 = vpop.permute.xlu0 %273
  %277 = vset.pattern.permute.xlu0 0
  %278 = vperm.xlu0 %277, %v204
  %v279 = vpop.permute.xlu0 %278
  %282 = vset.pattern.permute.xlu0 0
  %283 = vperm.xlu0 %282, %v205
  %v284 = vpop.permute.xlu0 %283
  %v286 = vmul.f32 %v143, %v209
  %v287 = vmul.f32 %v145, %v214
  %v288 = vmul.f32 %v147, %v219
  %v289 = vmul.f32 %v149, %v224
  %v290 = vmul.f32 %v151, %v229
  %v291 = vmul.f32 %v153, %v234
  %v292 = vmul.f32 %v155, %v239
  %v293 = vmul.f32 %v157, %v244
  %v294 = vmul.f32 %v159, %v249
  %v295 = vmul.f32 %v161, %v254
  %v296 = vmul.f32 %v163, %v259
  %v297 = vmul.f32 %v165, %v264
  %v298 = vmul.f32 %v167, %v269
  %v299 = vmul.f32 %v169, %v274
  %v300 = vmul.f32 %v171, %v279
  %v301 = vmul.f32 %v173, %v284
  %302 = vst [vmem:[%s3] sm:$0xff] %v286
  %303 = vst [vmem:[%s3 + $0x8] sm:$0xff] %v287
  %304 = vst [vmem:[%s3 + $0x10] sm:$0xff] %v288
  %305 = vst [vmem:[%s3 + $0x18] sm:$0xff] %v289
  %306 = vst [vmem:[%s3 + $0x20] sm:$0xff] %v290
  %307 = vst [vmem:[%s3 + $0x28] sm:$0xff] %v291
  %308 = vst [vmem:[%s3 + $0x30] sm:$0xff] %v292
  %309 = vst [vmem:[%s3 + $0x38] sm:$0xff] %v293
  %310 = vst [vmem:[%s3 + $0x40] sm:$0xff] %v294
  %311 = vst [vmem:[%s3 + $0x48] sm:$0xff] %v295
  %312 = vst [vmem:[%s3 + $0x50] sm:$0xff] %v296
  %313 = vst [vmem:[%s3 + $0x58] sm:$0xff] %v297
  %314 = vst [vmem:[%s3 + $0x60] sm:$0xff] %v298
  %315 = vst [vmem:[%s3 + $0x68] sm:$0xff] %v299
  %316 = vst [vmem:[%s3 + $0x70] sm:$0xff] %v300
  %317 = vst [vmem:[%s3 + $0x78] sm:$0xff] %v301
  // Predicated region
  $region14: #{lstm_decoder_forward.11} parent=0 // pred_check
    _
  $region15: #{lstm_decoder_forward.11} parent=0 // pred_check_branch
    %319 = sbr.rel (0) target = $region17
  $region16: #{lstm_decoder_forward.11} parent=0 // pred_region
    _
  $region17: #{lstm_decoder_forward.11} parent=0 // pred_fallthru
    _
  // Predicated region
  $region18: #{lstm_decoder_forward.11} parent=0 // pred_check
    _
  $region19: #{lstm_decoder_forward.11} parent=0 // pred_check_branch
    %321 = sbr.rel (0) target = $region21
  $region20: #{lstm_decoder_forward.11} parent=0 // pred_region
    _
  $region21: #{lstm_decoder_forward.11} parent=0 // pred_fallthru
    _

// kernel: lstm_decoder_forward.10
$region0: #{lstm_decoder_forward.10}
  #allocation0 [shape = 'u32[]', space=smem, size = 0x4, offset = 0x4, fixed_abs, tag = 'smem constant byte address 0x4 - core index']
  #allocation1 [shape = 'u32[144,128]{1,0:T(1,128)}', space=vmem, size = 0x12000, scoped, tag = 'internal scratch']
  %s0 = inlined_call_operand.vmem [shape: bf16[128,128], index: 0, kind: input, shape index: {}]
  %s1 = inlined_call_operand.vmem [shape: bf16[128,128], index: 1, kind: input, shape index: {}]
  %s2 = inlined_call_operand.vmem [shape: f32[1,128], index: 2, kind: input, shape index: {}]
  %s3 = inlined_call_operand.vmem [shape: f32[128,128], index: 3, kind: output, shape index: {0}]
  %s4 = inlined_call_operand.vmem [shape: f32[128,1], index: 4, kind: output, shape index: {1}]
  %s5 = inlined_call_operand.vmem [shape: f32[128,1], index: 5, kind: output, shape index: {2}]
  %6 = xla_tuple %s3, %s4, %s5
  %s7 = sld [smem:[#allocation0]]
  $region42: #{lstm_decoder_forward.10} parent=0
    _
  %s9 = ssub.s32 1, %s7
  %s10 = scalar_select 0, %s9, %s7
  // Predicated region
  $region2: #{lstm_decoder_forward.10} parent=0 // pred_check
    _
  $region3: #{lstm_decoder_forward.10} parent=0 // pred_check_branch
    %12 = sbr.rel (0) target = $region5
  $region4: #{lstm_decoder_forward.10} parent=0 // pred_region
    _
  $region5: #{lstm_decoder_forward.10} parent=0 // pred_fallthru
    _
  // Predicated region
  $region6: #{lstm_decoder_forward.10} parent=0 // pred_check
    _
  $region7: #{lstm_decoder_forward.10} parent=0 // pred_check_branch
    %14 = sbr.rel (0) target = $region9
  $region8: #{lstm_decoder_forward.10} parent=0 // pred_region
    _
  $region9: #{lstm_decoder_forward.10} parent=0 // pred_fallthru
    _
  // Predicated region
  $region10: #{lstm_decoder_forward.10} parent=0 // pred_check
    _
  $region11: #{lstm_decoder_forward.10} parent=0 // pred_check_branch
    %16 = sbr.rel (0) target = $region13
  $region12: #{lstm_decoder_forward.10} parent=0 // pred_region
    _
  $region13: #{lstm_decoder_forward.10} parent=0 // pred_fallthru
    _
  %p18 = scmp.eq.s32.totalorder 0, 0
  // Predicated region
  $region14: #{lstm_decoder_forward.10} parent=0 // pred_check
    %p19 = pneg %p18
  $region15: #{lstm_decoder_forward.10} parent=0 // pred_check_branch
    %21 = sbr.rel (%p19) target = $region17
  $region16: #{lstm_decoder_forward.10} parent=0 // pred_region
    %vm22 = vcmask 7168
    %23 = vst.msk [vmem:[%s4] sm:$0xff] %vm22, -inf
    %24 = vst.msk [vmem:[%s4 + $0x8] sm:$0xff] %vm22, -inf
    %25 = vst.msk [vmem:[%s4 + $0x10] sm:$0xff] %vm22, -inf
    %26 = vst.msk [vmem:[%s4 + $0x18] sm:$0xff] %vm22, -inf
    %27 = vst.msk [vmem:[%s4 + $0x20] sm:$0xff] %vm22, -inf
    %28 = vst.msk [vmem:[%s4 + $0x28] sm:$0xff] %vm22, -inf
    %29 = vst.msk [vmem:[%s4 + $0x30] sm:$0xff] %vm22, -inf
    %30 = vst.msk [vmem:[%s4 + $0x38] sm:$0xff] %vm22, -inf
    %31 = vst.msk [vmem:[%s4 + $0x40] sm:$0xff] %vm22, -inf
    %32 = vst.msk [vmem:[%s4 + $0x48] sm:$0xff] %vm22, -inf
    %33 = vst.msk [vmem:[%s4 + $0x50] sm:$0xff] %vm22, -inf
    %34 = vst.msk [vmem:[%s4 + $0x58] sm:$0xff] %vm22, -inf
    %35 = vst.msk [vmem:[%s4 + $0x60] sm:$0xff] %vm22, -inf
    %36 = vst.msk [vmem:[%s4 + $0x68] sm:$0xff] %vm22, -inf
    %37 = vst.msk [vmem:[%s4 + $0x70] sm:$0xff] %vm22, -inf
    %38 = vst.msk [vmem:[%s4 + $0x78] sm:$0xff] %vm22, -inf
    %39 = vst.msk [vmem:[%s5] sm:$0xff] %vm22, 0.0
    %40 = vst.msk [vmem:[%s5 + $0x8] sm:$0xff] %vm22, 0.0
    %41 = vst.msk [vmem:[%s5 + $0x10] sm:$0xff] %vm22, 0.0
    %42 = vst.msk [vmem:[%s5 + $0x18] sm:$0xff] %vm22, 0.0
    %43 = vst.msk [vmem:[%s5 + $0x20] sm:$0xff] %vm22, 0.0
    %44 = vst.msk [vmem:[%s5 + $0x28] sm:$0xff] %vm22, 0.0
    %45 = vst.msk [vmem:[%s5 + $0x30] sm:$0xff] %vm22, 0.0
    %46 = vst.msk [vmem:[%s5 + $0x38] sm:$0xff] %vm22, 0.0
    %47 = vst.msk [vmem:[%s5 + $0x40] sm:$0xff] %vm22, 0.0
    %48 = vst.msk [vmem:[%s5 + $0x48] sm:$0xff] %vm22, 0.0
    %49 = vst.msk [vmem:[%s5 + $0x50] sm:$0xff] %vm22, 0.0
    %50 = vst.msk [vmem:[%s5 + $0x58] sm:$0xff] %vm22, 0.0
    %51 = vst.msk [vmem:[%s5 + $0x60] sm:$0xff] %vm22, 0.0
    %52 = vst.msk [vmem:[%s5 + $0x68] sm:$0xff] %vm22, 0.0
    %53 = vst.msk [vmem:[%s5 + $0x70] sm:$0xff] %vm22, 0.0
    %54 = vst.msk [vmem:[%s5 + $0x78] sm:$0xff] %vm22, 0.0
  $region17: #{lstm_decoder_forward.10} parent=0 // pred_fallthru
    _
  %v55 = vld [vmem:[%s0] sm:$0xf]
  %v56 = vld [vmem:[%s0 + $0x4] sm:$0xf]
  %v57 = vld [vmem:[%s0 + $0x8] sm:$0xf]
  %v58 = vld [vmem:[%s0 + $0xc] sm:$0xf]
  %v59 = vld [vmem:[%s0 + $0x10] sm:$0xf]
  %v60 = vld [vmem:[%s0 + $0x14] sm:$0xf]
  %v61 = vld [vmem:[%s0 + $0x18] sm:$0xf]
  %v62 = vld [vmem:[%s0 + $0x1c] sm:$0xf]
  %v63 = vld [vmem:[%s0 + $0x20] sm:$0xf]
  %v64 = vld [vmem:[%s0 + $0x24] sm:$0xf]
  %v65 = vld [vmem:[%s0 + $0x28] sm:$0xf]
  %v66 = vld [vmem:[%s0 + $0x2c] sm:$0xf]
  %v67 = vld [vmem:[%s0 + $0x30] sm:$0xf]
  %v68 = vld [vmem:[%s0 + $0x34] sm:$0xf]
  %v69 = vld [vmem:[%s0 + $0x38] sm:$0xf]
  %v70 = vld [vmem:[%s0 + $0x3c] sm:$0xf]
  %v71 = vld [vmem:[%s1] sm:$0xf]
  %v72 = vld [vmem:[%s1 + $0x4] sm:$0xf]
  %v73 = vld [vmem:[%s1 + $0x8] sm:$0xf]
  %v74 = vld [vmem:[%s1 + $0xc] sm:$0xf]
  %v75 = vld [vmem:[%s1 + $0x10] sm:$0xf]
  %v76 = vld [vmem:[%s1 + $0x14] sm:$0xf]
  %v77 = vld [vmem:[%s1 + $0x18] sm:$0xf]
  %v78 = vld [vmem:[%s1 + $0x1c] sm:$0xf]
  %v79 = vld [vmem:[%s1 + $0x20] sm:$0xf]
  %v80 = vld [vmem:[%s1 + $0x24] sm:$0xf]
  %v81 = vld [vmem:[%s1 + $0x28] sm:$0xf]
  %v82 = vld [vmem:[%s1 + $0x2c] sm:$0xf]
  %v83 = vld [vmem:[%s1 + $0x30] sm:$0xf]
  %v84 = vld [vmem:[%s1 + $0x34] sm:$0xf]
  %v85 = vld [vmem:[%s1 + $0x38] sm:$0xf]
  %v86 = vld [vmem:[%s1 + $0x3c] sm:$0xf]
  %v87 = vld [vmem:[%s2] sm:$0x1]
  %v89 = vlaneseq
  %v90 = vshrl.u32 %v89, 7
  %v91 = vsub.s32 0, %v90
  %v92 = vrot.slane %v87, %v91
  %v110 = vunpack.c.l.b16 %v55
  %v111 = vunpack.c.l.b16 %v56
  %v112 = vunpack.c.l.b16 %v57
  %v113 = vunpack.c.l.b16 %v58
  %v114 = vunpack.c.l.b16 %v59
  %v115 = vunpack.c.l.b16 %v60
  %v116 = vunpack.c.l.b16 %v61
  %v117 = vunpack.c.l.b16 %v62
  %v118 = vunpack.c.l.b16 %v63
  %v119 = vunpack.c.l.b16 %v64
  %v120 = vunpack.c.l.b16 %v65
  %v121 = vunpack.c.l.b16 %v66
  %v122 = vunpack.c.l.b16 %v67
  %v123 = vunpack.c.l.b16 %v68
  %v124 = vunpack.c.l.b16 %v69
  %v125 = vunpack.c.l.b16 %v70
  %v126 = vpack.c.b16 %v111, %v110
  %v127 = vpack.c.b16 %v113, %v112
  %v128 = vpack.c.b16 %v115, %v114
  %v129 = vpack.c.b16 %v117, %v116
  %v130 = vpack.c.b16 %v119, %v118
  %v131 = vpack.c.b16 %v121, %v120
  %v132 = vpack.c.b16 %v123, %v122
  %v133 = vpack.c.b16 %v125, %v124
  %v158 = vunpack.c.l.b16 %v71
  %v159 = vunpack.c.l.b16 %v72
  %v160 = vunpack.c.l.b16 %v73
  %v161 = vunpack.c.l.b16 %v74
  %v162 = vunpack.c.l.b16 %v75
  %v163 = vunpack.c.l.b16 %v76
  %v164 = vunpack.c.l.b16 %v77
  %v165 = vunpack.c.l.b16 %v78
  %v166 = vunpack.c.l.b16 %v79
  %v167 = vunpack.c.l.b16 %v80
  %v168 = vunpack.c.l.b16 %v81
  %v169 = vunpack.c.l.b16 %v82
  %v170 = vunpack.c.l.b16 %v83
  %v171 = vunpack.c.l.b16 %v84
  %v172 = vunpack.c.l.b16 %v85
  %v173 = vunpack.c.l.b16 %v86
  %v174 = vpack.c.b16 %v159, %v158
  %v175 = vpack.c.b16 %v161, %v160
  %v176 = vpack.c.b16 %v163, %v162
  %v177 = vpack.c.b16 %v165, %v164
  %v178 = vpack.c.b16 %v167, %v166
  %v179 = vpack.c.b16 %v169, %v168
  %v180 = vpack.c.b16 %v171, %v170
  %v181 = vpack.c.b16 %v173, %v172
  %190 = vmatprep.subr.bf16.mxu0 0
  %191 = vmatpush1.bf16.msra.mxu0 %v174
  %192 = vmatprep.subr.bf16.mxu0 0
  %193 = vmatpush1.bf16.msra.mxu0 %v175
  %194 = vmatprep.subr.bf16.mxu0 0
  %195 = vmatpush1.bf16.msra.mxu0 %v176
  %196 = vmatprep.subr.bf16.mxu0 0
  %197 = vmatpush1.bf16.msra.mxu0 %v177
  %198 = vmatprep.subr.bf16.mxu0 0
  %199 = vmatpush1.bf16.msra.mxu0 %v178
  %200 = vmatprep.subr.bf16.mxu0 0
  %201 = vmatpush1.bf16.msra.mxu0 %v179
  %202 = vmatprep.subr.bf16.mxu0 0
  %203 = vmatpush1.bf16.msra.mxu0 %v180
  %204 = vmatprep.subr.bf16.mxu0 0
  %205 = vmatpush1.bf16.msra.mxu0 %v181
  %206 = vmatprep.subr.bf16.mxu0 0
  %207 = vmatpush1.bf16.msra.mxu0 0
  %208 = vmatprep.subr.bf16.mxu0 0
  %209 = vmatpush1.bf16.msra.mxu0 0
  %210 = vmatprep.subr.bf16.mxu0 0
  %211 = vmatpush1.bf16.msra.mxu0 0
  %212 = vmatprep.subr.bf16.mxu0 0
  %213 = vmatpush1.bf16.msra.mxu0 0
  %214 = vmatprep.subr.bf16.mxu0 0
  %215 = vmatpush1.bf16.msra.mxu0 0
  %216 = vmatprep.subr.bf16.mxu0 0
  %217 = vmatpush1.bf16.msra.mxu0 0
  %218 = vmatprep.subr.bf16.mxu0 0
  %219 = vmatpush1.bf16.msra.mxu0 0
  %220 = vmatprep.subr.bf16.mxu0 0
  %221 = vmatpush1.bf16.msra.mxu0 0
  %222 = vmatprep.mubr.bf16.mxu0 0
  %223 = vmatmul.mubr.bf16.gmra.mrb[0].mxu0 %v126
  %v224 = vpop.f32.mrb[0].mxu0
  %v225 = vadd.f32 %v92, %v224
  %v226 = vpop.f32.mrb[0].mxu0
  %v227 = vpop.f32.mrb[0].mxu0
  %v228 = vadd.f32 %v92, %v227
  %v229 = vpop.f32.mrb[0].mxu0
  %230 = vmatprep.mubr.bf16.mxu0 0
  %231 = vmatmul.mubr.bf16.gmra.mrb[0].mxu0 %v127
  %v232 = vpop.f32.mrb[0].mxu0
  %v233 = vadd.f32 %v92, %v232
  %v234 = vpop.f32.mrb[0].mxu0
  %v235 = vpop.f32.mrb[0].mxu0
  %v236 = vadd.f32 %v92, %v235
  %v237 = vpop.f32.mrb[0].mxu0
  %238 = vmatprep.mubr.bf16.mxu0 0
  %239 = vmatmul.mubr.bf16.gmra.mrb[0].mxu0 %v128
  %v240 = vpop.f32.mrb[0].mxu0
  %v241 = vadd.f32 %v92, %v240
  %v242 = vpop.f32.mrb[0].mxu0
  %v243 = vpop.f32.mrb[0].mxu0
  %v244 = vadd.f32 %v92, %v243
  %v245 = vpop.f32.mrb[0].mxu0
  %246 = vmatprep.mubr.bf16.mxu0 0
  %247 = vmatmul.mubr.bf16.gmra.mrb[0].mxu0 %v129
  %v248 = vpop.f32.mrb[0].mxu0
  %v249 = vadd.f32 %v92, %v248
  %v250 = vpop.f32.mrb[0].mxu0
  %v251 = vpop.f32.mrb[0].mxu0
  %v252 = vadd.f32 %v92, %v251
  %v253 = vpop.f32.mrb[0].mxu0
  %254 = vmatprep.mubr.bf16.mxu0 0
  %255 = vmatmul.mubr.bf16.gmra.mrb[0].mxu0 %v130
  %v256 = vpop.f32.mrb[0].mxu0
  %v257 = vadd.f32 %v92, %v256
  %v258 = vpop.f32.mrb[0].mxu0
  %v259 = vpop.f32.mrb[0].mxu0
  %v260 = vadd.f32 %v92, %v259
  %v261 = vpop.f32.mrb[0].mxu0
  %262 = vmatprep.mubr.bf16.mxu0 0
  %263 = vmatmul.mubr.bf16.gmra.mrb[0].mxu0 %v131
  %v264 = vpop.f32.mrb[0].mxu0
  %v265 = vadd.f32 %v92, %v264
  %v266 = vpop.f32.mrb[0].mxu0
  %v267 = vpop.f32.mrb[0].mxu0
  %v268 = vadd.f32 %v92, %v267
  %v269 = vpop.f32.mrb[0].mxu0
  %270 = vmatprep.mubr.bf16.mxu0 0
  %271 = vmatmul.mubr.bf16.gmra.mrb[0].mxu0 %v132
  %v272 = vpop.f32.mrb[0].mxu0
  %v273 = vadd.f32 %v92, %v272
  %v274 = vpop.f32.mrb[0].mxu0
  %v275 = vpop.f32.mrb[0].mxu0
  %v276 = vadd.f32 %v92, %v275
  %v277 = vpop.f32.mrb[0].mxu0
  %278 = vmatprep.mubr.bf16.mxu0 0
  %279 = vmatmul.mubr.bf16.gmra.mrb[0].mxu0 %v133
  %v280 = vpop.f32.mrb[0].mxu0
  %v281 = vadd.f32 %v92, %v280
  %v282 = vpop.f32.mrb[0].mxu0
  %v283 = vpop.f32.mrb[0].mxu0
  %v284 = vadd.f32 %v92, %v283
  %v285 = vpop.f32.mrb[0].mxu0
  %286 = vdwg.mxu0
  %287 = vst [vmem:[%s3] sm:$0xff] %v225
  %288 = vst [vmem:[%s3 + $0x8] sm:$0xff] %v228
  %289 = vst [vmem:[%s3 + $0x10] sm:$0xff] %v233
  %290 = vst [vmem:[%s3 + $0x18] sm:$0xff] %v236
  %291 = vst [vmem:[%s3 + $0x20] sm:$0xff] %v241
  %292 = vst [vmem:[%s3 + $0x28] sm:$0xff] %v244
  %293 = vst [vmem:[%s3 + $0x30] sm:$0xff] %v249
  %294 = vst [vmem:[%s3 + $0x38] sm:$0xff] %v252
  %295 = vst [vmem:[%s3 + $0x40] sm:$0xff] %v257
  %296 = vst [vmem:[%s3 + $0x48] sm:$0xff] %v260
  %297 = vst [vmem:[%s3 + $0x50] sm:$0xff] %v265
  %298 = vst [vmem:[%s3 + $0x58] sm:$0xff] %v268
  %299 = vst [vmem:[%s3 + $0x60] sm:$0xff] %v273
  %300 = vst [vmem:[%s3 + $0x68] sm:$0xff] %v276
  %301 = vst [vmem:[%s3 + $0x70] sm:$0xff] %v281
  %302 = vst [vmem:[%s3 + $0x78] sm:$0xff] %v284
  %v303 = vld [vmem:[%s4] sm:$0xff]
  %v304 = vld [vmem:[%s4 + $0x8] sm:$0xff]
  %v305 = vld [vmem:[%s4 + $0x10] sm:$0xff]
  %v306 = vld [vmem:[%s4 + $0x18] sm:$0xff]
  %v307 = vld [vmem:[%s4 + $0x20] sm:$0xff]
  %v308 = vld [vmem:[%s4 + $0x28] sm:$0xff]
  %v309 = vld [vmem:[%s4 + $0x30] sm:$0xff]
  %v310 = vld [vmem:[%s4 + $0x38] sm:$0xff]
  %v311 = vld [vmem:[%s4 + $0x40] sm:$0xff]
  %v312 = vld [vmem:[%s4 + $0x48] sm:$0xff]
  %v313 = vld [vmem:[%s4 + $0x50] sm:$0xff]
  %v314 = vld [vmem:[%s4 + $0x58] sm:$0xff]
  %v315 = vld [vmem:[%s4 + $0x60] sm:$0xff]
  %v316 = vld [vmem:[%s4 + $0x68] sm:$0xff]
  %v317 = vld [vmem:[%s4 + $0x70] sm:$0xff]
  %v318 = vld [vmem:[%s4 + $0x78] sm:$0xff]
  %319 = vmax.xlane.f32.xlu0 %v225
  %v320 = vpop.xlane.xlu0 %319
  %321 = vmax.xlane.f32.xlu0 %v228
  %v322 = vpop.xlane.xlu0 %321
  %323 = vmax.xlane.f32.xlu0 %v233
  %v324 = vpop.xlane.xlu0 %323
  %325 = vmax.xlane.f32.xlu0 %v236
  %v326 = vpop.xlane.xlu0 %325
  %327 = vmax.xlane.f32.xlu0 %v241
  %v328 = vpop.xlane.xlu0 %327
  %329 = vmax.xlane.f32.xlu0 %v244
  %v330 = vpop.xlane.xlu0 %329
  %331 = vmax.xlane.f32.xlu0 %v249
  %v332 = vpop.xlane.xlu0 %331
  %333 = vmax.xlane.f32.xlu0 %v252
  %v334 = vpop.xlane.xlu0 %333
  %335 = vmax.xlane.f32.xlu0 %v257
  %v336 = vpop.xlane.xlu0 %335
  %337 = vmax.xlane.f32.xlu0 %v260
  %v338 = vpop.xlane.xlu0 %337
  %339 = vmax.xlane.f32.xlu0 %v265
  %v340 = vpop.xlane.xlu0 %339
  %341 = vmax.xlane.f32.xlu0 %v268
  %v342 = vpop.xlane.xlu0 %341
  %343 = vmax.xlane.f32.xlu0 %v273
  %v344 = vpop.xlane.xlu0 %343
  %345 = vmax.xlane.f32.xlu0 %v276
  %v346 = vpop.xlane.xlu0 %345
  %347 = vmax.xlane.f32.xlu0 %v281
  %v348 = vpop.xlane.xlu0 %347
  %349 = vmax.xlane.f32.xlu0 %v284
  %v350 = vpop.xlane.xlu0 %349
  %v351 = vmax.f32 %v303, %v320
  %v352 = vmax.f32 %v304, %v322
  %v353 = vmax.f32 %v305, %v324
  %v354 = vmax.f32 %v306, %v326
  %v355 = vmax.f32 %v307, %v328
  %v356 = vmax.f32 %v308, %v330
  %v357 = vmax.f32 %v309, %v332
  %v358 = vmax.f32 %v310, %v334
  %v359 = vmax.f32 %v311, %v336
  %v360 = vmax.f32 %v312, %v338
  %v361 = vmax.f32 %v313, %v340
  %v362 = vmax.f32 %v314, %v342
  %v363 = vmax.f32 %v315, %v344
  %v364 = vmax.f32 %v316, %v346
  %v365 = vmax.f32 %v317, %v348
  %v366 = vmax.f32 %v318, %v350
  %v367 = vld [vmem:[%s5] sm:$0xff]
  %v368 = vld [vmem:[%s5 + $0x8] sm:$0xff]
  %v369 = vld [vmem:[%s5 + $0x10] sm:$0xff]
  %v370 = vld [vmem:[%s5 + $0x18] sm:$0xff]
  %v371 = vld [vmem:[%s5 + $0x20] sm:$0xff]
  %v372 = vld [vmem:[%s5 + $0x28] sm:$0xff]
  %v373 = vld [vmem:[%s5 + $0x30] sm:$0xff]
  %v374 = vld [vmem:[%s5 + $0x38] sm:$0xff]
  %v375 = vld [vmem:[%s5 + $0x40] sm:$0xff]
  %v376 = vld [vmem:[%s5 + $0x48] sm:$0xff]
  %v377 = vld [vmem:[%s5 + $0x50] sm:$0xff]
  %v378 = vld [vmem:[%s5 + $0x58] sm:$0xff]
  %v379 = vld [vmem:[%s5 + $0x60] sm:$0xff]
  %v380 = vld [vmem:[%s5 + $0x68] sm:$0xff]
  %v381 = vld [vmem:[%s5 + $0x70] sm:$0xff]
  %v382 = vld [vmem:[%s5 + $0x78] sm:$0xff]
  %v383 = vsub.f32 %v303, %v351
  %v384 = vsub.f32 %v304, %v352
  %v385 = vsub.f32 %v305, %v353
  %v386 = vsub.f32 %v306, %v354
  %v387 = vsub.f32 %v307, %v355
  %v388 = vsub.f32 %v308, %v356
  %v389 = vsub.f32 %v309, %v357
  %v390 = vsub.f32 %v310, %v358
  %v391 = vsub.f32 %v311, %v359
  %v392 = vsub.f32 %v312, %v360
  %v393 = vsub.f32 %v313, %v361
  %v394 = vsub.f32 %v314, %v362
  %v395 = vsub.f32 %v315, %v363
  %v396 = vsub.f32 %v316, %v364
  %v397 = vsub.f32 %v317, %v365
  %v398 = vsub.f32 %v318, %v366
  %v399 = vmul.f32 %v383, 1.442695
  %v400 = vpow.pop %v399
  %v401 = vmul.f32 %v384, 1.442695
  %v402 = vpow.pop %v401
  %v403 = vmul.f32 %v385, 1.442695
  %v404 = vpow.pop %v403
  %v405 = vmul.f32 %v386, 1.442695
  %v406 = vpow.pop %v405
  %v407 = vmul.f32 %v387, 1.442695
  %v408 = vpow.pop %v407
  %v409 = vmul.f32 %v388, 1.442695
  %v410 = vpow.pop %v409
  %v411 = vmul.f32 %v389, 1.442695
  %v412 = vpow.pop %v411
  %v413 = vmul.f32 %v390, 1.442695
  %v414 = vpow.pop %v413
  %v415 = vmul.f32 %v391, 1.442695
  %v416 = vpow.pop %v415
  %v417 = vmul.f32 %v392, 1.442695
  %v418 = vpow.pop %v417
  %v419 = vmul.f32 %v393, 1.442695
  %v420 = vpow.pop %v419
  %v421 = vmul.f32 %v394, 1.442695
  %v422 = vpow.pop %v421
  %v423 = vmul.f32 %v395, 1.442695
  %v424 = vpow.pop %v423
  %v425 = vmul.f32 %v396, 1.442695
  %v426 = vpow.pop %v425
  %v427 = vmul.f32 %v397, 1.442695
  %v428 = vpow.pop %v427
  %v429 = vmul.f32 %v398, 1.442695
  %v430 = vpow.pop %v429
  %v431 = vmul.f32 %v367, %v400
  %v432 = vmul.f32 %v368, %v402
  %v433 = vmul.f32 %v369, %v404
  %v434 = vmul.f32 %v370, %v406
  %v435 = vmul.f32 %v371, %v408
  %v436 = vmul.f32 %v372, %v410
  %v437 = vmul.f32 %v373, %v412
  %v438 = vmul.f32 %v374, %v414
  %v439 = vmul.f32 %v375, %v416
  %v440 = vmul.f32 %v376, %v418
  %v441 = vmul.f32 %v377, %v420
  %v442 = vmul.f32 %v378, %v422
  %v443 = vmul.f32 %v379, %v424
  %v444 = vmul.f32 %v380, %v426
  %v445 = vmul.f32 %v381, %v428
  %v446 = vmul.f32 %v382, %v430
  %448 = vset.pattern.permute.xlu0 0
  %449 = vperm.xlu0 %448, %v351
  %v450 = vpop.permute.xlu0 %449
  %453 = vset.pattern.permute.xlu0 0
  %454 = vperm.xlu0 %453, %v352
  %v455 = vpop.permute.xlu0 %454
  %458 = vset.pattern.permute.xlu0 0
  %459 = vperm.xlu0 %458, %v353
  %v460 = vpop.permute.xlu0 %459
  %463 = vset.pattern.permute.xlu0 0
  %464 = vperm.xlu0 %463, %v354
  %v465 = vpop.permute.xlu0 %464
  %468 = vset.pattern.permute.xlu0 0
  %469 = vperm.xlu0 %468, %v355
  %v470 = vpop.permute.xlu0 %469
  %473 = vset.pattern.permute.xlu0 0
  %474 = vperm.xlu0 %473, %v356
  %v475 = vpop.permute.xlu0 %474
  %478 = vset.pattern.permute.xlu0 0
  %479 = vperm.xlu0 %478, %v357
  %v480 = vpop.permute.xlu0 %479
  %483 = vset.pattern.permute.xlu0 0
  %484 = vperm.xlu0 %483, %v358
  %v485 = vpop.permute.xlu0 %484
  %488 = vset.pattern.permute.xlu0 0
  %489 = vperm.xlu0 %488, %v359
  %v490 = vpop.permute.xlu0 %489
  %493 = vset.pattern.permute.xlu0 0
  %494 = vperm.xlu0 %493, %v360
  %v495 = vpop.permute.xlu0 %494
  %498 = vset.pattern.permute.xlu0 0
  %499 = vperm.xlu0 %498, %v361
  %v500 = vpop.permute.xlu0 %499
  %503 = vset.pattern.permute.xlu0 0
  %504 = vperm.xlu0 %503, %v362
  %v505 = vpop.permute.xlu0 %504
  %508 = vset.pattern.permute.xlu0 0
  %509 = vperm.xlu0 %508, %v363
  %v510 = vpop.permute.xlu0 %509
  %513 = vset.pattern.permute.xlu0 0
  %514 = vperm.xlu0 %513, %v364
  %v515 = vpop.permute.xlu0 %514
  %518 = vset.pattern.permute.xlu0 0
  %519 = vperm.xlu0 %518, %v365
  %v520 = vpop.permute.xlu0 %519
  %523 = vset.pattern.permute.xlu0 0
  %524 = vperm.xlu0 %523, %v366
  %v525 = vpop.permute.xlu0 %524
  %v527 = vsub.f32 %v225, %v450
  %v528 = vsub.f32 %v228, %v455
  %v529 = vsub.f32 %v233, %v460
  %v530 = vsub.f32 %v236, %v465
  %v531 = vsub.f32 %v241, %v470
  %v532 = vsub.f32 %v244, %v475
  %v533 = vsub.f32 %v249, %v480
  %v534 = vsub.f32 %v252, %v485
  %v535 = vsub.f32 %v257, %v490
  %v536 = vsub.f32 %v260, %v495
  %v537 = vsub.f32 %v265, %v500
  %v538 = vsub.f32 %v268, %v505
  %v539 = vsub.f32 %v273, %v510
  %v540 = vsub.f32 %v276, %v515
  %v541 = vsub.f32 %v281, %v520
  %v542 = vsub.f32 %v284, %v525
  %v543 = vmul.f32 %v527, 1.442695
  %v544 = vpow.pop %v543
  %v545 = vmul.f32 %v528, 1.442695
  %v546 = vpow.pop %v545
  %v547 = vmul.f32 %v529, 1.442695
  %v548 = vpow.pop %v547
  %v549 = vmul.f32 %v530, 1.442695
  %v550 = vpow.pop %v549
  %v551 = vmul.f32 %v531, 1.442695
  %v552 = vpow.pop %v551
  %v553 = vmul.f32 %v532, 1.442695
  %v554 = vpow.pop %v553
  %v555 = vmul.f32 %v533, 1.442695
  %v556 = vpow.pop %v555
  %v557 = vmul.f32 %v534, 1.442695
  %v558 = vpow.pop %v557
  %v559 = vmul.f32 %v535, 1.442695
  %v560 = vpow.pop %v559
  %v561 = vmul.f32 %v536, 1.442695
  %v562 = vpow.pop %v561
  %v563 = vmul.f32 %v537, 1.442695
  %v564 = vpow.pop %v563
  %v565 = vmul.f32 %v538, 1.442695
  %v566 = vpow.pop %v565
  %v567 = vmul.f32 %v539, 1.442695
  %v568 = vpow.pop %v567
  %v569 = vmul.f32 %v540, 1.442695
  %v570 = vpow.pop %v569
  %v571 = vmul.f32 %v541, 1.442695
  %v572 = vpow.pop %v571
  %v573 = vmul.f32 %v542, 1.442695
  %v574 = vpow.pop %v573
  %575 = vadd.xlane.f32.xlu0 %v544
  %v576 = vpop.xlane.xlu0 %575
  %577 = vadd.xlane.f32.xlu0 %v546
  %v578 = vpop.xlane.xlu0 %577
  %579 = vadd.xlane.f32.xlu0 %v548
  %v580 = vpop.xlane.xlu0 %579
  %581 = vadd.xlane.f32.xlu0 %v550
  %v582 = vpop.xlane.xlu0 %581
  %583 = vadd.xlane.f32.xlu0 %v552
  %v584 = vpop.xlane.xlu0 %583
  %585 = vadd.xlane.f32.xlu0 %v554
  %v586 = vpop.xlane.xlu0 %585
  %587 = vadd.xlane.f32.xlu0 %v556
  %v588 = vpop.xlane.xlu0 %587
  %589 = vadd.xlane.f32.xlu0 %v558
  %v590 = vpop.xlane.xlu0 %589
  %591 = vadd.xlane.f32.xlu0 %v560
  %v592 = vpop.xlane.xlu0 %591
  %593 = vadd.xlane.f32.xlu0 %v562
  %v594 = vpop.xlane.xlu0 %593
  %595 = vadd.xlane.f32.xlu0 %v564
  %v596 = vpop.xlane.xlu0 %595
  %597 = vadd.xlane.f32.xlu0 %v566
  %v598 = vpop.xlane.xlu0 %597
  %599 = vadd.xlane.f32.xlu0 %v568
  %v600 = vpop.xlane.xlu0 %599
  %601 = vadd.xlane.f32.xlu0 %v570
  %v602 = vpop.xlane.xlu0 %601
  %603 = vadd.xlane.f32.xlu0 %v572
  %v604 = vpop.xlane.xlu0 %603
  %605 = vadd.xlane.f32.xlu0 %v574
  %v606 = vpop.xlane.xlu0 %605
  %v607 = vadd.f32 %v431, %v576
  %v608 = vadd.f32 %v432, %v578
  %v609 = vadd.f32 %v433, %v580
  %v610 = vadd.f32 %v434, %v582
  %v611 = vadd.f32 %v435, %v584
  %v612 = vadd.f32 %v436, %v586
  %v613 = vadd.f32 %v437, %v588
  %v614 = vadd.f32 %v438, %v590
  %v615 = vadd.f32 %v439, %v592
  %v616 = vadd.f32 %v440, %v594
  %v617 = vadd.f32 %v441, %v596
  %v618 = vadd.f32 %v442, %v598
  %v619 = vadd.f32 %v443, %v600
  %v620 = vadd.f32 %v444, %v602
  %v621 = vadd.f32 %v445, %v604
  %v622 = vadd.f32 %v446, %v606
  %vm623 = vcmask 7168
  %624 = vst.msk [vmem:[%s5] sm:$0xff] %vm623, %v607
  %625 = vst.msk [vmem:[%s5 + $0x8] sm:$0xff] %vm623, %v608
  %626 = vst.msk [vmem:[%s5 + $0x10] sm:$0xff] %vm623, %v609
  %627 = vst.msk [vmem:[%s5 + $0x18] sm:$0xff] %vm623, %v610
  %628 = vst.msk [vmem:[%s5 + $0x20] sm:$0xff] %vm623, %v611
  %629 = vst.msk [vmem:[%s5 + $0x28] sm:$0xff] %vm623, %v612
  %630 = vst.msk [vmem:[%s5 + $0x30] sm:$0xff] %vm623, %v613
  %631 = vst.msk [vmem:[%s5 + $0x38] sm:$0xff] %vm623, %v614
  %632 = vst.msk [vmem:[%s5 + $0x40] sm:$0xff] %vm623, %v615
  %633 = vst.msk [vmem:[%s5 + $0x48] sm:$0xff] %vm623, %v616
  %634 = vst.msk [vmem:[%s5 + $0x50] sm:$0xff] %vm623, %v617
  %635 = vst.msk [vmem:[%s5 + $0x58] sm:$0xff] %vm623, %v618
  %636 = vst.msk [vmem:[%s5 + $0x60] sm:$0xff] %vm623, %v619
  %637 = vst.msk [vmem:[%s5 + $0x68] sm:$0xff] %vm623, %v620
  %638 = vst.msk [vmem:[%s5 + $0x70] sm:$0xff] %vm623, %v621
  %639 = vst.msk [vmem:[%s5 + $0x78] sm:$0xff] %vm623, %v622
  %640 = vst.msk [vmem:[%s4] sm:$0xff] %vm623, %v351
  %641 = vst.msk [vmem:[%s4 + $0x8] sm:$0xff] %vm623, %v352
  %642 = vst.msk [vmem:[%s4 + $0x10] sm:$0xff] %vm623, %v353
  %643 = vst.msk [vmem:[%s4 + $0x18] sm:$0xff] %vm623, %v354
  %644 = vst.msk [vmem:[%s4 + $0x20] sm:$0xff] %vm623, %v355
  %645 = vst.msk [vmem:[%s4 + $0x28] sm:$0xff] %vm623, %v356
  %646 = vst.msk [vmem:[%s4 + $0x30] sm:$0xff] %vm623, %v357
  %647 = vst.msk [vmem:[%s4 + $0x38] sm:$0xff] %vm623, %v358
  %648 = vst.msk [vmem:[%s4 + $0x40] sm:$0xff] %vm623, %v359
  %649 = vst.msk [vmem:[%s4 + $0x48] sm:$0xff] %vm623, %v360
  %650 = vst.msk [vmem:[%s4 + $0x50] sm:$0xff] %vm623, %v361
  %651 = vst.msk [vmem:[%s4 + $0x58] sm:$0xff] %vm623, %v362
  %652 = vst.msk [vmem:[%s4 + $0x60] sm:$0xff] %vm623, %v363
  %653 = vst.msk [vmem:[%s4 + $0x68] sm:$0xff] %vm623, %v364
  %654 = vst.msk [vmem:[%s4 + $0x70] sm:$0xff] %vm623, %v365
  %655 = vst.msk [vmem:[%s4 + $0x78] sm:$0xff] %vm623, %v366
  // Predicated region
  $region18: #{lstm_decoder_forward.10} parent=0 // pred_check
    _
  $region19: #{lstm_decoder_forward.10} parent=0 // pred_check_branch
    %657 = sbr.rel (0) target = $region21
  $region20: #{lstm_decoder_forward.10} parent=0 // pred_region
    _
  $region21: #{lstm_decoder_forward.10} parent=0 // pred_fallthru
    _
  // Predicated region
  $region22: #{lstm_decoder_forward.10} parent=0 // pred_check
    _
  $region23: #{lstm_decoder_forward.10} parent=0 // pred_check_branch
    %659 = sbr.rel (0) target = $region25
  $region24: #{lstm_decoder_forward.10} parent=0 // pred_region
    _
  $region25: #{lstm_decoder_forward.10} parent=0 // pred_fallthru
    _
  // Predicated region
  $region26: #{lstm_decoder_forward.10} parent=0 // pred_check
    _
  $region27: #{lstm_decoder_forward.10} parent=0 // pred_check_branch
    %661 = sbr.rel (0) target = $region29
  $region28: #{lstm_decoder_forward.10} parent=0 // pred_region
    _
  $region29: #{lstm_decoder_forward.10} parent=0 // pred_fallthru
    _
  // Predicated region
  $region30: #{lstm_decoder_forward.10} parent=0 // pred_check
    _
  $region31: #{lstm_decoder_forward.10} parent=0 // pred_check_branch
    %663 = sbr.rel (0) target = $region33
  $region32: #{lstm_decoder_forward.10} parent=0 // pred_region
    _
  $region33: #{lstm_decoder_forward.10} parent=0 // pred_fallthru
    _
  // Predicated region
  $region34: #{lstm_decoder_forward.10} parent=0 // pred_check
    _
  $region35: #{lstm_decoder_forward.10} parent=0 // pred_check_branch
    %665 = sbr.rel (0) target = $region37
  $region36: #{lstm_decoder_forward.10} parent=0 // pred_region
    _
  $region37: #{lstm_decoder_forward.10} parent=0 // pred_fallthru
    _
  // Predicated region
  $region38: #{lstm_decoder_forward.10} parent=0 // pred_check
    _
  $region39: #{lstm_decoder_forward.10} parent=0 // pred_check_branch
    %667 = sbr.rel (0) target = $region41
  $region40: #{lstm_decoder_forward.10} parent=0 // pred_region
    _
  $region41: #{lstm_decoder_forward.10} parent=0 // pred_fallthru
    _

// kernel: lstm_decoder_forward.6
$region0: #{lstm_decoder_forward.6}
  #allocation0 [shape = 'u32[]', space=smem, size = 0x4, offset = 0x4, fixed_abs, tag = 'smem constant byte address 0x4 - core index']
  #allocation1 [shape = 'u32[144,128]{1,0:T(1,128)}', space=vmem, size = 0x12000, scoped, tag = 'internal scratch']
  %s0 = inlined_call_operand.vmem [shape: bf16[128,128], index: 0, kind: input, shape index: {}]
  %s1 = inlined_call_operand.vmem [shape: bf16[128,512], index: 1, kind: input, shape index: {}]
  %s2 = inlined_call_operand.vmem [shape: f32[1,512], index: 2, kind: input, shape index: {}]
  %s3 = inlined_call_operand.vmem [shape: bf16[128,512], index: 3, kind: output, shape index: {}]
  %s4 = sld [smem:[#allocation0]]
  $region22: #{lstm_decoder_forward.6} parent=0
    _
  %s6 = ssub.s32 1, %s4
  %s7 = scalar_select 0, %s6, %s4
  // Predicated region
  $region2: #{lstm_decoder_forward.6} parent=0 // pred_check
    _
  $region3: #{lstm_decoder_forward.6} parent=0 // pred_check_branch
    %9 = sbr.rel (0) target = $region5
  $region4: #{lstm_decoder_forward.6} parent=0 // pred_region
    _
  $region5: #{lstm_decoder_forward.6} parent=0 // pred_fallthru
    _
  // Predicated region
  $region6: #{lstm_decoder_forward.6} parent=0 // pred_check
    _
  $region7: #{lstm_decoder_forward.6} parent=0 // pred_check_branch
    %11 = sbr.rel (0) target = $region9
  $region8: #{lstm_decoder_forward.6} parent=0 // pred_region
    _
  $region9: #{lstm_decoder_forward.6} parent=0 // pred_fallthru
    _
  // Predicated region
  $region10: #{lstm_decoder_forward.6} parent=0 // pred_check
    _
  $region11: #{lstm_decoder_forward.6} parent=0 // pred_check_branch
    %13 = sbr.rel (0) target = $region13
  $region12: #{lstm_decoder_forward.6} parent=0 // pred_region
    _
  $region13: #{lstm_decoder_forward.6} parent=0 // pred_fallthru
    _
  %v15 = vld [vmem:[%s0] sm:$0xf]
  %v16 = vld [vmem:[%s0 + $0x4] sm:$0xf]
  %v17 = vld [vmem:[%s0 + $0x8] sm:$0xf]
  %v18 = vld [vmem:[%s0 + $0xc] sm:$0xf]
  %v19 = vld [vmem:[%s0 + $0x10] sm:$0xf]
  %v20 = vld [vmem:[%s0 + $0x14] sm:$0xf]
  %v21 = vld [vmem:[%s0 + $0x18] sm:$0xf]
  %v22 = vld [vmem:[%s0 + $0x1c] sm:$0xf]
  %v23 = vld [vmem:[%s0 + $0x20] sm:$0xf]
  %v24 = vld [vmem:[%s0 + $0x24] sm:$0xf]
  %v25 = vld [vmem:[%s0 + $0x28] sm:$0xf]
  %v26 = vld [vmem:[%s0 + $0x2c] sm:$0xf]
  %v27 = vld [vmem:[%s0 + $0x30] sm:$0xf]
  %v28 = vld [vmem:[%s0 + $0x34] sm:$0xf]
  %v29 = vld [vmem:[%s0 + $0x38] sm:$0xf]
  %v30 = vld [vmem:[%s0 + $0x3c] sm:$0xf]
  %v31 = vld [vmem:[%s1] sm:$0xff]
  %v32 = vld [vmem:[%s1 + $0x8] sm:$0xff]
  %v33 = vld [vmem:[%s1 + $0x10] sm:$0xff]
  %v34 = vld [vmem:[%s1 + $0x18] sm:$0xff]
  %v35 = vld [vmem:[%s1 + $0x20] sm:$0xff]
  %v36 = vld [vmem:[%s1 + $0x28] sm:$0xff]
  %v37 = vld [vmem:[%s1 + $0x30] sm:$0xff]
  %v38 = vld [vmem:[%s1 + $0x38] sm:$0xff]
  %v39 = vld [vmem:[%s1 + $0x40] sm:$0xff]
  %v40 = vld [vmem:[%s1 + $0x48] sm:$0xff]
  %v41 = vld [vmem:[%s1 + $0x50] sm:$0xff]
  %v42 = vld [vmem:[%s1 + $0x58] sm:$0xff]
  %v43 = vld [vmem:[%s1 + $0x60] sm:$0xff]
  %v44 = vld [vmem:[%s1 + $0x68] sm:$0xff]
  %v45 = vld [vmem:[%s1 + $0x70] sm:$0xff]
  %v46 = vld [vmem:[%s1 + $0x78] sm:$0xff]
  %v47 = vld [vmem:[%s1 + $0x80] sm:$0xff]
  %v48 = vld [vmem:[%s1 + $0x88] sm:$0xff]
  %v49 = vld [vmem:[%s1 + $0x90] sm:$0xff]
  %v50 = vld [vmem:[%s1 + $0x98] sm:$0xff]
  %v51 = vld [vmem:[%s1 + $0xa0] sm:$0xff]
  %v52 = vld [vmem:[%s1 + $0xa8] sm:$0xff]
  %v53 = vld [vmem:[%s1 + $0xb0] sm:$0xff]
  %v54 = vld [vmem:[%s1 + $0xb8] sm:$0xff]
  %v55 = vld [vmem:[%s1 + $0xc0] sm:$0xff]
  %v56 = vld [vmem:[%s1 + $0xc8] sm:$0xff]
  %v57 = vld [vmem:[%s1 + $0xd0] sm:$0xff]
  %v58 = vld [vmem:[%s1 + $0xd8] sm:$0xff]
  %v59 = vld [vmem:[%s1 + $0xe0] sm:$0xff]
  %v60 = vld [vmem:[%s1 + $0xe8] sm:$0xff]
  %v61 = vld [vmem:[%s1 + $0xf0] sm:$0xff]
  %v62 = vld [vmem:[%s1 + $0xf8] sm:$0xff]
  %v63 = vld [vmem:[%s2] sm:$0xf]
  %v65 = vlaneseq
  %v66 = vshrl.u32 %v65, 7
  %v67 = vsub.s32 0, %v66
  %v68 = vrot.slane %v63, %v67
  %v69 = vlaneseq
  %v70 = vshrl.u32 %v69, 7
  %v71 = vsub.s32 1, %v70
  %v72 = vrot.slane %v63, %v71
  %v73 = vlaneseq
  %v74 = vshrl.u32 %v73, 7
  %v75 = vsub.s32 2, %v74
  %v76 = vrot.slane %v63, %v75
  %v77 = vlaneseq
  %v78 = vshrl.u32 %v77, 7
  %v79 = vsub.s32 3, %v78
  %v80 = vrot.slane %v63, %v79
  %v101 = vunpack.c.l.b16 %v15
  %v102 = vunpack.c.l.b16 %v16
  %v103 = vunpack.c.l.b16 %v17
  %v104 = vunpack.c.l.b16 %v18
  %v105 = vunpack.c.l.b16 %v19
  %v106 = vunpack.c.l.b16 %v20
  %v107 = vunpack.c.l.b16 %v21
  %v108 = vunpack.c.l.b16 %v22
  %v109 = vunpack.c.l.b16 %v23
  %v110 = vunpack.c.l.b16 %v24
  %v111 = vunpack.c.l.b16 %v25
  %v112 = vunpack.c.l.b16 %v26
  %v113 = vunpack.c.l.b16 %v27
  %v114 = vunpack.c.l.b16 %v28
  %v115 = vunpack.c.l.b16 %v29
  %v116 = vunpack.c.l.b16 %v30
  %v117 = vpack.c.b16 %v102, %v101
  %v118 = vpack.c.b16 %v104, %v103
  %v119 = vpack.c.b16 %v106, %v105
  %v120 = vpack.c.b16 %v108, %v107
  %v121 = vpack.c.b16 %v110, %v109
  %v122 = vpack.c.b16 %v112, %v111
  %v123 = vpack.c.b16 %v114, %v113
  %v124 = vpack.c.b16 %v116, %v115
  %v165 = vunpack.c.l.b16 %v31
  %v166 = vunpack.c.h.b16 %v31
  %v167 = vunpack.c.l.b16 %v32
  %v168 = vunpack.c.h.b16 %v32
  %v169 = vunpack.c.l.b16 %v33
  %v170 = vunpack.c.h.b16 %v33
  %v171 = vunpack.c.l.b16 %v34
  %v172 = vunpack.c.h.b16 %v34
  %v173 = vunpack.c.l.b16 %v35
  %v174 = vunpack.c.h.b16 %v35
  %v175 = vunpack.c.l.b16 %v36
  %v176 = vunpack.c.h.b16 %v36
  %v177 = vunpack.c.l.b16 %v37
  %v178 = vunpack.c.h.b16 %v37
  %v179 = vunpack.c.l.b16 %v38
  %v180 = vunpack.c.h.b16 %v38
  %v181 = vunpack.c.l.b16 %v39
  %v182 = vunpack.c.h.b16 %v39
  %v183 = vunpack.c.l.b16 %v40
  %v184 = vunpack.c.h.b16 %v40
  %v185 = vunpack.c.l.b16 %v41
  %v186 = vunpack.c.h.b16 %v41
  %v187 = vunpack.c.l.b16 %v42
  %v188 = vunpack.c.h.b16 %v42
  %v189 = vunpack.c.l.b16 %v43
  %v190 = vunpack.c.h.b16 %v43
  %v191 = vunpack.c.l.b16 %v44
  %v192 = vunpack.c.h.b16 %v44
  %v193 = vunpack.c.l.b16 %v45
  %v194 = vunpack.c.h.b16 %v45
  %v195 = vunpack.c.l.b16 %v46
  %v196 = vunpack.c.h.b16 %v46
  %v197 = vunpack.c.l.b16 %v47
  %v198 = vunpack.c.h.b16 %v47
  %v199 = vunpack.c.l.b16 %v48
  %v200 = vunpack.c.h.b16 %v48
  %v201 = vunpack.c.l.b16 %v49
  %v202 = vunpack.c.h.b16 %v49
  %v203 = vunpack.c.l.b16 %v50
  %v204 = vunpack.c.h.b16 %v50
  %v205 = vunpack.c.l.b16 %v51
  %v206 = vunpack.c.h.b16 %v51
  %v207 = vunpack.c.l.b16 %v52
  %v208 = vunpack.c.h.b16 %v52
  %v209 = vunpack.c.l.b16 %v53
  %v210 = vunpack.c.h.b16 %v53
  %v211 = vunpack.c.l.b16 %v54
  %v212 = vunpack.c.h.b16 %v54
  %v213 = vunpack.c.l.b16 %v55
  %v214 = vunpack.c.h.b16 %v55
  %v215 = vunpack.c.l.b16 %v56
  %v216 = vunpack.c.h.b16 %v56
  %v217 = vunpack.c.l.b16 %v57
  %v218 = vunpack.c.h.b16 %v57
  %v219 = vunpack.c.l.b16 %v58
  %v220 = vunpack.c.h.b16 %v58
  %v221 = vunpack.c.l.b16 %v59
  %v222 = vunpack.c.h.b16 %v59
  %v223 = vunpack.c.l.b16 %v60
  %v224 = vunpack.c.h.b16 %v60
  %v225 = vunpack.c.l.b16 %v61
  %v226 = vunpack.c.h.b16 %v61
  %v227 = vunpack.c.l.b16 %v62
  %v228 = vunpack.c.h.b16 %v62
  %v229 = vpack.c.b16 %v169, %v165
  %v230 = vpack.c.b16 %v170, %v166
  %v231 = vpack.c.b16 %v171, %v167
  %v232 = vpack.c.b16 %v172, %v168
  %v233 = vpack.c.b16 %v177, %v173
  %v234 = vpack.c.b16 %v178, %v174
  %v235 = vpack.c.b16 %v179, %v175
  %v236 = vpack.c.b16 %v180, %v176
  %v237 = vpack.c.b16 %v185, %v181
  %v238 = vpack.c.b16 %v186, %v182
  %v239 = vpack.c.b16 %v187, %v183
  %v240 = vpack.c.b16 %v188, %v184
  %v241 = vpack.c.b16 %v193, %v189
  %v242 = vpack.c.b16 %v194, %v190
  %v243 = vpack.c.b16 %v195, %v191
  %v244 = vpack.c.b16 %v196, %v192
  %v245 = vpack.c.b16 %v201, %v197
  %v246 = vpack.c.b16 %v202, %v198
  %v247 = vpack.c.b16 %v203, %v199
  %v248 = vpack.c.b16 %v204, %v200
  %v249 = vpack.c.b16 %v209, %v205
  %v250 = vpack.c.b16 %v210, %v206
  %v251 = vpack.c.b16 %v211, %v207
  %v252 = vpack.c.b16 %v212, %v208
  %v253 = vpack.c.b16 %v217, %v213
  %v254 = vpack.c.b16 %v218, %v214
  %v255 = vpack.c.b16 %v219, %v215
  %v256 = vpack.c.b16 %v220, %v216
  %v257 = vpack.c.b16 %v225, %v221
  %v258 = vpack.c.b16 %v226, %v222
  %v259 = vpack.c.b16 %v227, %v223
  %v260 = vpack.c.b16 %v228, %v224
  %293 = vmatprep.subr.bf16.mxu0 %v230
  %294 = vmatpush1.bf16.msra.mxu0 %v229
  %295 = vmatprep.subr.bf16.mxu0 %v234
  %296 = vmatpush1.bf16.msra.mxu0 %v233
  %297 = vmatprep.subr.bf16.mxu0 %v238
  %298 = vmatpush1.bf16.msra.mxu0 %v237
  %299 = vmatprep.subr.bf16.mxu0 %v242
  %300 = vmatpush1.bf16.msra.mxu0 %v241
  %301 = vmatprep.subr.bf16.mxu0 %v246
  %302 = vmatpush1.bf16.msra.mxu0 %v245
  %303 = vmatprep.subr.bf16.mxu0 %v250
  %304 = vmatpush1.bf16.msra.mxu0 %v249
  %305 = vmatprep.subr.bf16.mxu0 %v254
  %306 = vmatpush1.bf16.msra.mxu0 %v253
  %307 = vmatprep.subr.bf16.mxu0 %v258
  %308 = vmatpush1.bf16.msra.mxu0 %v257
  %309 = vmatprep.subr.bf16.mxu0 0
  %310 = vmatpush1.bf16.msra.mxu0 0
  %311 = vmatprep.subr.bf16.mxu0 0
  %312 = vmatpush1.bf16.msra.mxu0 0
  %313 = vmatprep.subr.bf16.mxu0 0
  %314 = vmatpush1.bf16.msra.mxu0 0
  %315 = vmatprep.subr.bf16.mxu0 0
  %316 = vmatpush1.bf16.msra.mxu0 0
  %317 = vmatprep.subr.bf16.mxu0 0
  %318 = vmatpush1.bf16.msra.mxu0 0
  %319 = vmatprep.subr.bf16.mxu0 0
  %320 = vmatpush1.bf16.msra.mxu0 0
  %321 = vmatprep.subr.bf16.mxu0 0
  %322 = vmatpush1.bf16.msra.mxu0 0
  %323 = vmatprep.subr.bf16.mxu0 0
  %324 = vmatpush1.bf16.msra.mxu0 0
  %325 = vmatprep.mubr.bf16.mxu0 0
  %326 = vmatmul.mubr.bf16.gmra.mrb[0].mxu0 %v117
  %v327 = vpop.f32.mrb[0].mxu0
  %v328 = vadd.f32 %v68, %v327
  %v329 = vpop.f32.mrb[0].mxu0
  %v330 = vadd.f32 %v72, %v329
  %v331 = vpop.f32.mrb[0].mxu0
  %v332 = vadd.f32 %v68, %v331
  %v333 = vpop.f32.mrb[0].mxu0
  %v334 = vadd.f32 %v72, %v333
  %335 = vmatprep.mubr.bf16.mxu0 0
  %336 = vmatmul.mubr.bf16.gmra.mrb[0].mxu0 %v118
  %v337 = vpop.f32.mrb[0].mxu0
  %v338 = vadd.f32 %v68, %v337
  %v339 = vpop.f32.mrb[0].mxu0
  %v340 = vadd.f32 %v72, %v339
  %v341 = vpop.f32.mrb[0].mxu0
  %v342 = vadd.f32 %v68, %v341
  %v343 = vpop.f32.mrb[0].mxu0
  %v344 = vadd.f32 %v72, %v343
  %345 = vmatprep.mubr.bf16.mxu0 0
  %346 = vmatmul.mubr.bf16.gmra.mrb[0].mxu0 %v119
  %v347 = vpop.f32.mrb[0].mxu0
  %v348 = vadd.f32 %v68, %v347
  %v349 = vpop.f32.mrb[0].mxu0
  %v350 = vadd.f32 %v72, %v349
  %v351 = vpop.f32.mrb[0].mxu0
  %v352 = vadd.f32 %v68, %v351
  %v353 = vpop.f32.mrb[0].mxu0
  %v354 = vadd.f32 %v72, %v353
  %355 = vmatprep.mubr.bf16.mxu0 0
  %356 = vmatmul.mubr.bf16.gmra.mrb[0].mxu0 %v120
  %v357 = vpop.f32.mrb[0].mxu0
  %v358 = vadd.f32 %v68, %v357
  %v359 = vpop.f32.mrb[0].mxu0
  %v360 = vadd.f32 %v72, %v359
  %v361 = vpop.f32.mrb[0].mxu0
  %v362 = vadd.f32 %v68, %v361
  %v363 = vpop.f32.mrb[0].mxu0
  %v364 = vadd.f32 %v72, %v363
  %365 = vmatprep.mubr.bf16.mxu0 0
  %366 = vmatmul.mubr.bf16.gmra.mrb[0].mxu0 %v121
  %v367 = vpop.f32.mrb[0].mxu0
  %v368 = vadd.f32 %v68, %v367
  %v369 = vpop.f32.mrb[0].mxu0
  %v370 = vadd.f32 %v72, %v369
  %v371 = vpop.f32.mrb[0].mxu0
  %v372 = vadd.f32 %v68, %v371
  %v373 = vpop.f32.mrb[0].mxu0
  %v374 = vadd.f32 %v72, %v373
  %375 = vmatprep.mubr.bf16.mxu0 0
  %376 = vmatmul.mubr.bf16.gmra.mrb[0].mxu0 %v122
  %v377 = vpop.f32.mrb[0].mxu0
  %v378 = vadd.f32 %v68, %v377
  %v379 = vpop.f32.mrb[0].mxu0
  %v380 = vadd.f32 %v72, %v379
  %v381 = vpop.f32.mrb[0].mxu0
  %v382 = vadd.f32 %v68, %v381
  %v383 = vpop.f32.mrb[0].mxu0
  %v384 = vadd.f32 %v72, %v383
  %385 = vmatprep.mubr.bf16.mxu0 0
  %386 = vmatmul.mubr.bf16.gmra.mrb[0].mxu0 %v123
  %v387 = vpop.f32.mrb[0].mxu0
  %v388 = vadd.f32 %v68, %v387
  %v389 = vpop.f32.mrb[0].mxu0
  %v390 = vadd.f32 %v72, %v389
  %v391 = vpop.f32.mrb[0].mxu0
  %v392 = vadd.f32 %v68, %v391
  %v393 = vpop.f32.mrb[0].mxu0
  %v394 = vadd.f32 %v72, %v393
  %395 = vmatprep.mubr.bf16.mxu0 0
  %396 = vmatmul.mubr.bf16.gmra.mrb[0].mxu0 %v124
  %v397 = vpop.f32.mrb[0].mxu0
  %v398 = vadd.f32 %v68, %v397
  %v399 = vpop.f32.mrb[0].mxu0
  %v400 = vadd.f32 %v72, %v399
  %v401 = vpop.f32.mrb[0].mxu0
  %v402 = vadd.f32 %v68, %v401
  %v403 = vpop.f32.mrb[0].mxu0
  %v404 = vadd.f32 %v72, %v403
  %405 = vdwg.mxu0
  %406 = vmatprep.subr.bf16.mxu0 %v232
  %407 = vmatpush1.bf16.msra.mxu0 %v231
  %408 = vmatprep.subr.bf16.mxu0 %v236
  %409 = vmatpush1.bf16.msra.mxu0 %v235
  %410 = vmatprep.subr.bf16.mxu0 %v240
  %411 = vmatpush1.bf16.msra.mxu0 %v239
  %412 = vmatprep.subr.bf16.mxu0 %v244
  %413 = vmatpush1.bf16.msra.mxu0 %v243
  %414 = vmatprep.subr.bf16.mxu0 %v248
  %415 = vmatpush1.bf16.msra.mxu0 %v247
  %416 = vmatprep.subr.bf16.mxu0 %v252
  %417 = vmatpush1.bf16.msra.mxu0 %v251
  %418 = vmatprep.subr.bf16.mxu0 %v256
  %419 = vmatpush1.bf16.msra.mxu0 %v255
  %420 = vmatprep.subr.bf16.mxu0 %v260
  %421 = vmatpush1.bf16.msra.mxu0 %v259
  %422 = vmatprep.subr.bf16.mxu0 0
  %423 = vmatpush1.bf16.msra.mxu0 0
  %424 = vmatprep.subr.bf16.mxu0 0
  %425 = vmatpush1.bf16.msra.mxu0 0
  %426 = vmatprep.subr.bf16.mxu0 0
  %427 = vmatpush1.bf16.msra.mxu0 0
  %428 = vmatprep.subr.bf16.mxu0 0
  %429 = vmatpush1.bf16.msra.mxu0 0
  %430 = vmatprep.subr.bf16.mxu0 0
  %431 = vmatpush1.bf16.msra.mxu0 0
  %432 = vmatprep.subr.bf16.mxu0 0
  %433 = vmatpush1.bf16.msra.mxu0 0
  %434 = vmatprep.subr.bf16.mxu0 0
  %435 = vmatpush1.bf16.msra.mxu0 0
  %436 = vmatprep.subr.bf16.mxu0 0
  %437 = vmatpush1.bf16.msra.mxu0 0
  %438 = vmatprep.mubr.bf16.mxu0 0
  %439 = vmatmul.mubr.bf16.gmra.mrb[0].mxu0 %v117
  %v440 = vpop.f32.mrb[0].mxu0
  %v441 = vadd.f32 %v76, %v440
  %v442 = vpop.f32.mrb[0].mxu0
  %v443 = vadd.f32 %v80, %v442
  %v444 = vpop.f32.mrb[0].mxu0
  %v445 = vadd.f32 %v76, %v444
  %v446 = vpop.f32.mrb[0].mxu0
  %v447 = vadd.f32 %v80, %v446
  %448 = vmatprep.mubr.bf16.mxu0 0
  %449 = vmatmul.mubr.bf16.gmra.mrb[0].mxu0 %v118
  %v450 = vpop.f32.mrb[0].mxu0
  %v451 = vadd.f32 %v76, %v450
  %v452 = vpop.f32.mrb[0].mxu0
  %v453 = vadd.f32 %v80, %v452
  %v454 = vpop.f32.mrb[0].mxu0
  %v455 = vadd.f32 %v76, %v454
  %v456 = vpop.f32.mrb[0].mxu0
  %v457 = vadd.f32 %v80, %v456
  %458 = vmatprep.mubr.bf16.mxu0 0
  %459 = vmatmul.mubr.bf16.gmra.mrb[0].mxu0 %v119
  %v460 = vpop.f32.mrb[0].mxu0
  %v461 = vadd.f32 %v76, %v460
  %v462 = vpop.f32.mrb[0].mxu0
  %v463 = vadd.f32 %v80, %v462
  %v464 = vpop.f32.mrb[0].mxu0
  %v465 = vadd.f32 %v76, %v464
  %v466 = vpop.f32.mrb[0].mxu0
  %v467 = vadd.f32 %v80, %v466
  %468 = vmatprep.mubr.bf16.mxu0 0
  %469 = vmatmul.mubr.bf16.gmra.mrb[0].mxu0 %v120
  %v470 = vpop.f32.mrb[0].mxu0
  %v471 = vadd.f32 %v76, %v470
  %v472 = vpop.f32.mrb[0].mxu0
  %v473 = vadd.f32 %v80, %v472
  %v474 = vpop.f32.mrb[0].mxu0
  %v475 = vadd.f32 %v76, %v474
  %v476 = vpop.f32.mrb[0].mxu0
  %v477 = vadd.f32 %v80, %v476
  %478 = vmatprep.mubr.bf16.mxu0 0
  %479 = vmatmul.mubr.bf16.gmra.mrb[0].mxu0 %v121
  %v480 = vpop.f32.mrb[0].mxu0
  %v481 = vadd.f32 %v76, %v480
  %v482 = vpop.f32.mrb[0].mxu0
  %v483 = vadd.f32 %v80, %v482
  %v484 = vpop.f32.mrb[0].mxu0
  %v485 = vadd.f32 %v76, %v484
  %v486 = vpop.f32.mrb[0].mxu0
  %v487 = vadd.f32 %v80, %v486
  %488 = vmatprep.mubr.bf16.mxu0 0
  %489 = vmatmul.mubr.bf16.gmra.mrb[0].mxu0 %v122
  %v490 = vpop.f32.mrb[0].mxu0
  %v491 = vadd.f32 %v76, %v490
  %v492 = vpop.f32.mrb[0].mxu0
  %v493 = vadd.f32 %v80, %v492
  %v494 = vpop.f32.mrb[0].mxu0
  %v495 = vadd.f32 %v76, %v494
  %v496 = vpop.f32.mrb[0].mxu0
  %v497 = vadd.f32 %v80, %v496
  %498 = vmatprep.mubr.bf16.mxu0 0
  %499 = vmatmul.mubr.bf16.gmra.mrb[0].mxu0 %v123
  %v500 = vpop.f32.mrb[0].mxu0
  %v501 = vadd.f32 %v76, %v500
  %v502 = vpop.f32.mrb[0].mxu0
  %v503 = vadd.f32 %v80, %v502
  %v504 = vpop.f32.mrb[0].mxu0
  %v505 = vadd.f32 %v76, %v504
  %v506 = vpop.f32.mrb[0].mxu0
  %v507 = vadd.f32 %v80, %v506
  %508 = vmatprep.mubr.bf16.mxu0 0
  %509 = vmatmul.mubr.bf16.gmra.mrb[0].mxu0 %v124
  %v510 = vpop.f32.mrb[0].mxu0
  %v511 = vadd.f32 %v76, %v510
  %v512 = vpop.f32.mrb[0].mxu0
  %v513 = vadd.f32 %v80, %v512
  %v514 = vpop.f32.mrb[0].mxu0
  %v515 = vadd.f32 %v76, %v514
  %v516 = vpop.f32.mrb[0].mxu0
  %v517 = vadd.f32 %v80, %v516
  %518 = vdwg.mxu0
  %v519 = vpack.c.bf16 %v332, %v328
  %v520 = vpack.c.bf16 %v334, %v330
  %v521 = vpack.c.bf16 %v445, %v441
  %v522 = vpack.c.bf16 %v447, %v443
  %v523 = vpack.c.bf16 %v342, %v338
  %v524 = vpack.c.bf16 %v344, %v340
  %v525 = vpack.c.bf16 %v455, %v451
  %v526 = vpack.c.bf16 %v457, %v453
  %v527 = vpack.c.bf16 %v352, %v348
  %v528 = vpack.c.bf16 %v354, %v350
  %v529 = vpack.c.bf16 %v465, %v461
  %v530 = vpack.c.bf16 %v467, %v463
  %v531 = vpack.c.bf16 %v362, %v358
  %v532 = vpack.c.bf16 %v364, %v360
  %v533 = vpack.c.bf16 %v475, %v471
  %v534 = vpack.c.bf16 %v477, %v473
  %v535 = vpack.c.bf16 %v372, %v368
  %v536 = vpack.c.bf16 %v374, %v370
  %v537 = vpack.c.bf16 %v485, %v481
  %v538 = vpack.c.bf16 %v487, %v483
  %v539 = vpack.c.bf16 %v382, %v378
  %v540 = vpack.c.bf16 %v384, %v380
  %v541 = vpack.c.bf16 %v495, %v491
  %v542 = vpack.c.bf16 %v497, %v493
  %v543 = vpack.c.bf16 %v392, %v388
  %v544 = vpack.c.bf16 %v394, %v390
  %v545 = vpack.c.bf16 %v505, %v501
  %v546 = vpack.c.bf16 %v507, %v503
  %v547 = vpack.c.bf16 %v402, %v398
  %v548 = vpack.c.bf16 %v404, %v400
  %v549 = vpack.c.bf16 %v515, %v511
  %v550 = vpack.c.bf16 %v517, %v513
  %v583 = vunpack.c.l.b16 %v519
  %v584 = vunpack.c.l.b16 %v520
  %v585 = vunpack.c.l.b16 %v521
  %v586 = vunpack.c.l.b16 %v522
  %v587 = vunpack.c.h.b16 %v519
  %v588 = vunpack.c.h.b16 %v520
  %v589 = vunpack.c.h.b16 %v521
  %v590 = vunpack.c.h.b16 %v522
  %v591 = vunpack.c.l.b16 %v523
  %v592 = vunpack.c.l.b16 %v524
  %v593 = vunpack.c.l.b16 %v525
  %v594 = vunpack.c.l.b16 %v526
  %v595 = vunpack.c.h.b16 %v523
  %v596 = vunpack.c.h.b16 %v524
  %v597 = vunpack.c.h.b16 %v525
  %v598 = vunpack.c.h.b16 %v526
  %v599 = vunpack.c.l.b16 %v527
  %v600 = vunpack.c.l.b16 %v528
  %v601 = vunpack.c.l.b16 %v529
  %v602 = vunpack.c.l.b16 %v530
  %v603 = vunpack.c.h.b16 %v527
  %v604 = vunpack.c.h.b16 %v528
  %v605 = vunpack.c.h.b16 %v529
  %v606 = vunpack.c.h.b16 %v530
  %v607 = vunpack.c.l.b16 %v531
  %v608 = vunpack.c.l.b16 %v532
  %v609 = vunpack.c.l.b16 %v533
  %v610 = vunpack.c.l.b16 %v534
  %v611 = vunpack.c.h.b16 %v531
  %v612 = vunpack.c.h.b16 %v532
  %v613 = vunpack.c.h.b16 %v533
  %v614 = vunpack.c.h.b16 %v534
  %v615 = vunpack.c.l.b16 %v535
  %v616 = vunpack.c.l.b16 %v536
  %v617 = vunpack.c.l.b16 %v537
  %v618 = vunpack.c.l.b16 %v538
  %v619 = vunpack.c.h.b16 %v535
  %v620 = vunpack.c.h.b16 %v536
  %v621 = vunpack.c.h.b16 %v537
  %v622 = vunpack.c.h.b16 %v538
  %v623 = vunpack.c.l.b16 %v539
  %v624 = vunpack.c.l.b16 %v540
  %v625 = vunpack.c.l.b16 %v541
  %v626 = vunpack.c.l.b16 %v542
  %v627 = vunpack.c.h.b16 %v539
  %v628 = vunpack.c.h.b16 %v540
  %v629 = vunpack.c.h.b16 %v541
  %v630 = vunpack.c.h.b16 %v542
  %v631 = vunpack.c.l.b16 %v543
  %v632 = vunpack.c.l.b16 %v544
  %v633 = vunpack.c.l.b16 %v545
  %v634 = vunpack.c.l.b16 %v546
  %v635 = vunpack.c.h.b16 %v543
  %v636 = vunpack.c.h.b16 %v544
  %v637 = vunpack.c.h.b16 %v545
  %v638 = vunpack.c.h.b16 %v546
  %v639 = vunpack.c.l.b16 %v547
  %v640 = vunpack.c.l.b16 %v548
  %v641 = vunpack.c.l.b16 %v549
  %v642 = vunpack.c.l.b16 %v550
  %v643 = vunpack.c.h.b16 %v547
  %v644 = vunpack.c.h.b16 %v548
  %v645 = vunpack.c.h.b16 %v549
  %v646 = vunpack.c.h.b16 %v550
  %v647 = vpack.c.b16 %v584, %v583
  %v648 = vpack.c.b16 %v586, %v585
  %v649 = vpack.c.b16 %v588, %v587
  %v650 = vpack.c.b16 %v590, %v589
  %v651 = vpack.c.b16 %v592, %v591
  %v652 = vpack.c.b16 %v594, %v593
  %v653 = vpack.c.b16 %v596, %v595
  %v654 = vpack.c.b16 %v598, %v597
  %v655 = vpack.c.b16 %v600, %v599
  %v656 = vpack.c.b16 %v602, %v601
  %v657 = vpack.c.b16 %v604, %v603
  %v658 = vpack.c.b16 %v606, %v605
  %v659 = vpack.c.b16 %v608, %v607
  %v660 = vpack.c.b16 %v610, %v609
  %v661 = vpack.c.b16 %v612, %v611
  %v662 = vpack.c.b16 %v614, %v613
  %v663 = vpack.c.b16 %v616, %v615
  %v664 = vpack.c.b16 %v618, %v617
  %v665 = vpack.c.b16 %v620, %v619
  %v666 = vpack.c.b16 %v622, %v621
  %v667 = vpack.c.b16 %v624, %v623
  %v668 = vpack.c.b16 %v626, %v625
  %v669 = vpack.c.b16 %v628, %v627
  %v670 = vpack.c.b16 %v630, %v629
  %v671 = vpack.c.b16 %v632, %v631
  %v672 = vpack.c.b16 %v634, %v633
  %v673 = vpack.c.b16 %v636, %v635
  %v674 = vpack.c.b16 %v638, %v637
  %v675 = vpack.c.b16 %v640, %v639
  %v676 = vpack.c.b16 %v642, %v641
  %v677 = vpack.c.b16 %v644, %v643
  %v678 = vpack.c.b16 %v646, %v645
  %711 = vst [vmem:[%s3] sm:$0xff] %v647
  %712 = vst [vmem:[%s3 + $0x8] sm:$0xff] %v648
  %713 = vst [vmem:[%s3 + $0x10] sm:$0xff] %v649
  %714 = vst [vmem:[%s3 + $0x18] sm:$0xff] %v650
  %715 = vst [vmem:[%s3 + $0x20] sm:$0xff] %v651
  %716 = vst [vmem:[%s3 + $0x28] sm:$0xff] %v652
  %717 = vst [vmem:[%s3 + $0x30] sm:$0xff] %v653
  %718 = vst [vmem:[%s3 + $0x38] sm:$0xff] %v654
  %719 = vst [vmem:[%s3 + $0x40] sm:$0xff] %v655
  %720 = vst [vmem:[%s3 + $0x48] sm:$0xff] %v656
  %721 = vst [vmem:[%s3 + $0x50] sm:$0xff] %v657
  %722 = vst [vmem:[%s3 + $0x58] sm:$0xff] %v658
  %723 = vst [vmem:[%s3 + $0x60] sm:$0xff] %v659
  %724 = vst [vmem:[%s3 + $0x68] sm:$0xff] %v660
  %725 = vst [vmem:[%s3 + $0x70] sm:$0xff] %v661
  %726 = vst [vmem:[%s3 + $0x78] sm:$0xff] %v662
  %727 = vst [vmem:[%s3 + $0x80] sm:$0xff] %v663
  %728 = vst [vmem:[%s3 + $0x88] sm:$0xff] %v664
  %729 = vst [vmem:[%s3 + $0x90] sm:$0xff] %v665
  %730 = vst [vmem:[%s3 + $0x98] sm:$0xff] %v666
  %731 = vst [vmem:[%s3 + $0xa0] sm:$0xff] %v667
  %732 = vst [vmem:[%s3 + $0xa8] sm:$0xff] %v668
  %733 = vst [vmem:[%s3 + $0xb0] sm:$0xff] %v669
  %734 = vst [vmem:[%s3 + $0xb8] sm:$0xff] %v670
  %735 = vst [vmem:[%s3 + $0xc0] sm:$0xff] %v671
  %736 = vst [vmem:[%s3 + $0xc8] sm:$0xff] %v672
  %737 = vst [vmem:[%s3 + $0xd0] sm:$0xff] %v673
  %738 = vst [vmem:[%s3 + $0xd8] sm:$0xff] %v674
  %739 = vst [vmem:[%s3 + $0xe0] sm:$0xff] %v675
  %740 = vst [vmem:[%s3 + $0xe8] sm:$0xff] %v676
  %741 = vst [vmem:[%s3 + $0xf0] sm:$0xff] %v677
  %742 = vst [vmem:[%s3 + $0xf8] sm:$0xff] %v678
  // Predicated region
  $region14: #{lstm_decoder_forward.6} parent=0 // pred_check
    _
  $region15: #{lstm_decoder_forward.6} parent=0 // pred_check_branch
    %744 = sbr.rel (0) target = $region17
  $region16: #{lstm_decoder_forward.6} parent=0 // pred_region
    _
  $region17: #{lstm_decoder_forward.6} parent=0 // pred_fallthru
    _
  // Predicated region
  $region18: #{lstm_decoder_forward.6} parent=0 // pred_check
    _
  $region19: #{lstm_decoder_forward.6} parent=0 // pred_check_branch
    %746 = sbr.rel (0) target = $region21
  $region20: #{lstm_decoder_forward.6} parent=0 // pred_region
    _
  $region21: #{lstm_decoder_forward.6} parent=0 // pred_fallthru
    _

// kernel: lstm_decoder_forward.7
$region0: #{lstm_decoder_forward.7}
  #allocation0 [shape = 'u32[]', space=smem, size = 0x4, offset = 0x4, fixed_abs, tag = 'smem constant byte address 0x4 - core index']
  #allocation1 [shape = 'u32[144,128]{1,0:T(1,128)}', space=vmem, size = 0x12000, scoped, tag = 'internal scratch']
  #allocation2 [shape = 'f32[16,128]{1,0:T(8,128)}', space=vmem, size = 0x2000, scoped, tag = 'scratch operand']
  #allocation3 [shape = 'f32[16,128]{1,0:T(8,128)}', space=vmem, size = 0x2000, scoped, tag = 'scratch operand']
  %s0 = inlined_call_operand.vmem [shape: bf16[8,16,512], index: 0, kind: input, shape index: {}]
  %s1 = inlined_call_operand.vmem [shape: bf16[128,512], index: 1, kind: input, shape index: {}]
  %s2 = inlined_call_operand.vmem [shape: bf16[8,16,128], index: 2, kind: output, shape index: {}]
  %s3 = sld [smem:[#allocation0]]
  $region22: #{lstm_decoder_forward.7} parent=0
    _
  %s5 = ssub.s32 1, %s3
  %s6 = scalar_select 0, %s5, %s3
  // Predicated region
  $region2: #{lstm_decoder_forward.7} parent=0 // pred_check
    _
  $region3: #{lstm_decoder_forward.7} parent=0 // pred_check_branch
    %8 = sbr.rel (0) target = $region5
  $region4: #{lstm_decoder_forward.7} parent=0 // pred_region
    _
  $region5: #{lstm_decoder_forward.7} parent=0 // pred_fallthru
    _
  // Predicated region
  $region6: #{lstm_decoder_forward.7} parent=0 // pred_check
    _
  $region7: #{lstm_decoder_forward.7} parent=0 // pred_check_branch
    %10 = sbr.rel (0) target = $region9
  $region8: #{lstm_decoder_forward.7} parent=0 // pred_region
    _
  $region9: #{lstm_decoder_forward.7} parent=0 // pred_fallthru
    _
  %p12 = scmp.eq.s32.totalorder 0, 0
  // Predicated region
  $region10: #{lstm_decoder_forward.7} parent=0 // pred_check
    %p13 = pneg %p12
  $region11: #{lstm_decoder_forward.7} parent=0 // pred_check_branch
    %15 = sbr.rel (%p13) target = $region13
  $region12: #{lstm_decoder_forward.7} parent=0 // pred_region
    %16 = vst [vmem:[#allocation2] sm:$0xff] 0.0
    %17 = vst [vmem:[#allocation2 + $0x8] sm:$0xff] 0.0
    %18 = vst [vmem:[#allocation3] sm:$0xff] 0.0
    %19 = vst [vmem:[#allocation3 + $0x8] sm:$0xff] 0.0
  $region13: #{lstm_decoder_forward.7} parent=0 // pred_fallthru
    _
  %v20 = vld [vmem:[#allocation2] sm:$0xff]
  %v21 = vld [vmem:[#allocation2 + $0x8] sm:$0xff]
  %v22 = vld [vmem:[#allocation3] sm:$0xff]
  %v23 = vld [vmem:[#allocation3 + $0x8] sm:$0xff]
  %v24 = vld [vmem:[%s0] sm:$0xff]
  %v25 = vld [vmem:[%s0 + $0x8] sm:$0xff]
  %v26 = vld [vmem:[%s0 + $0x10] sm:$0xff]
  %v27 = vld [vmem:[%s0 + $0x18] sm:$0xff]
  %v28 = vunpack.c.l.bf16 %v24
  %v29 = vunpack.c.h.bf16 %v24
  %v30 = vunpack.c.l.bf16 %v25
  %v31 = vunpack.c.h.bf16 %v25
  %v32 = vunpack.c.l.bf16 %v26
  %v33 = vunpack.c.h.bf16 %v26
  %v34 = vunpack.c.l.bf16 %v27
  %v35 = vunpack.c.h.bf16 %v27
  %v36 = vpack.c.bf16 %v21, %v20
  %v37 = vld [vmem:[%s1] sm:$0xff]
  %v38 = vld [vmem:[%s1 + $0x8] sm:$0xff]
  %v39 = vld [vmem:[%s1 + $0x10] sm:$0xff]
  %v40 = vld [vmem:[%s1 + $0x18] sm:$0xff]
  %v41 = vld [vmem:[%s1 + $0x20] sm:$0xff]
  %v42 = vld [vmem:[%s1 + $0x28] sm:$0xff]
  %v43 = vld [vmem:[%s1 + $0x30] sm:$0xff]
  %v44 = vld [vmem:[%s1 + $0x38] sm:$0xff]
  %v45 = vld [vmem:[%s1 + $0x40] sm:$0xff]
  %v46 = vld [vmem:[%s1 + $0x48] sm:$0xff]
  %v47 = vld [vmem:[%s1 + $0x50] sm:$0xff]
  %v48 = vld [vmem:[%s1 + $0x58] sm:$0xff]
  %v49 = vld [vmem:[%s1 + $0x60] sm:$0xff]
  %v50 = vld [vmem:[%s1 + $0x68] sm:$0xff]
  %v51 = vld [vmem:[%s1 + $0x70] sm:$0xff]
  %v52 = vld [vmem:[%s1 + $0x78] sm:$0xff]
  %v53 = vld [vmem:[%s1 + $0x80] sm:$0xff]
  %v54 = vld [vmem:[%s1 + $0x88] sm:$0xff]
  %v55 = vld [vmem:[%s1 + $0x90] sm:$0xff]
  %v56 = vld [vmem:[%s1 + $0x98] sm:$0xff]
  %v57 = vld [vmem:[%s1 + $0xa0] sm:$0xff]
  %v58 = vld [vmem:[%s1 + $0xa8] sm:$0xff]
  %v59 = vld [vmem:[%s1 + $0xb0] sm:$0xff]
  %v60 = vld [vmem:[%s1 + $0xb8] sm:$0xff]
  %v61 = vld [vmem:[%s1 + $0xc0] sm:$0xff]
  %v62 = vld [vmem:[%s1 + $0xc8] sm:$0xff]
  %v63 = vld [vmem:[%s1 + $0xd0] sm:$0xff]
  %v64 = vld [vmem:[%s1 + $0xd8] sm:$0xff]
  %v65 = vld [vmem:[%s1 + $0xe0] sm:$0xff]
  %v66 = vld [vmem:[%s1 + $0xe8] sm:$0xff]
  %v67 = vld [vmem:[%s1 + $0xf0] sm:$0xff]
  %v68 = vld [vmem:[%s1 + $0xf8] sm:$0xff]
  %v101 = vunpack.c.l.b16 %v37
  %v102 = vunpack.c.h.b16 %v37
  %v103 = vunpack.c.l.b16 %v38
  %v104 = vunpack.c.h.b16 %v38
  %v105 = vunpack.c.l.b16 %v39
  %v106 = vunpack.c.h.b16 %v39
  %v107 = vunpack.c.l.b16 %v40
  %v108 = vunpack.c.h.b16 %v40
  %v109 = vunpack.c.l.b16 %v41
  %v110 = vunpack.c.h.b16 %v41
  %v111 = vunpack.c.l.b16 %v42
  %v112 = vunpack.c.h.b16 %v42
  %v113 = vunpack.c.l.b16 %v43
  %v114 = vunpack.c.h.b16 %v43
  %v115 = vunpack.c.l.b16 %v44
  %v116 = vunpack.c.h.b16 %v44
  %v117 = vunpack.c.l.b16 %v45
  %v118 = vunpack.c.h.b16 %v45
  %v119 = vunpack.c.l.b16 %v46
  %v120 = vunpack.c.h.b16 %v46
  %v121 = vunpack.c.l.b16 %v47
  %v122 = vunpack.c.h.b16 %v47
  %v123 = vunpack.c.l.b16 %v48
  %v124 = vunpack.c.h.b16 %v48
  %v125 = vunpack.c.l.b16 %v49
  %v126 = vunpack.c.h.b16 %v49
  %v127 = vunpack.c.l.b16 %v50
  %v128 = vunpack.c.h.b16 %v50
  %v129 = vunpack.c.l.b16 %v51
  %v130 = vunpack.c.h.b16 %v51
  %v131 = vunpack.c.l.b16 %v52
  %v132 = vunpack.c.h.b16 %v52
  %v133 = vunpack.c.l.b16 %v53
  %v134 = vunpack.c.h.b16 %v53
  %v135 = vunpack.c.l.b16 %v54
  %v136 = vunpack.c.h.b16 %v54
  %v137 = vunpack.c.l.b16 %v55
  %v138 = vunpack.c.h.b16 %v55
  %v139 = vunpack.c.l.b16 %v56
  %v140 = vunpack.c.h.b16 %v56
  %v141 = vunpack.c.l.b16 %v57
  %v142 = vunpack.c.h.b16 %v57
  %v143 = vunpack.c.l.b16 %v58
  %v144 = vunpack.c.h.b16 %v58
  %v145 = vunpack.c.l.b16 %v59
  %v146 = vunpack.c.h.b16 %v59
  %v147 = vunpack.c.l.b16 %v60
  %v148 = vunpack.c.h.b16 %v60
  %v149 = vunpack.c.l.b16 %v61
  %v150 = vunpack.c.h.b16 %v61
  %v151 = vunpack.c.l.b16 %v62
  %v152 = vunpack.c.h.b16 %v62
  %v153 = vunpack.c.l.b16 %v63
  %v154 = vunpack.c.h.b16 %v63
  %v155 = vunpack.c.l.b16 %v64
  %v156 = vunpack.c.h.b16 %v64
  %v157 = vunpack.c.l.b16 %v65
  %v158 = vunpack.c.h.b16 %v65
  %v159 = vunpack.c.l.b16 %v66
  %v160 = vunpack.c.h.b16 %v66
  %v161 = vunpack.c.l.b16 %v67
  %v162 = vunpack.c.h.b16 %v67
  %v163 = vunpack.c.l.b16 %v68
  %v164 = vunpack.c.h.b16 %v68
  %v165 = vpack.c.b16 %v105, %v101
  %v166 = vpack.c.b16 %v106, %v102
  %v167 = vpack.c.b16 %v107, %v103
  %v168 = vpack.c.b16 %v108, %v104
  %v169 = vpack.c.b16 %v113, %v109
  %v170 = vpack.c.b16 %v114, %v110
  %v171 = vpack.c.b16 %v115, %v111
  %v172 = vpack.c.b16 %v116, %v112
  %v173 = vpack.c.b16 %v121, %v117
  %v174 = vpack.c.b16 %v122, %v118
  %v175 = vpack.c.b16 %v123, %v119
  %v176 = vpack.c.b16 %v124, %v120
  %v177 = vpack.c.b16 %v129, %v125
  %v178 = vpack.c.b16 %v130, %v126
  %v179 = vpack.c.b16 %v131, %v127
  %v180 = vpack.c.b16 %v132, %v128
  %v181 = vpack.c.b16 %v137, %v133
  %v182 = vpack.c.b16 %v138, %v134
  %v183 = vpack.c.b16 %v139, %v135
  %v184 = vpack.c.b16 %v140, %v136
  %v185 = vpack.c.b16 %v145, %v141
  %v186 = vpack.c.b16 %v146, %v142
  %v187 = vpack.c.b16 %v147, %v143
  %v188 = vpack.c.b16 %v148, %v144
  %v189 = vpack.c.b16 %v153, %v149
  %v190 = vpack.c.b16 %v154, %v150
  %v191 = vpack.c.b16 %v155, %v151
  %v192 = vpack.c.b16 %v156, %v152
  %v193 = vpack.c.b16 %v161, %v157
  %v194 = vpack.c.b16 %v162, %v158
  %v195 = vpack.c.b16 %v163, %v159
  %v196 = vpack.c.b16 %v164, %v160
  %229 = vmatprep.subr.bf16.mxu0 %v166
  %230 = vmatpush1.bf16.msra.mxu0 %v165
  %231 = vmatprep.subr.bf16.mxu0 %v170
  %232 = vmatpush1.bf16.msra.mxu0 %v169
  %233 = vmatprep.subr.bf16.mxu0 %v174
  %234 = vmatpush1.bf16.msra.mxu0 %v173
  %235 = vmatprep.subr.bf16.mxu0 %v178
  %236 = vmatpush1.bf16.msra.mxu0 %v177
  %237 = vmatprep.subr.bf16.mxu0 %v182
  %238 = vmatpush1.bf16.msra.mxu0 %v181
  %239 = vmatprep.subr.bf16.mxu0 %v186
  %240 = vmatpush1.bf16.msra.mxu0 %v185
  %241 = vmatprep.subr.bf16.mxu0 %v190
  %242 = vmatpush1.bf16.msra.mxu0 %v189
  %243 = vmatprep.subr.bf16.mxu0 %v194
  %244 = vmatpush1.bf16.msra.mxu0 %v193
  %245 = vmatprep.subr.bf16.mxu0 0
  %246 = vmatpush1.bf16.msra.mxu0 0
  %247 = vmatprep.subr.bf16.mxu0 0
  %248 = vmatpush1.bf16.msra.mxu0 0
  %249 = vmatprep.subr.bf16.mxu0 0
  %250 = vmatpush1.bf16.msra.mxu0 0
  %251 = vmatprep.subr.bf16.mxu0 0
  %252 = vmatpush1.bf16.msra.mxu0 0
  %253 = vmatprep.subr.bf16.mxu0 0
  %254 = vmatpush1.bf16.msra.mxu0 0
  %255 = vmatprep.subr.bf16.mxu0 0
  %256 = vmatpush1.bf16.msra.mxu0 0
  %257 = vmatprep.subr.bf16.mxu0 0
  %258 = vmatpush1.bf16.msra.mxu0 0
  %259 = vmatprep.subr.bf16.mxu0 0
  %260 = vmatpush1.bf16.msra.mxu0 0
  %261 = vmatprep.mubr.bf16.mxu0 0
  %262 = vmatmul.mubr.bf16.gmra.mrb[0].mxu0 %v36
  %v263 = vpop.f32.mrb[0].mxu0
  %v264 = vadd.f32 0.0, %v263
  %v265 = vpop.f32.mrb[0].mxu0
  %v266 = vadd.f32 0.0, %v265
  %v267 = vpop.f32.mrb[0].mxu0
  %v268 = vadd.f32 0.0, %v267
  %v269 = vpop.f32.mrb[0].mxu0
  %v270 = vadd.f32 0.0, %v269
  %271 = vdwg.mxu0
  %272 = vmatprep.subr.bf16.mxu0 %v168
  %273 = vmatpush1.bf16.msra.mxu0 %v167
  %274 = vmatprep.subr.bf16.mxu0 %v172
  %275 = vmatpush1.bf16.msra.mxu0 %v171
  %276 = vmatprep.subr.bf16.mxu0 %v176
  %277 = vmatpush1.bf16.msra.mxu0 %v175
  %278 = vmatprep.subr.bf16.mxu0 %v180
  %279 = vmatpush1.bf16.msra.mxu0 %v179
  %280 = vmatprep.subr.bf16.mxu0 %v184
  %281 = vmatpush1.bf16.msra.mxu0 %v183
  %282 = vmatprep.subr.bf16.mxu0 %v188
  %283 = vmatpush1.bf16.msra.mxu0 %v187
  %284 = vmatprep.subr.bf16.mxu0 %v192
  %285 = vmatpush1.bf16.msra.mxu0 %v191
  %286 = vmatprep.subr.bf16.mxu0 %v196
  %287 = vmatpush1.bf16.msra.mxu0 %v195
  %288 = vmatprep.subr.bf16.mxu0 0
  %289 = vmatpush1.bf16.msra.mxu0 0
  %290 = vmatprep.subr.bf16.mxu0 0
  %291 = vmatpush1.bf16.msra.mxu0 0
  %292 = vmatprep.subr.bf16.mxu0 0
  %293 = vmatpush1.bf16.msra.mxu0 0
  %294 = vmatprep.subr.bf16.mxu0 0
  %295 = vmatpush1.bf16.msra.mxu0 0
  %296 = vmatprep.subr.bf16.mxu0 0
  %297 = vmatpush1.bf16.msra.mxu0 0
  %298 = vmatprep.subr.bf16.mxu0 0
  %299 = vmatpush1.bf16.msra.mxu0 0
  %300 = vmatprep.subr.bf16.mxu0 0
  %301 = vmatpush1.bf16.msra.mxu0 0
  %302 = vmatprep.subr.bf16.mxu0 0
  %303 = vmatpush1.bf16.msra.mxu0 0
  %304 = vmatprep.mubr.bf16.mxu0 0
  %305 = vmatmul.mubr.bf16.gmra.mrb[0].mxu0 %v36
  %v306 = vpop.f32.mrb[0].mxu0
  %v307 = vadd.f32 0.0, %v306
  %v308 = vpop.f32.mrb[0].mxu0
  %v309 = vadd.f32 0.0, %v308
  %v310 = vpop.f32.mrb[0].mxu0
  %v311 = vadd.f32 0.0, %v310
  %v312 = vpop.f32.mrb[0].mxu0
  %v313 = vadd.f32 0.0, %v312
  %314 = vdwg.mxu0
  %v315 = vadd.f32 %v28, %v264
  %v316 = vadd.f32 %v29, %v266
  %v317 = vadd.f32 %v30, %v307
  %v318 = vadd.f32 %v31, %v309
  %v319 = vadd.f32 %v32, %v268
  %v320 = vadd.f32 %v33, %v270
  %v321 = vadd.f32 %v34, %v311
  %v322 = vadd.f32 %v35, %v313
  %v323 = vxor.u32 %v315, 2147483648
  %v324 = vxor.u32 %v319, 2147483648
  %v325 = vmul.f32 %v323, 1.442695
  %v326 = vpow.pop %v325
  %v327 = vmul.f32 %v324, 1.442695
  %v328 = vpow.pop %v327
  %v329 = vadd.f32 %v326, 1.0
  %v330 = vadd.f32 %v328, 1.0
  %v331 = vrcp.pop %v329
  %v332 = vmul.f32 1.0, %v331
  %v333 = vrcp.pop %v330
  %v334 = vmul.f32 1.0, %v333
  %v335 = vxor.u32 %v316, 2147483648
  %v336 = vxor.u32 %v320, 2147483648
  %v337 = vmul.f32 %v335, 1.442695
  %v338 = vpow.pop %v337
  %v339 = vmul.f32 %v336, 1.442695
  %v340 = vpow.pop %v339
  %v341 = vadd.f32 %v338, 1.0
  %v342 = vadd.f32 %v340, 1.0
  %v343 = vrcp.pop %v341
  %v344 = vmul.f32 1.0, %v343
  %v345 = vrcp.pop %v342
  %v346 = vmul.f32 1.0, %v345
  %v347 = vtanh.pop %v317
  %v348 = vtanh.pop %v321
  %v349 = vxor.u32 %v318, 2147483648
  %v350 = vxor.u32 %v322, 2147483648
  %v351 = vmul.f32 %v349, 1.442695
  %v352 = vpow.pop %v351
  %v353 = vmul.f32 %v350, 1.442695
  %v354 = vpow.pop %v353
  %v355 = vadd.f32 %v352, 1.0
  %v356 = vadd.f32 %v354, 1.0
  %v357 = vrcp.pop %v355
  %v358 = vmul.f32 1.0, %v357
  %v359 = vrcp.pop %v356
  %v360 = vmul.f32 1.0, %v359
  %v361 = vmul.f32 %v344, %v22
  %v362 = vmul.f32 %v346, %v23
  %v363 = vmul.f32 %v332, %v347
  %v364 = vmul.f32 %v334, %v348
  %v365 = vadd.f32 %v361, %v363
  %v366 = vadd.f32 %v362, %v364
  %v367 = vtanh.pop %v365
  %v368 = vtanh.pop %v366
  %v369 = vmul.f32 %v358, %v367
  %v370 = vmul.f32 %v360, %v368
  %v371 = vpack.c.bf16 %v370, %v369
  %v373 = vunpack.c.l.b16 %v371
  %v374 = vunpack.c.h.b16 %v371
  %v375 = vpack.c.b16 %v373, %v373
  %v376 = vpack.c.b16 %v374, %v374
  %379 = vst [vmem:[%s2] sm:$0xf] %v375
  %380 = vst [vmem:[%s2 + $0x4] sm:$0xf] %v376
  %s381 = scalar_lea.vmem %s0, 32
  %v382 = vld [vmem:[%s381] sm:$0xff]
  %v383 = vld [vmem:[%s381 + $0x8] sm:$0xff]
  %v384 = vld [vmem:[%s381 + $0x10] sm:$0xff]
  %v385 = vld [vmem:[%s381 + $0x18] sm:$0xff]
  %v386 = vunpack.c.l.bf16 %v382
  %v387 = vunpack.c.h.bf16 %v382
  %v388 = vunpack.c.l.bf16 %v383
  %v389 = vunpack.c.h.bf16 %v383
  %v390 = vunpack.c.l.bf16 %v384
  %v391 = vunpack.c.h.bf16 %v384
  %v392 = vunpack.c.l.bf16 %v385
  %v393 = vunpack.c.h.bf16 %v385
  %v394 = vld [vmem:[%s1] sm:$0xff]
  %v395 = vld [vmem:[%s1 + $0x8] sm:$0xff]
  %v396 = vld [vmem:[%s1 + $0x10] sm:$0xff]
  %v397 = vld [vmem:[%s1 + $0x18] sm:$0xff]
  %v398 = vld [vmem:[%s1 + $0x20] sm:$0xff]
  %v399 = vld [vmem:[%s1 + $0x28] sm:$0xff]
  %v400 = vld [vmem:[%s1 + $0x30] sm:$0xff]
  %v401 = vld [vmem:[%s1 + $0x38] sm:$0xff]
  %v402 = vld [vmem:[%s1 + $0x40] sm:$0xff]
  %v403 = vld [vmem:[%s1 + $0x48] sm:$0xff]
  %v404 = vld [vmem:[%s1 + $0x50] sm:$0xff]
  %v405 = vld [vmem:[%s1 + $0x58] sm:$0xff]
  %v406 = vld [vmem:[%s1 + $0x60] sm:$0xff]
  %v407 = vld [vmem:[%s1 + $0x68] sm:$0xff]
  %v408 = vld [vmem:[%s1 + $0x70] sm:$0xff]
  %v409 = vld [vmem:[%s1 + $0x78] sm:$0xff]
  %v410 = vld [vmem:[%s1 + $0x80] sm:$0xff]
  %v411 = vld [vmem:[%s1 + $0x88] sm:$0xff]
  %v412 = vld [vmem:[%s1 + $0x90] sm:$0xff]
  %v413 = vld [vmem:[%s1 + $0x98] sm:$0xff]
  %v414 = vld [vmem:[%s1 + $0xa0] sm:$0xff]
  %v415 = vld [vmem:[%s1 + $0xa8] sm:$0xff]
  %v416 = vld [vmem:[%s1 + $0xb0] sm:$0xff]
  %v417 = vld [vmem:[%s1 + $0xb8] sm:$0xff]
  %v418 = vld [vmem:[%s1 + $0xc0] sm:$0xff]
  %v419 = vld [vmem:[%s1 + $0xc8] sm:$0xff]
  %v420 = vld [vmem:[%s1 + $0xd0] sm:$0xff]
  %v421 = vld [vmem:[%s1 + $0xd8] sm:$0xff]
  %v422 = vld [vmem:[%s1 + $0xe0] sm:$0xff]
  %v423 = vld [vmem:[%s1 + $0xe8] sm:$0xff]
  %v424 = vld [vmem:[%s1 + $0xf0] sm:$0xff]
  %v425 = vld [vmem:[%s1 + $0xf8] sm:$0xff]
  %v458 = vunpack.c.l.b16 %v394
  %v459 = vunpack.c.h.b16 %v394
  %v460 = vunpack.c.l.b16 %v395
  %v461 = vunpack.c.h.b16 %v395
  %v462 = vunpack.c.l.b16 %v396
  %v463 = vunpack.c.h.b16 %v396
  %v464 = vunpack.c.l.b16 %v397
  %v465 = vunpack.c.h.b16 %v397
  %v466 = vunpack.c.l.b16 %v398
  %v467 = vunpack.c.h.b16 %v398
  %v468 = vunpack.c.l.b16 %v399
  %v469 = vunpack.c.h.b16 %v399
  %v470 = vunpack.c.l.b16 %v400
  %v471 = vunpack.c.h.b16 %v400
  %v472 = vunpack.c.l.b16 %v401
  %v473 = vunpack.c.h.b16 %v401
  %v474 = vunpack.c.l.b16 %v402
  %v475 = vunpack.c.h.b16 %v402
  %v476 = vunpack.c.l.b16 %v403
  %v477 = vunpack.c.h.b16 %v403
  %v478 = vunpack.c.l.b16 %v404
  %v479 = vunpack.c.h.b16 %v404
  %v480 = vunpack.c.l.b16 %v405
  %v481 = vunpack.c.h.b16 %v405
  %v482 = vunpack.c.l.b16 %v406
  %v483 = vunpack.c.h.b16 %v406
  %v484 = vunpack.c.l.b16 %v407
  %v485 = vunpack.c.h.b16 %v407
  %v486 = vunpack.c.l.b16 %v408
  %v487 = vunpack.c.h.b16 %v408
  %v488 = vunpack.c.l.b16 %v409
  %v489 = vunpack.c.h.b16 %v409
  %v490 = vunpack.c.l.b16 %v410
  %v491 = vunpack.c.h.b16 %v410
  %v492 = vunpack.c.l.b16 %v411
  %v493 = vunpack.c.h.b16 %v411
  %v494 = vunpack.c.l.b16 %v412
  %v495 = vunpack.c.h.b16 %v412
  %v496 = vunpack.c.l.b16 %v413
  %v497 = vunpack.c.h.b16 %v413
  %v498 = vunpack.c.l.b16 %v414
  %v499 = vunpack.c.h.b16 %v414
  %v500 = vunpack.c.l.b16 %v415
  %v501 = vunpack.c.h.b16 %v415
  %v502 = vunpack.c.l.b16 %v416
  %v503 = vunpack.c.h.b16 %v416
  %v504 = vunpack.c.l.b16 %v417
  %v505 = vunpack.c.h.b16 %v417
  %v506 = vunpack.c.l.b16 %v418
  %v507 = vunpack.c.h.b16 %v418
  %v508 = vunpack.c.l.b16 %v419
  %v509 = vunpack.c.h.b16 %v419
  %v510 = vunpack.c.l.b16 %v420
  %v511 = vunpack.c.h.b16 %v420
  %v512 = vunpack.c.l.b16 %v421
  %v513 = vunpack.c.h.b16 %v421
  %v514 = vunpack.c.l.b16 %v422
  %v515 = vunpack.c.h.b16 %v422
  %v516 = vunpack.c.l.b16 %v423
  %v517 = vunpack.c.h.b16 %v423
  %v518 = vunpack.c.l.b16 %v424
  %v519 = vunpack.c.h.b16 %v424
  %v520 = vunpack.c.l.b16 %v425
  %v521 = vunpack.c.h.b16 %v425
  %v522 = vpack.c.b16 %v462, %v458
  %v523 = vpack.c.b16 %v463, %v459
  %v524 = vpack.c.b16 %v464, %v460
  %v525 = vpack.c.b16 %v465, %v461
  %v526 = vpack.c.b16 %v470, %v466
  %v527 = vpack.c.b16 %v471, %v467
  %v528 = vpack.c.b16 %v472, %v468
  %v529 = vpack.c.b16 %v473, %v469
  %v530 = vpack.c.b16 %v478, %v474
  %v531 = vpack.c.b16 %v479, %v475
  %v532 = vpack.c.b16 %v480, %v476
  %v533 = vpack.c.b16 %v481, %v477
  %v534 = vpack.c.b16 %v486, %v482
  %v535 = vpack.c.b16 %v487, %v483
  %v536 = vpack.c.b16 %v488, %v484
  %v537 = vpack.c.b16 %v489, %v485
  %v538 = vpack.c.b16 %v494, %v490
  %v539 = vpack.c.b16 %v495, %v491
  %v540 = vpack.c.b16 %v496, %v492
  %v541 = vpack.c.b16 %v497, %v493
  %v542 = vpack.c.b16 %v502, %v498
  %v543 = vpack.c.b16 %v503, %v499
  %v544 = vpack.c.b16 %v504, %v500
  %v545 = vpack.c.b16 %v505, %v501
  %v546 = vpack.c.b16 %v510, %v506
  %v547 = vpack.c.b16 %v511, %v507
  %v548 = vpack.c.b16 %v512, %v508
  %v549 = vpack.c.b16 %v513, %v509
  %v550 = vpack.c.b16 %v518, %v514
  %v551 = vpack.c.b16 %v519, %v515
  %v552 = vpack.c.b16 %v520, %v516
  %v553 = vpack.c.b16 %v521, %v517
  %586 = vmatprep.subr.bf16.mxu0 %v523
  %587 = vmatpush1.bf16.msra.mxu0 %v522
  %588 = vmatprep.subr.bf16.mxu0 %v527
  %589 = vmatpush1.bf16.msra.mxu0 %v526
  %590 = vmatprep.subr.bf16.mxu0 %v531
  %591 = vmatpush1.bf16.msra.mxu0 %v530
  %592 = vmatprep.subr.bf16.mxu0 %v535
  %593 = vmatpush1.bf16.msra.mxu0 %v534
  %594 = vmatprep.subr.bf16.mxu0 %v539
  %595 = vmatpush1.bf16.msra.mxu0 %v538
  %596 = vmatprep.subr.bf16.mxu0 %v543
  %597 = vmatpush1.bf16.msra.mxu0 %v542
  %598 = vmatprep.subr.bf16.mxu0 %v547
  %599 = vmatpush1.bf16.msra.mxu0 %v546
  %600 = vmatprep.subr.bf16.mxu0 %v551
  %601 = vmatpush1.bf16.msra.mxu0 %v550
  %602 = vmatprep.subr.bf16.mxu0 0
  %603 = vmatpush1.bf16.msra.mxu0 0
  %604 = vmatprep.subr.bf16.mxu0 0
  %605 = vmatpush1.bf16.msra.mxu0 0
  %606 = vmatprep.subr.bf16.mxu0 0
  %607 = vmatpush1.bf16.msra.mxu0 0
  %608 = vmatprep.subr.bf16.mxu0 0
  %609 = vmatpush1.bf16.msra.mxu0 0
  %610 = vmatprep.subr.bf16.mxu0 0
  %611 = vmatpush1.bf16.msra.mxu0 0
  %612 = vmatprep.subr.bf16.mxu0 0
  %613 = vmatpush1.bf16.msra.mxu0 0
  %614 = vmatprep.subr.bf16.mxu0 0
  %615 = vmatpush1.bf16.msra.mxu0 0
  %616 = vmatprep.subr.bf16.mxu0 0
  %617 = vmatpush1.bf16.msra.mxu0 0
  %618 = vmatprep.mubr.bf16.mxu0 0
  %619 = vmatmul.mubr.bf16.gmra.mrb[0].mxu0 %v371
  %v620 = vpop.f32.mrb[0].mxu0
  %v621 = vadd.f32 0.0, %v620
  %v622 = vpop.f32.mrb[0].mxu0
  %v623 = vadd.f32 0.0, %v622
  %v624 = vpop.f32.mrb[0].mxu0
  %v625 = vadd.f32 0.0, %v624
  %v626 = vpop.f32.mrb[0].mxu0
  %v627 = vadd.f32 0.0, %v626
  %628 = vdwg.mxu0
  %629 = vmatprep.subr.bf16.mxu0 %v525
  %630 = vmatpush1.bf16.msra.mxu0 %v524
  %631 = vmatprep.subr.bf16.mxu0 %v529
  %632 = vmatpush1.bf16.msra.mxu0 %v528
  %633 = vmatprep.subr.bf16.mxu0 %v533
  %634 = vmatpush1.bf16.msra.mxu0 %v532
  %635 = vmatprep.subr.bf16.mxu0 %v537
  %636 = vmatpush1.bf16.msra.mxu0 %v536
  %637 = vmatprep.subr.bf16.mxu0 %v541
  %638 = vmatpush1.bf16.msra.mxu0 %v540
  %639 = vmatprep.subr.bf16.mxu0 %v545
  %640 = vmatpush1.bf16.msra.mxu0 %v544
  %641 = vmatprep.subr.bf16.mxu0 %v549
  %642 = vmatpush1.bf16.msra.mxu0 %v548
  %643 = vmatprep.subr.bf16.mxu0 %v553
  %644 = vmatpush1.bf16.msra.mxu0 %v552
  %645 = vmatprep.subr.bf16.mxu0 0
  %646 = vmatpush1.bf16.msra.mxu0 0
  %647 = vmatprep.subr.bf16.mxu0 0
  %648 = vmatpush1.bf16.msra.mxu0 0
  %649 = vmatprep.subr.bf16.mxu0 0
  %650 = vmatpush1.bf16.msra.mxu0 0
  %651 = vmatprep.subr.bf16.mxu0 0
  %652 = vmatpush1.bf16.msra.mxu0 0
  %653 = vmatprep.subr.bf16.mxu0 0
  %654 = vmatpush1.bf16.msra.mxu0 0
  %655 = vmatprep.subr.bf16.mxu0 0
  %656 = vmatpush1.bf16.msra.mxu0 0
  %657 = vmatprep.subr.bf16.mxu0 0
  %658 = vmatpush1.bf16.msra.mxu0 0
  %659 = vmatprep.subr.bf16.mxu0 0
  %660 = vmatpush1.bf16.msra.mxu0 0
  %661 = vmatprep.mubr.bf16.mxu0 0
  %662 = vmatmul.mubr.bf16.gmra.mrb[0].mxu0 %v371
  %v663 = vpop.f32.mrb[0].mxu0
  %v664 = vadd.f32 0.0, %v663
  %v665 = vpop.f32.mrb[0].mxu0
  %v666 = vadd.f32 0.0, %v665
  %v667 = vpop.f32.mrb[0].mxu0
  %v668 = vadd.f32 0.0, %v667
  %v669 = vpop.f32.mrb[0].mxu0
  %v670 = vadd.f32 0.0, %v669
  %671 = vdwg.mxu0
  %v672 = vadd.f32 %v386, %v621
  %v673 = vadd.f32 %v387, %v623
  %v674 = vadd.f32 %v388, %v664
  %v675 = vadd.f32 %v389, %v666
  %v676 = vadd.f32 %v390, %v625
  %v677 = vadd.f32 %v391, %v627
  %v678 = vadd.f32 %v392, %v668
  %v679 = vadd.f32 %v393, %v670
  %v680 = vxor.u32 %v672, 2147483648
  %v681 = vxor.u32 %v676, 2147483648
  %v682 = vmul.f32 %v680, 1.442695
  %v683 = vpow.pop %v682
  %v684 = vmul.f32 %v681, 1.442695
  %v685 = vpow.pop %v684
  %v686 = vadd.f32 %v683, 1.0
  %v687 = vadd.f32 %v685, 1.0
  %v688 = vrcp.pop %v686
  %v689 = vmul.f32 1.0, %v688
  %v690 = vrcp.pop %v687
  %v691 = vmul.f32 1.0, %v690
  %v692 = vxor.u32 %v673, 2147483648
  %v693 = vxor.u32 %v677, 2147483648
  %v694 = vmul.f32 %v692, 1.442695
  %v695 = vpow.pop %v694
  %v696 = vmul.f32 %v693, 1.442695
  %v697 = vpow.pop %v696
  %v698 = vadd.f32 %v695, 1.0
  %v699 = vadd.f32 %v697, 1.0
  %v700 = vrcp.pop %v698
  %v701 = vmul.f32 1.0, %v700
  %v702 = vrcp.pop %v699
  %v703 = vmul.f32 1.0, %v702
  %v704 = vtanh.pop %v674
  %v705 = vtanh.pop %v678
  %v706 = vxor.u32 %v675, 2147483648
  %v707 = vxor.u32 %v679, 2147483648
  %v708 = vmul.f32 %v706, 1.442695
  %v709 = vpow.pop %v708
  %v710 = vmul.f32 %v707, 1.442695
  %v711 = vpow.pop %v710
  %v712 = vadd.f32 %v709, 1.0
  %v713 = vadd.f32 %v711, 1.0
  %v714 = vrcp.pop %v712
  %v715 = vmul.f32 1.0, %v714
  %v716 = vrcp.pop %v713
  %v717 = vmul.f32 1.0, %v716
  %v718 = vmul.f32 %v701, %v365
  %v719 = vmul.f32 %v703, %v366
  %v720 = vmul.f32 %v689, %v704
  %v721 = vmul.f32 %v691, %v705
  %v722 = vadd.f32 %v718, %v720
  %v723 = vadd.f32 %v719, %v721
  %v724 = vtanh.pop %v722
  %v725 = vtanh.pop %v723
  %v726 = vmul.f32 %v715, %v724
  %v727 = vmul.f32 %v717, %v725
  %v728 = vpack.c.bf16 %v727, %v726
  %v730 = vunpack.c.l.b16 %v728
  %v731 = vunpack.c.h.b16 %v728
  %v732 = vpack.c.b16 %v730, %v730
  %v733 = vpack.c.b16 %v731, %v731
  %s736 = scalar_lea.vmem %s2, 8
  %737 = vst [vmem:[%s736] sm:$0xf] %v732
  %738 = vst [vmem:[%s736 + $0x4] sm:$0xf] %v733
  %s739 = scalar_lea.vmem %s0, 64
  %v740 = vld [vmem:[%s739] sm:$0xff]
  %v741 = vld [vmem:[%s739 + $0x8] sm:$0xff]
  %v742 = vld [vmem:[%s739 + $0x10] sm:$0xff]
  %v743 = vld [vmem:[%s739 + $0x18] sm:$0xff]
  %v744 = vunpack.c.l.bf16 %v740
  %v745 = vunpack.c.h.bf16 %v740
  %v746 = vunpack.c.l.bf16 %v741
  %v747 = vunpack.c.h.bf16 %v741
  %v748 = vunpack.c.l.bf16 %v742
  %v749 = vunpack.c.h.bf16 %v742
  %v750 = vunpack.c.l.bf16 %v743
  %v751 = vunpack.c.h.bf16 %v743
  %v752 = vld [vmem:[%s1] sm:$0xff]
  %v753 = vld [vmem:[%s1 + $0x8] sm:$0xff]
  %v754 = vld [vmem:[%s1 + $0x10] sm:$0xff]
  %v755 = vld [vmem:[%s1 + $0x18] sm:$0xff]
  %v756 = vld [vmem:[%s1 + $0x20] sm:$0xff]
  %v757 = vld [vmem:[%s1 + $0x28] sm:$0xff]
  %v758 = vld [vmem:[%s1 + $0x30] sm:$0xff]
  %v759 = vld [vmem:[%s1 + $0x38] sm:$0xff]
  %v760 = vld [vmem:[%s1 + $0x40] sm:$0xff]
  %v761 = vld [vmem:[%s1 + $0x48] sm:$0xff]
  %v762 = vld [vmem:[%s1 + $0x50] sm:$0xff]
  %v763 = vld [vmem:[%s1 + $0x58] sm:$0xff]
  %v764 = vld [vmem:[%s1 + $0x60] sm:$0xff]
  %v765 = vld [vmem:[%s1 + $0x68] sm:$0xff]
  %v766 = vld [vmem:[%s1 + $0x70] sm:$0xff]
  %v767 = vld [vmem:[%s1 + $0x78] sm:$0xff]
  %v768 = vld [vmem:[%s1 + $0x80] sm:$0xff]
  %v769 = vld [vmem:[%s1 + $0x88] sm:$0xff]
  %v770 = vld [vmem:[%s1 + $0x90] sm:$0xff]
  %v771 = vld [vmem:[%s1 + $0x98] sm:$0xff]
  %v772 = vld [vmem:[%s1 + $0xa0] sm:$0xff]
  %v773 = vld [vmem:[%s1 + $0xa8] sm:$0xff]
  %v774 = vld [vmem:[%s1 + $0xb0] sm:$0xff]
  %v775 = vld [vmem:[%s1 + $0xb8] sm:$0xff]
  %v776 = vld [vmem:[%s1 + $0xc0] sm:$0xff]
  %v777 = vld [vmem:[%s1 + $0xc8] sm:$0xff]
  %v778 = vld [vmem:[%s1 + $0xd0] sm:$0xff]
  %v779 = vld [vmem:[%s1 + $0xd8] sm:$0xff]
  %v780 = vld [vmem:[%s1 + $0xe0] sm:$0xff]
  %v781 = vld [vmem:[%s1 + $0xe8] sm:$0xff]
  %v782 = vld [vmem:[%s1 + $0xf0] sm:$0xff]
  %v783 = vld [vmem:[%s1 + $0xf8] sm:$0xff]
  %v816 = vunpack.c.l.b16 %v752
  %v817 = vunpack.c.h.b16 %v752
  %v818 = vunpack.c.l.b16 %v753
  %v819 = vunpack.c.h.b16 %v753
  %v820 = vunpack.c.l.b16 %v754
  %v821 = vunpack.c.h.b16 %v754
  %v822 = vunpack.c.l.b16 %v755
  %v823 = vunpack.c.h.b16 %v755
  %v824 = vunpack.c.l.b16 %v756
  %v825 = vunpack.c.h.b16 %v756
  %v826 = vunpack.c.l.b16 %v757
  %v827 = vunpack.c.h.b16 %v757
  %v828 = vunpack.c.l.b16 %v758
  %v829 = vunpack.c.h.b16 %v758
  %v830 = vunpack.c.l.b16 %v759
  %v831 = vunpack.c.h.b16 %v759
  %v832 = vunpack.c.l.b16 %v760
  %v833 = vunpack.c.h.b16 %v760
  %v834 = vunpack.c.l.b16 %v761
  %v835 = vunpack.c.h.b16 %v761
  %v836 = vunpack.c.l.b16 %v762
  %v837 = vunpack.c.h.b16 %v762
  %v838 = vunpack.c.l.b16 %v763
  %v839 = vunpack.c.h.b16 %v763
  %v840 = vunpack.c.l.b16 %v764
  %v841 = vunpack.c.h.b16 %v764
  %v842 = vunpack.c.l.b16 %v765
  %v843 = vunpack.c.h.b16 %v765
  %v844 = vunpack.c.l.b16 %v766
  %v845 = vunpack.c.h.b16 %v766
  %v846 = vunpack.c.l.b16 %v767
  %v847 = vunpack.c.h.b16 %v767
  %v848 = vunpack.c.l.b16 %v768
  %v849 = vunpack.c.h.b16 %v768
  %v850 = vunpack.c.l.b16 %v769
  %v851 = vunpack.c.h.b16 %v769
  %v852 = vunpack.c.l.b16 %v770
  %v853 = vunpack.c.h.b16 %v770
  %v854 = vunpack.c.l.b16 %v771
  %v855 = vunpack.c.h.b16 %v771
  %v856 = vunpack.c.l.b16 %v772
  %v857 = vunpack.c.h.b16 %v772
  %v858 = vunpack.c.l.b16 %v773
  %v859 = vunpack.c.h.b16 %v773
  %v860 = vunpack.c.l.b16 %v774
  %v861 = vunpack.c.h.b16 %v774
  %v862 = vunpack.c.l.b16 %v775
  %v863 = vunpack.c.h.b16 %v775
  %v864 = vunpack.c.l.b16 %v776
  %v865 = vunpack.c.h.b16 %v776
  %v866 = vunpack.c.l.b16 %v777
  %v867 = vunpack.c.h.b16 %v777
  %v868 = vunpack.c.l.b16 %v778
  %v869 = vunpack.c.h.b16 %v778
  %v870 = vunpack.c.l.b16 %v779
  %v871 = vunpack.c.h.b16 %v779
  %v872 = vunpack.c.l.b16 %v780
  %v873 = vunpack.c.h.b16 %v780
  %v874 = vunpack.c.l.b16 %v781
  %v875 = vunpack.c.h.b16 %v781
  %v876 = vunpack.c.l.b16 %v782
  %v877 = vunpack.c.h.b16 %v782
  %v878 = vunpack.c.l.b16 %v783
  %v879 = vunpack.c.h.b16 %v783
  %v880 = vpack.c.b16 %v820, %v816
  %v881 = vpack.c.b16 %v821, %v817
  %v882 = vpack.c.b16 %v822, %v818
  %v883 = vpack.c.b16 %v823, %v819
  %v884 = vpack.c.b16 %v828, %v824
  %v885 = vpack.c.b16 %v829, %v825
  %v886 = vpack.c.b16 %v830, %v826
  %v887 = vpack.c.b16 %v831, %v827
  %v888 = vpack.c.b16 %v836, %v832
  %v889 = vpack.c.b16 %v837, %v833
  %v890 = vpack.c.b16 %v838, %v834
  %v891 = vpack.c.b16 %v839, %v835
  %v892 = vpack.c.b16 %v844, %v840
  %v893 = vpack.c.b16 %v845, %v841
  %v894 = vpack.c.b16 %v846, %v842
  %v895 = vpack.c.b16 %v847, %v843
  %v896 = vpack.c.b16 %v852, %v848
  %v897 = vpack.c.b16 %v853, %v849
  %v898 = vpack.c.b16 %v854, %v850
  %v899 = vpack.c.b16 %v855, %v851
  %v900 = vpack.c.b16 %v860, %v856
  %v901 = vpack.c.b16 %v861, %v857
  %v902 = vpack.c.b16 %v862, %v858
  %v903 = vpack.c.b16 %v863, %v859
  %v904 = vpack.c.b16 %v868, %v864
  %v905 = vpack.c.b16 %v869, %v865
  %v906 = vpack.c.b16 %v870, %v866
  %v907 = vpack.c.b16 %v871, %v867
  %v908 = vpack.c.b16 %v876, %v872
  %v909 = vpack.c.b16 %v877, %v873
  %v910 = vpack.c.b16 %v878, %v874
  %v911 = vpack.c.b16 %v879, %v875
  %944 = vmatprep.subr.bf16.mxu0 %v881
  %945 = vmatpush1.bf16.msra.mxu0 %v880
  %946 = vmatprep.subr.bf16.mxu0 %v885
  %947 = vmatpush1.bf16.msra.mxu0 %v884
  %948 = vmatprep.subr.bf16.mxu0 %v889
  %949 = vmatpush1.bf16.msra.mxu0 %v888
  %950 = vmatprep.subr.bf16.mxu0 %v893
  %951 = vmatpush1.bf16.msra.mxu0 %v892
  %952 = vmatprep.subr.bf16.mxu0 %v897
  %953 = vmatpush1.bf16.msra.mxu0 %v896
  %954 = vmatprep.subr.bf16.mxu0 %v901
  %955 = vmatpush1.bf16.msra.mxu0 %v900
  %956 = vmatprep.subr.bf16.mxu0 %v905
  %957 = vmatpush1.bf16.msra.mxu0 %v904
  %958 = vmatprep.subr.bf16.mxu0 %v909
  %959 = vmatpush1.bf16.msra.mxu0 %v908
  %960 = vmatprep.subr.bf16.mxu0 0
  %961 = vmatpush1.bf16.msra.mxu0 0
  %962 = vmatprep.subr.bf16.mxu0 0
  %963 = vmatpush1.bf16.msra.mxu0 0
  %964 = vmatprep.subr.bf16.mxu0 0
  %965 = vmatpush1.bf16.msra.mxu0 0
  %966 = vmatprep.subr.bf16.mxu0 0
  %967 = vmatpush1.bf16.msra.mxu0 0
  %968 = vmatprep.subr.bf16.mxu0 0
  %969 = vmatpush1.bf16.msra.mxu0 0
  %970 = vmatprep.subr.bf16.mxu0 0
  %971 = vmatpush1.bf16.msra.mxu0 0
  %972 = vmatprep.subr.bf16.mxu0 0
  %973 = vmatpush1.bf16.msra.mxu0 0
  %974 = vmatprep.subr.bf16.mxu0 0
  %975 = vmatpush1.bf16.msra.mxu0 0
  %976 = vmatprep.mubr.bf16.mxu0 0
  %977 = vmatmul.mubr.bf16.gmra.mrb[0].mxu0 %v728
  %v978 = vpop.f32.mrb[0].mxu0
  %v979 = vadd.f32 0.0, %v978
  %v980 = vpop.f32.mrb[0].mxu0
  %v981 = vadd.f32 0.0, %v980
  %v982 = vpop.f32.mrb[0].mxu0
  %v983 = vadd.f32 0.0, %v982
  %v984 = vpop.f32.mrb[0].mxu0
  %v985 = vadd.f32 0.0, %v984
  %986 = vdwg.mxu0
  %987 = vmatprep.subr.bf16.mxu0 %v883
  %988 = vmatpush1.bf16.msra.mxu0 %v882
  %989 = vmatprep.subr.bf16.mxu0 %v887
  %990 = vmatpush1.bf16.msra.mxu0 %v886
  %991 = vmatprep.subr.bf16.mxu0 %v891
  %992 = vmatpush1.bf16.msra.mxu0 %v890
  %993 = vmatprep.subr.bf16.mxu0 %v895
  %994 = vmatpush1.bf16.msra.mxu0 %v894
  %995 = vmatprep.subr.bf16.mxu0 %v899
  %996 = vmatpush1.bf16.msra.mxu0 %v898
  %997 = vmatprep.subr.bf16.mxu0 %v903
  %998 = vmatpush1.bf16.msra.mxu0 %v902
  %999 = vmatprep.subr.bf16.mxu0 %v907
  %1000 = vmatpush1.bf16.msra.mxu0 %v906
  %1001 = vmatprep.subr.bf16.mxu0 %v911
  %1002 = vmatpush1.bf16.msra.mxu0 %v910
  %1003 = vmatprep.subr.bf16.mxu0 0
  %1004 = vmatpush1.bf16.msra.mxu0 0
  %1005 = vmatprep.subr.bf16.mxu0 0
  %1006 = vmatpush1.bf16.msra.mxu0 0
  %1007 = vmatprep.subr.bf16.mxu0 0
  %1008 = vmatpush1.bf16.msra.mxu0 0
  %1009 = vmatprep.subr.bf16.mxu0 0
  %1010 = vmatpush1.bf16.msra.mxu0 0
  %1011 = vmatprep.subr.bf16.mxu0 0
  %1012 = vmatpush1.bf16.msra.mxu0 0
  %1013 = vmatprep.subr.bf16.mxu0 0
  %1014 = vmatpush1.bf16.msra.mxu0 0
  %1015 = vmatprep.subr.bf16.mxu0 0
  %1016 = vmatpush1.bf16.msra.mxu0 0
  %1017 = vmatprep.subr.bf16.mxu0 0
  %1018 = vmatpush1.bf16.msra.mxu0 0
  %1019 = vmatprep.mubr.bf16.mxu0 0
  %1020 = vmatmul.mubr.bf16.gmra.mrb[0].mxu0 %v728
  %v1021 = vpop.f32.mrb[0].mxu0
  %v1022 = vadd.f32 0.0, %v1021
  %v1023 = vpop.f32.mrb[0].mxu0
  %v1024 = vadd.f32 0.0, %v1023
  %v1025 = vpop.f32.mrb[0].mxu0
  %v1026 = vadd.f32 0.0, %v1025
  %v1027 = vpop.f32.mrb[0].mxu0
  %v1028 = vadd.f32 0.0, %v1027
  %1029 = vdwg.mxu0
  %v1030 = vadd.f32 %v744, %v979
  %v1031 = vadd.f32 %v745, %v981
  %v1032 = vadd.f32 %v746, %v1022
  %v1033 = vadd.f32 %v747, %v1024
  %v1034 = vadd.f32 %v748, %v983
  %v1035 = vadd.f32 %v749, %v985
  %v1036 = vadd.f32 %v750, %v1026
  %v1037 = vadd.f32 %v751, %v1028
  %v1038 = vxor.u32 %v1030, 2147483648
  %v1039 = vxor.u32 %v1034, 2147483648
  %v1040 = vmul.f32 %v1038, 1.442695
  %v1041 = vpow.pop %v1040
  %v1042 = vmul.f32 %v1039, 1.442695
  %v1043 = vpow.pop %v1042
  %v1044 = vadd.f32 %v1041, 1.0
  %v1045 = vadd.f32 %v1043, 1.0
  %v1046 = vrcp.pop %v1044
  %v1047 = vmul.f32 1.0, %v1046
  %v1048 = vrcp.pop %v1045
  %v1049 = vmul.f32 1.0, %v1048
  %v1050 = vxor.u32 %v1031, 2147483648
  %v1051 = vxor.u32 %v1035, 2147483648
  %v1052 = vmul.f32 %v1050, 1.442695
  %v1053 = vpow.pop %v1052
  %v1054 = vmul.f32 %v1051, 1.442695
  %v1055 = vpow.pop %v1054
  %v1056 = vadd.f32 %v1053, 1.0
  %v1057 = vadd.f32 %v1055, 1.0
  %v1058 = vrcp.pop %v1056
  %v1059 = vmul.f32 1.0, %v1058
  %v1060 = vrcp.pop %v1057
  %v1061 = vmul.f32 1.0, %v1060
  %v1062 = vtanh.pop %v1032
  %v1063 = vtanh.pop %v1036
  %v1064 = vxor.u32 %v1033, 2147483648
  %v1065 = vxor.u32 %v1037, 2147483648
  %v1066 = vmul.f32 %v1064, 1.442695
  %v1067 = vpow.pop %v1066
  %v1068 = vmul.f32 %v1065, 1.442695
  %v1069 = vpow.pop %v1068
  %v1070 = vadd.f32 %v1067, 1.0
  %v1071 = vadd.f32 %v1069, 1.0
  %v1072 = vrcp.pop %v1070
  %v1073 = vmul.f32 1.0, %v1072
  %v1074 = vrcp.pop %v1071
  %v1075 = vmul.f32 1.0, %v1074
  %v1076 = vmul.f32 %v1059, %v722
  %v1077 = vmul.f32 %v1061, %v723
  %v1078 = vmul.f32 %v1047, %v1062
  %v1079 = vmul.f32 %v1049, %v1063
  %v1080 = vadd.f32 %v1076, %v1078
  %v1081 = vadd.f32 %v1077, %v1079
  %v1082 = vtanh.pop %v1080
  %v1083 = vtanh.pop %v1081
  %v1084 = vmul.f32 %v1073, %v1082
  %v1085 = vmul.f32 %v1075, %v1083
  %v1086 = vpack.c.bf16 %v1085, %v1084
  %v1088 = vunpack.c.l.b16 %v1086
  %v1089 = vunpack.c.h.b16 %v1086
  %v1090 = vpack.c.b16 %v1088, %v1088
  %v1091 = vpack.c.b16 %v1089, %v1089
  %s1094 = scalar_lea.vmem %s2, 16
  %1095 = vst [vmem:[%s1094] sm:$0xf] %v1090
  %1096 = vst [vmem:[%s1094 + $0x4] sm:$0xf] %v1091
  %s1097 = scalar_lea.vmem %s0, 96
  %v1098 = vld [vmem:[%s1097] sm:$0xff]
  %v1099 = vld [vmem:[%s1097 + $0x8] sm:$0xff]
  %v1100 = vld [vmem:[%s1097 + $0x10] sm:$0xff]
  %v1101 = vld [vmem:[%s1097 + $0x18] sm:$0xff]
  %v1102 = vunpack.c.l.bf16 %v1098
  %v1103 = vunpack.c.h.bf16 %v1098
  %v1104 = vunpack.c.l.bf16 %v1099
  %v1105 = vunpack.c.h.bf16 %v1099
  %v1106 = vunpack.c.l.bf16 %v1100
  %v1107 = vunpack.c.h.bf16 %v1100
  %v1108 = vunpack.c.l.bf16 %v1101
  %v1109 = vunpack.c.h.bf16 %v1101
  %v1110 = vld [vmem:[%s1] sm:$0xff]
  %v1111 = vld [vmem:[%s1 + $0x8] sm:$0xff]
  %v1112 = vld [vmem:[%s1 + $0x10] sm:$0xff]
  %v1113 = vld [vmem:[%s1 + $0x18] sm:$0xff]
  %v1114 = vld [vmem:[%s1 + $0x20] sm:$0xff]
  %v1115 = vld [vmem:[%s1 + $0x28] sm:$0xff]
  %v1116 = vld [vmem:[%s1 + $0x30] sm:$0xff]
  %v1117 = vld [vmem:[%s1 + $0x38] sm:$0xff]
  %v1118 = vld [vmem:[%s1 + $0x40] sm:$0xff]
  %v1119 = vld [vmem:[%s1 + $0x48] sm:$0xff]
  %v1120 = vld [vmem:[%s1 + $0x50] sm:$0xff]
  %v1121 = vld [vmem:[%s1 + $0x58] sm:$0xff]
  %v1122 = vld [vmem:[%s1 + $0x60] sm:$0xff]
  %v1123 = vld [vmem:[%s1 + $0x68] sm:$0xff]
  %v1124 = vld [vmem:[%s1 + $0x70] sm:$0xff]
  %v1125 = vld [vmem:[%s1 + $0x78] sm:$0xff]
  %v1126 = vld [vmem:[%s1 + $0x80] sm:$0xff]
  %v1127 = vld [vmem:[%s1 + $0x88] sm:$0xff]
  %v1128 = vld [vmem:[%s1 + $0x90] sm:$0xff]
  %v1129 = vld [vmem:[%s1 + $0x98] sm:$0xff]
  %v1130 = vld [vmem:[%s1 + $0xa0] sm:$0xff]
  %v1131 = vld [vmem:[%s1 + $0xa8] sm:$0xff]
  %v1132 = vld [vmem:[%s1 + $0xb0] sm:$0xff]
  %v1133 = vld [vmem:[%s1 + $0xb8] sm:$0xff]
  %v1134 = vld [vmem:[%s1 + $0xc0] sm:$0xff]
  %v1135 = vld [vmem:[%s1 + $0xc8] sm:$0xff]
  %v1136 = vld [vmem:[%s1 + $0xd0] sm:$0xff]
  %v1137 = vld [vmem:[%s1 + $0xd8] sm:$0xff]
  %v1138 = vld [vmem:[%s1 + $0xe0] sm:$0xff]
  %v1139 = vld [vmem:[%s1 + $0xe8] sm:$0xff]
  %v1140 = vld [vmem:[%s1 + $0xf0] sm:$0xff]
  %v1141 = vld [vmem:[%s1 + $0xf8] sm:$0xff]
  %v1174 = vunpack.c.l.b16 %v1110
  %v1175 = vunpack.c.h.b16 %v1110
  %v1176 = vunpack.c.l.b16 %v1111
  %v1177 = vunpack.c.h.b16 %v1111
  %v1178 = vunpack.c.l.b16 %v1112
  %v1179 = vunpack.c.h.b16 %v1112
  %v1180 = vunpack.c.l.b16 %v1113
  %v1181 = vunpack.c.h.b16 %v1113
  %v1182 = vunpack.c.l.b16 %v1114
  %v1183 = vunpack.c.h.b16 %v1114
  %v1184 = vunpack.c.l.b16 %v1115
  %v1185 = vunpack.c.h.b16 %v1115
  %v1186 = vunpack.c.l.b16 %v1116
  %v1187 = vunpack.c.h.b16 %v1116
  %v1188 = vunpack.c.l.b16 %v1117
  %v1189 = vunpack.c.h.b16 %v1117
  %v1190 = vunpack.c.l.b16 %v1118
  %v1191 = vunpack.c.h.b16 %v1118
  %v1192 = vunpack.c.l.b16 %v1119
  %v1193 = vunpack.c.h.b16 %v1119
  %v1194 = vunpack.c.l.b16 %v1120
  %v1195 = vunpack.c.h.b16 %v1120
  %v1196 = vunpack.c.l.b16 %v1121
  %v1197 = vunpack.c.h.b16 %v1121
  %v1198 = vunpack.c.l.b16 %v1122
  %v1199 = vunpack.c.h.b16 %v1122
  %v1200 = vunpack.c.l.b16 %v1123
  %v1201 = vunpack.c.h.b16 %v1123
  %v1202 = vunpack.c.l.b16 %v1124
  %v1203 = vunpack.c.h.b16 %v1124
  %v1204 = vunpack.c.l.b16 %v1125
  %v1205 = vunpack.c.h.b16 %v1125
  %v1206 = vunpack.c.l.b16 %v1126
  %v1207 = vunpack.c.h.b16 %v1126
  %v1208 = vunpack.c.l.b16 %v1127
  %v1209 = vunpack.c.h.b16 %v1127
  %v1210 = vunpack.c.l.b16 %v1128
  %v1211 = vunpack.c.h.b16 %v1128
  %v1212 = vunpack.c.l.b16 %v1129
  %v1213 = vunpack.c.h.b16 %v1129
  %v1214 = vunpack.c.l.b16 %v1130
  %v1215 = vunpack.c.h.b16 %v1130
  %v1216 = vunpack.c.l.b16 %v1131
  %v1217 = vunpack.c.h.b16 %v1131
  %v1218 = vunpack.c.l.b16 %v1132
  %v1219 = vunpack.c.h.b16 %v1132
  %v1220 = vunpack.c.l.b16 %v1133
  %v1221 = vunpack.c.h.b16 %v1133
  %v1222 = vunpack.c.l.b16 %v1134
  %v1223 = vunpack.c.h.b16 %v1134
  %v1224 = vunpack.c.l.b16 %v1135
  %v1225 = vunpack.c.h.b16 %v1135
  %v1226 = vunpack.c.l.b16 %v1136
  %v1227 = vunpack.c.h.b16 %v1136
  %v1228 = vunpack.c.l.b16 %v1137
  %v1229 = vunpack.c.h.b16 %v1137
  %v1230 = vunpack.c.l.b16 %v1138
  %v1231 = vunpack.c.h.b16 %v1138
  %v1232 = vunpack.c.l.b16 %v1139
  %v1233 = vunpack.c.h.b16 %v1139
  %v1234 = vunpack.c.l.b16 %v1140
  %v1235 = vunpack.c.h.b16 %v1140
  %v1236 = vunpack.c.l.b16 %v1141
  %v1237 = vunpack.c.h.b16 %v1141
  %v1238 = vpack.c.b16 %v1178, %v1174
  %v1239 = vpack.c.b16 %v1179, %v1175
  %v1240 = vpack.c.b16 %v1180, %v1176
  %v1241 = vpack.c.b16 %v1181, %v1177
  %v1242 = vpack.c.b16 %v1186, %v1182
  %v1243 = vpack.c.b16 %v1187, %v1183
  %v1244 = vpack.c.b16 %v1188, %v1184
  %v1245 = vpack.c.b16 %v1189, %v1185
  %v1246 = vpack.c.b16 %v1194, %v1190
  %v1247 = vpack.c.b16 %v1195, %v1191
  %v1248 = vpack.c.b16 %v1196, %v1192
  %v1249 = vpack.c.b16 %v1197, %v1193
  %v1250 = vpack.c.b16 %v1202, %v1198
  %v1251 = vpack.c.b16 %v1203, %v1199
  %v1252 = vpack.c.b16 %v1204, %v1200
  %v1253 = vpack.c.b16 %v1205, %v1201
  %v1254 = vpack.c.b16 %v1210, %v1206
  %v1255 = vpack.c.b16 %v1211, %v1207
  %v1256 = vpack.c.b16 %v1212, %v1208
  %v1257 = vpack.c.b16 %v1213, %v1209
  %v1258 = vpack.c.b16 %v1218, %v1214
  %v1259 = vpack.c.b16 %v1219, %v1215
  %v1260 = vpack.c.b16 %v1220, %v1216
  %v1261 = vpack.c.b16 %v1221, %v1217
  %v1262 = vpack.c.b16 %v1226, %v1222
  %v1263 = vpack.c.b16 %v1227, %v1223
  %v1264 = vpack.c.b16 %v1228, %v1224
  %v1265 = vpack.c.b16 %v1229, %v1225
  %v1266 = vpack.c.b16 %v1234, %v1230
  %v1267 = vpack.c.b16 %v1235, %v1231
  %v1268 = vpack.c.b16 %v1236, %v1232
  %v1269 = vpack.c.b16 %v1237, %v1233
  %1302 = vmatprep.subr.bf16.mxu0 %v1239
  %1303 = vmatpush1.bf16.msra.mxu0 %v1238
  %1304 = vmatprep.subr.bf16.mxu0 %v1243
  %1305 = vmatpush1.bf16.msra.mxu0 %v1242
  %1306 = vmatprep.subr.bf16.mxu0 %v1247
  %1307 = vmatpush1.bf16.msra.mxu0 %v1246
  %1308 = vmatprep.subr.bf16.mxu0 %v1251
  %1309 = vmatpush1.bf16.msra.mxu0 %v1250
  %1310 = vmatprep.subr.bf16.mxu0 %v1255
  %1311 = vmatpush1.bf16.msra.mxu0 %v1254
  %1312 = vmatprep.subr.bf16.mxu0 %v1259
  %1313 = vmatpush1.bf16.msra.mxu0 %v1258
  %1314 = vmatprep.subr.bf16.mxu0 %v1263
  %1315 = vmatpush1.bf16.msra.mxu0 %v1262
  %1316 = vmatprep.subr.bf16.mxu0 %v1267
  %1317 = vmatpush1.bf16.msra.mxu0 %v1266
  %1318 = vmatprep.subr.bf16.mxu0 0
  %1319 = vmatpush1.bf16.msra.mxu0 0
  %1320 = vmatprep.subr.bf16.mxu0 0
  %1321 = vmatpush1.bf16.msra.mxu0 0
  %1322 = vmatprep.subr.bf16.mxu0 0
  %1323 = vmatpush1.bf16.msra.mxu0 0
  %1324 = vmatprep.subr.bf16.mxu0 0
  %1325 = vmatpush1.bf16.msra.mxu0 0
  %1326 = vmatprep.subr.bf16.mxu0 0
  %1327 = vmatpush1.bf16.msra.mxu0 0
  %1328 = vmatprep.subr.bf16.mxu0 0
  %1329 = vmatpush1.bf16.msra.mxu0 0
  %1330 = vmatprep.subr.bf16.mxu0 0
  %1331 = vmatpush1.bf16.msra.mxu0 0
  %1332 = vmatprep.subr.bf16.mxu0 0
  %1333 = vmatpush1.bf16.msra.mxu0 0
  %1334 = vmatprep.mubr.bf16.mxu0 0
  %1335 = vmatmul.mubr.bf16.gmra.mrb[0].mxu0 %v1086
  %v1336 = vpop.f32.mrb[0].mxu0
  %v1337 = vadd.f32 0.0, %v1336
  %v1338 = vpop.f32.mrb[0].mxu0
  %v1339 = vadd.f32 0.0, %v1338
  %v1340 = vpop.f32.mrb[0].mxu0
  %v1341 = vadd.f32 0.0, %v1340
  %v1342 = vpop.f32.mrb[0].mxu0
  %v1343 = vadd.f32 0.0, %v1342
  %1344 = vdwg.mxu0
  %1345 = vmatprep.subr.bf16.mxu0 %v1241
  %1346 = vmatpush1.bf16.msra.mxu0 %v1240
  %1347 = vmatprep.subr.bf16.mxu0 %v1245
  %1348 = vmatpush1.bf16.msra.mxu0 %v1244
  %1349 = vmatprep.subr.bf16.mxu0 %v1249
  %1350 = vmatpush1.bf16.msra.mxu0 %v1248
  %1351 = vmatprep.subr.bf16.mxu0 %v1253
  %1352 = vmatpush1.bf16.msra.mxu0 %v1252
  %1353 = vmatprep.subr.bf16.mxu0 %v1257
  %1354 = vmatpush1.bf16.msra.mxu0 %v1256
  %1355 = vmatprep.subr.bf16.mxu0 %v1261
  %1356 = vmatpush1.bf16.msra.mxu0 %v1260
  %1357 = vmatprep.subr.bf16.mxu0 %v1265
  %1358 = vmatpush1.bf16.msra.mxu0 %v1264
  %1359 = vmatprep.subr.bf16.mxu0 %v1269
  %1360 = vmatpush1.bf16.msra.mxu0 %v1268
  %1361 = vmatprep.subr.bf16.mxu0 0
  %1362 = vmatpush1.bf16.msra.mxu0 0
  %1363 = vmatprep.subr.bf16.mxu0 0
  %1364 = vmatpush1.bf16.msra.mxu0 0
  %1365 = vmatprep.subr.bf16.mxu0 0
  %1366 = vmatpush1.bf16.msra.mxu0 0
  %1367 = vmatprep.subr.bf16.mxu0 0
  %1368 = vmatpush1.bf16.msra.mxu0 0
  %1369 = vmatprep.subr.bf16.mxu0 0
  %1370 = vmatpush1.bf16.msra.mxu0 0
  %1371 = vmatprep.subr.bf16.mxu0 0
  %1372 = vmatpush1.bf16.msra.mxu0 0
  %1373 = vmatprep.subr.bf16.mxu0 0
  %1374 = vmatpush1.bf16.msra.mxu0 0
  %1375 = vmatprep.subr.bf16.mxu0 0
  %1376 = vmatpush1.bf16.msra.mxu0 0
  %1377 = vmatprep.mubr.bf16.mxu0 0
  %1378 = vmatmul.mubr.bf16.gmra.mrb[0].mxu0 %v1086
  %v1379 = vpop.f32.mrb[0].mxu0
  %v1380 = vadd.f32 0.0, %v1379
  %v1381 = vpop.f32.mrb[0].mxu0
  %v1382 = vadd.f32 0.0, %v1381
  %v1383 = vpop.f32.mrb[0].mxu0
  %v1384 = vadd.f32 0.0, %v1383
  %v1385 = vpop.f32.mrb[0].mxu0
  %v1386 = vadd.f32 0.0, %v1385
  %1387 = vdwg.mxu0
  %v1388 = vadd.f32 %v1102, %v1337
  %v1389 = vadd.f32 %v1103, %v1339
  %v1390 = vadd.f32 %v1104, %v1380
  %v1391 = vadd.f32 %v1105, %v1382
  %v1392 = vadd.f32 %v1106, %v1341
  %v1393 = vadd.f32 %v1107, %v1343
  %v1394 = vadd.f32 %v1108, %v1384
  %v1395 = vadd.f32 %v1109, %v1386
  %v1396 = vxor.u32 %v1388, 2147483648
  %v1397 = vxor.u32 %v1392, 2147483648
  %v1398 = vmul.f32 %v1396, 1.442695
  %v1399 = vpow.pop %v1398
  %v1400 = vmul.f32 %v1397, 1.442695
  %v1401 = vpow.pop %v1400
  %v1402 = vadd.f32 %v1399, 1.0
  %v1403 = vadd.f32 %v1401, 1.0
  %v1404 = vrcp.pop %v1402
  %v1405 = vmul.f32 1.0, %v1404
  %v1406 = vrcp.pop %v1403
  %v1407 = vmul.f32 1.0, %v1406
  %v1408 = vxor.u32 %v1389, 2147483648
  %v1409 = vxor.u32 %v1393, 2147483648
  %v1410 = vmul.f32 %v1408, 1.442695
  %v1411 = vpow.pop %v1410
  %v1412 = vmul.f32 %v1409, 1.442695
  %v1413 = vpow.pop %v1412
  %v1414 = vadd.f32 %v1411, 1.0
  %v1415 = vadd.f32 %v1413, 1.0
  %v1416 = vrcp.pop %v1414
  %v1417 = vmul.f32 1.0, %v1416
  %v1418 = vrcp.pop %v1415
  %v1419 = vmul.f32 1.0, %v1418
  %v1420 = vtanh.pop %v1390
  %v1421 = vtanh.pop %v1394
  %v1422 = vxor.u32 %v1391, 2147483648
  %v1423 = vxor.u32 %v1395, 2147483648
  %v1424 = vmul.f32 %v1422, 1.442695
  %v1425 = vpow.pop %v1424
  %v1426 = vmul.f32 %v1423, 1.442695
  %v1427 = vpow.pop %v1426
  %v1428 = vadd.f32 %v1425, 1.0
  %v1429 = vadd.f32 %v1427, 1.0
  %v1430 = vrcp.pop %v1428
  %v1431 = vmul.f32 1.0, %v1430
  %v1432 = vrcp.pop %v1429
  %v1433 = vmul.f32 1.0, %v1432
  %v1434 = vmul.f32 %v1417, %v1080
  %v1435 = vmul.f32 %v1419, %v1081
  %v1436 = vmul.f32 %v1405, %v1420
  %v1437 = vmul.f32 %v1407, %v1421
  %v1438 = vadd.f32 %v1434, %v1436
  %v1439 = vadd.f32 %v1435, %v1437
  %v1440 = vtanh.pop %v1438
  %v1441 = vtanh.pop %v1439
  %v1442 = vmul.f32 %v1431, %v1440
  %v1443 = vmul.f32 %v1433, %v1441
  %v1444 = vpack.c.bf16 %v1443, %v1442
  %v1446 = vunpack.c.l.b16 %v1444
  %v1447 = vunpack.c.h.b16 %v1444
  %v1448 = vpack.c.b16 %v1446, %v1446
  %v1449 = vpack.c.b16 %v1447, %v1447
  %s1452 = scalar_lea.vmem %s2, 24
  %1453 = vst [vmem:[%s1452] sm:$0xf] %v1448
  %1454 = vst [vmem:[%s1452 + $0x4] sm:$0xf] %v1449
  %s1455 = scalar_lea.vmem %s0, 128
  %v1456 = vld [vmem:[%s1455] sm:$0xff]
  %v1457 = vld [vmem:[%s1455 + $0x8] sm:$0xff]
  %v1458 = vld [vmem:[%s1455 + $0x10] sm:$0xff]
  %v1459 = vld [vmem:[%s1455 + $0x18] sm:$0xff]
  %v1460 = vunpack.c.l.bf16 %v1456
  %v1461 = vunpack.c.h.bf16 %v1456
  %v1462 = vunpack.c.l.bf16 %v1457
  %v1463 = vunpack.c.h.bf16 %v1457
  %v1464 = vunpack.c.l.bf16 %v1458
  %v1465 = vunpack.c.h.bf16 %v1458
  %v1466 = vunpack.c.l.bf16 %v1459
  %v1467 = vunpack.c.h.bf16 %v1459
  %v1468 = vld [vmem:[%s1] sm:$0xff]
  %v1469 = vld [vmem:[%s1 + $0x8] sm:$0xff]
  %v1470 = vld [vmem:[%s1 + $0x10] sm:$0xff]
  %v1471 = vld [vmem:[%s1 + $0x18] sm:$0xff]
  %v1472 = vld [vmem:[%s1 + $0x20] sm:$0xff]
  %v1473 = vld [vmem:[%s1 + $0x28] sm:$0xff]
  %v1474 = vld [vmem:[%s1 + $0x30] sm:$0xff]
  %v1475 = vld [vmem:[%s1 + $0x38] sm:$0xff]
  %v1476 = vld [vmem:[%s1 + $0x40] sm:$0xff]
  %v1477 = vld [vmem:[%s1 + $0x48] sm:$0xff]
  %v1478 = vld [vmem:[%s1 + $0x50] sm:$0xff]
  %v1479 = vld [vmem:[%s1 + $0x58] sm:$0xff]
  %v1480 = vld [vmem:[%s1 + $0x60] sm:$0xff]
  %v1481 = vld [vmem:[%s1 + $0x68] sm:$0xff]
  %v1482 = vld [vmem:[%s1 + $0x70] sm:$0xff]
  %v1483 = vld [vmem:[%s1 + $0x78] sm:$0xff]
  %v1484 = vld [vmem:[%s1 + $0x80] sm:$0xff]
  %v1485 = vld [vmem:[%s1 + $0x88] sm:$0xff]
  %v1486 = vld [vmem:[%s1 + $0x90] sm:$0xff]
  %v1487 = vld [vmem:[%s1 + $0x98] sm:$0xff]
  %v1488 = vld [vmem:[%s1 + $0xa0] sm:$0xff]
  %v1489 = vld [vmem:[%s1 + $0xa8] sm:$0xff]
  %v1490 = vld [vmem:[%s1 + $0xb0] sm:$0xff]
  %v1491 = vld [vmem:[%s1 + $0xb8] sm:$0xff]
  %v1492 = vld [vmem:[%s1 + $0xc0] sm:$0xff]
  %v1493 = vld [vmem:[%s1 + $0xc8] sm:$0xff]
  %v1494 = vld [vmem:[%s1 + $0xd0] sm:$0xff]
  %v1495 = vld [vmem:[%s1 + $0xd8] sm:$0xff]
  %v1496 = vld [vmem:[%s1 + $0xe0] sm:$0xff]
  %v1497 = vld [vmem:[%s1 + $0xe8] sm:$0xff]
  %v1498 = vld [vmem:[%s1 + $0xf0] sm:$0xff]
  %v1499 = vld [vmem:[%s1 + $0xf8] sm:$0xff]
  %v1532 = vunpack.c.l.b16 %v1468
  %v1533 = vunpack.c.h.b16 %v1468
  %v1534 = vunpack.c.l.b16 %v1469
  %v1535 = vunpack.c.h.b16 %v1469
  %v1536 = vunpack.c.l.b16 %v1470
  %v1537 = vunpack.c.h.b16 %v1470
  %v1538 = vunpack.c.l.b16 %v1471
  %v1539 = vunpack.c.h.b16 %v1471
  %v1540 = vunpack.c.l.b16 %v1472
  %v1541 = vunpack.c.h.b16 %v1472
  %v1542 = vunpack.c.l.b16 %v1473
  %v1543 = vunpack.c.h.b16 %v1473
  %v1544 = vunpack.c.l.b16 %v1474
  %v1545 = vunpack.c.h.b16 %v1474
  %v1546 = vunpack.c.l.b16 %v1475
  %v1547 = vunpack.c.h.b16 %v1475
  %v1548 = vunpack.c.l.b16 %v1476
  %v1549 = vunpack.c.h.b16 %v1476
  %v1550 = vunpack.c.l.b16 %v1477
  %v1551 = vunpack.c.h.b16 %v1477
  %v1552 = vunpack.c.l.b16 %v1478
  %v1553 = vunpack.c.h.b16 %v1478
  %v1554 = vunpack.c.l.b16 %v1479
  %v1555 = vunpack.c.h.b16 %v1479
  %v1556 = vunpack.c.l.b16 %v1480
  %v1557 = vunpack.c.h.b16 %v1480
  %v1558 = vunpack.c.l.b16 %v1481
  %v1559 = vunpack.c.h.b16 %v1481
  %v1560 = vunpack.c.l.b16 %v1482
  %v1561 = vunpack.c.h.b16 %v1482
  %v1562 = vunpack.c.l.b16 %v1483
  %v1563 = vunpack.c.h.b16 %v1483
  %v1564 = vunpack.c.l.b16 %v1484
  %v1565 = vunpack.c.h.b16 %v1484
  %v1566 = vunpack.c.l.b16 %v1485
  %v1567 = vunpack.c.h.b16 %v1485
  %v1568 = vunpack.c.l.b16 %v1486
  %v1569 = vunpack.c.h.b16 %v1486
  %v1570 = vunpack.c.l.b16 %v1487
  %v1571 = vunpack.c.h.b16 %v1487
  %v1572 = vunpack.c.l.b16 %v1488
  %v1573 = vunpack.c.h.b16 %v1488
  %v1574 = vunpack.c.l.b16 %v1489
  %v1575 = vunpack.c.h.b16 %v1489
  %v1576 = vunpack.c.l.b16 %v1490
  %v1577 = vunpack.c.h.b16 %v1490
  %v1578 = vunpack.c.l.b16 %v1491
  %v1579 = vunpack.c.h.b16 %v1491
  %v1580 = vunpack.c.l.b16 %v1492
  %v1581 = vunpack.c.h.b16 %v1492
  %v1582 = vunpack.c.l.b16 %v1493
  %v1583 = vunpack.c.h.b16 %v1493
  %v1584 = vunpack.c.l.b16 %v1494
  %v1585 = vunpack.c.h.b16 %v1494
  %v1586 = vunpack.c.l.b16 %v1495
  %v1587 = vunpack.c.h.b16 %v1495
  %v1588 = vunpack.c.l.b16 %v1496
  %v1589 = vunpack.c.h.b16 %v1496
  %v1590 = vunpack.c.l.b16 %v1497
  %v1591 = vunpack.c.h.b16 %v1497
  %v1592 = vunpack.c.l.b16 %v1498
  %v1593 = vunpack.c.h.b16 %v1498
  %v1594 = vunpack.c.l.b16 %v1499
  %v1595 = vunpack.c.h.b16 %v1499
  %v1596 = vpack.c.b16 %v1536, %v1532
  %v1597 = vpack.c.b16 %v1537, %v1533
  %v1598 = vpack.c.b16 %v1538, %v1534
  %v1599 = vpack.c.b16 %v1539, %v1535
  %v1600 = vpack.c.b16 %v1544, %v1540
  %v1601 = vpack.c.b16 %v1545, %v1541
  %v1602 = vpack.c.b16 %v1546, %v1542
  %v1603 = vpack.c.b16 %v1547, %v1543
  %v1604 = vpack.c.b16 %v1552, %v1548
  %v1605 = vpack.c.b16 %v1553, %v1549
  %v1606 = vpack.c.b16 %v1554, %v1550
  %v1607 = vpack.c.b16 %v1555, %v1551
  %v1608 = vpack.c.b16 %v1560, %v1556
  %v1609 = vpack.c.b16 %v1561, %v1557
  %v1610 = vpack.c.b16 %v1562, %v1558
  %v1611 = vpack.c.b16 %v1563, %v1559
  %v1612 = vpack.c.b16 %v1568, %v1564
  %v1613 = vpack.c.b16 %v1569, %v1565
  %v1614 = vpack.c.b16 %v1570, %v1566
  %v1615 = vpack.c.b16 %v1571, %v1567
  %v1616 = vpack.c.b16 %v1576, %v1572
  %v1617 = vpack.c.b16 %v1577, %v1573
  %v1618 = vpack.c.b16 %v1578, %v1574
  %v1619 = vpack.c.b16 %v1579, %v1575
  %v1620 = vpack.c.b16 %v1584, %v1580
  %v1621 = vpack.c.b16 %v1585, %v1581
  %v1622 = vpack.c.b16 %v1586, %v1582
  %v1623 = vpack.c.b16 %v1587, %v1583
  %v1624 = vpack.c.b16 %v1592, %v1588
  %v1625 = vpack.c.b16 %v1593, %v1589
  %v1626 = vpack.c.b16 %v1594, %v1590
  %v1627 = vpack.c.b16 %v1595, %v1591
  %1660 = vmatprep.subr.bf16.mxu0 %v1597
  %1661 = vmatpush1.bf16.msra.mxu0 %v1596
  %1662 = vmatprep.subr.bf16.mxu0 %v1601
  %1663 = vmatpush1.bf16.msra.mxu0 %v1600
  %1664 = vmatprep.subr.bf16.mxu0 %v1605
  %1665 = vmatpush1.bf16.msra.mxu0 %v1604
  %1666 = vmatprep.subr.bf16.mxu0 %v1609
  %1667 = vmatpush1.bf16.msra.mxu0 %v1608
  %1668 = vmatprep.subr.bf16.mxu0 %v1613
  %1669 = vmatpush1.bf16.msra.mxu0 %v1612
  %1670 = vmatprep.subr.bf16.mxu0 %v1617
  %1671 = vmatpush1.bf16.msra.mxu0 %v1616
  %1672 = vmatprep.subr.bf16.mxu0 %v1621
  %1673 = vmatpush1.bf16.msra.mxu0 %v1620
  %1674 = vmatprep.subr.bf16.mxu0 %v1625
  %1675 = vmatpush1.bf16.msra.mxu0 %v1624
  %1676 = vmatprep.subr.bf16.mxu0 0
  %1677 = vmatpush1.bf16.msra.mxu0 0
  %1678 = vmatprep.subr.bf16.mxu0 0
  %1679 = vmatpush1.bf16.msra.mxu0 0
  %1680 = vmatprep.subr.bf16.mxu0 0
  %1681 = vmatpush1.bf16.msra.mxu0 0
  %1682 = vmatprep.subr.bf16.mxu0 0
  %1683 = vmatpush1.bf16.msra.mxu0 0
  %1684 = vmatprep.subr.bf16.mxu0 0
  %1685 = vmatpush1.bf16.msra.mxu0 0
  %1686 = vmatprep.subr.bf16.mxu0 0
  %1687 = vmatpush1.bf16.msra.mxu0 0
  %1688 = vmatprep.subr.bf16.mxu0 0
  %1689 = vmatpush1.bf16.msra.mxu0 0
  %1690 = vmatprep.subr.bf16.mxu0 0
  %1691 = vmatpush1.bf16.msra.mxu0 0
  %1692 = vmatprep.mubr.bf16.mxu0 0
  %1693 = vmatmul.mubr.bf16.gmra.mrb[0].mxu0 %v1444
  %v1694 = vpop.f32.mrb[0].mxu0
  %v1695 = vadd.f32 0.0, %v1694
  %v1696 = vpop.f32.mrb[0].mxu0
  %v1697 = vadd.f32 0.0, %v1696
  %v1698 = vpop.f32.mrb[0].mxu0
  %v1699 = vadd.f32 0.0, %v1698
  %v1700 = vpop.f32.mrb[0].mxu0
  %v1701 = vadd.f32 0.0, %v1700
  %1702 = vdwg.mxu0
  %1703 = vmatprep.subr.bf16.mxu0 %v1599
  %1704 = vmatpush1.bf16.msra.mxu0 %v1598
  %1705 = vmatprep.subr.bf16.mxu0 %v1603
  %1706 = vmatpush1.bf16.msra.mxu0 %v1602
  %1707 = vmatprep.subr.bf16.mxu0 %v1607
  %1708 = vmatpush1.bf16.msra.mxu0 %v1606
  %1709 = vmatprep.subr.bf16.mxu0 %v1611
  %1710 = vmatpush1.bf16.msra.mxu0 %v1610
  %1711 = vmatprep.subr.bf16.mxu0 %v1615
  %1712 = vmatpush1.bf16.msra.mxu0 %v1614
  %1713 = vmatprep.subr.bf16.mxu0 %v1619
  %1714 = vmatpush1.bf16.msra.mxu0 %v1618
  %1715 = vmatprep.subr.bf16.mxu0 %v1623
  %1716 = vmatpush1.bf16.msra.mxu0 %v1622
  %1717 = vmatprep.subr.bf16.mxu0 %v1627
  %1718 = vmatpush1.bf16.msra.mxu0 %v1626
  %1719 = vmatprep.subr.bf16.mxu0 0
  %1720 = vmatpush1.bf16.msra.mxu0 0
  %1721 = vmatprep.subr.bf16.mxu0 0
  %1722 = vmatpush1.bf16.msra.mxu0 0
  %1723 = vmatprep.subr.bf16.mxu0 0
  %1724 = vmatpush1.bf16.msra.mxu0 0
  %1725 = vmatprep.subr.bf16.mxu0 0
  %1726 = vmatpush1.bf16.msra.mxu0 0
  %1727 = vmatprep.subr.bf16.mxu0 0
  %1728 = vmatpush1.bf16.msra.mxu0 0
  %1729 = vmatprep.subr.bf16.mxu0 0
  %1730 = vmatpush1.bf16.msra.mxu0 0
  %1731 = vmatprep.subr.bf16.mxu0 0
  %1732 = vmatpush1.bf16.msra.mxu0 0
  %1733 = vmatprep.subr.bf16.mxu0 0
  %1734 = vmatpush1.bf16.msra.mxu0 0
  %1735 = vmatprep.mubr.bf16.mxu0 0
  %1736 = vmatmul.mubr.bf16.gmra.mrb[0].mxu0 %v1444
  %v1737 = vpop.f32.mrb[0].mxu0
  %v1738 = vadd.f32 0.0, %v1737
  %v1739 = vpop.f32.mrb[0].mxu0
  %v1740 = vadd.f32 0.0, %v1739
  %v1741 = vpop.f32.mrb[0].mxu0
  %v1742 = vadd.f32 0.0, %v1741
  %v1743 = vpop.f32.mrb[0].mxu0
  %v1744 = vadd.f32 0.0, %v1743
  %1745 = vdwg.mxu0
  %v1746 = vadd.f32 %v1460, %v1695
  %v1747 = vadd.f32 %v1461, %v1697
  %v1748 = vadd.f32 %v1462, %v1738
  %v1749 = vadd.f32 %v1463, %v1740
  %v1750 = vadd.f32 %v1464, %v1699
  %v1751 = vadd.f32 %v1465, %v1701
  %v1752 = vadd.f32 %v1466, %v1742
  %v1753 = vadd.f32 %v1467, %v1744
  %v1754 = vxor.u32 %v1746, 2147483648
  %v1755 = vxor.u32 %v1750, 2147483648
  %v1756 = vmul.f32 %v1754, 1.442695
  %v1757 = vpow.pop %v1756
  %v1758 = vmul.f32 %v1755, 1.442695
  %v1759 = vpow.pop %v1758
  %v1760 = vadd.f32 %v1757, 1.0
  %v1761 = vadd.f32 %v1759, 1.0
  %v1762 = vrcp.pop %v1760
  %v1763 = vmul.f32 1.0, %v1762
  %v1764 = vrcp.pop %v1761
  %v1765 = vmul.f32 1.0, %v1764
  %v1766 = vxor.u32 %v1747, 2147483648
  %v1767 = vxor.u32 %v1751, 2147483648
  %v1768 = vmul.f32 %v1766, 1.442695
  %v1769 = vpow.pop %v1768
  %v1770 = vmul.f32 %v1767, 1.442695
  %v1771 = vpow.pop %v1770
  %v1772 = vadd.f32 %v1769, 1.0
  %v1773 = vadd.f32 %v1771, 1.0
  %v1774 = vrcp.pop %v1772
  %v1775 = vmul.f32 1.0, %v1774
  %v1776 = vrcp.pop %v1773
  %v1777 = vmul.f32 1.0, %v1776
  %v1778 = vtanh.pop %v1748
  %v1779 = vtanh.pop %v1752
  %v1780 = vxor.u32 %v1749, 2147483648
  %v1781 = vxor.u32 %v1753, 2147483648
  %v1782 = vmul.f32 %v1780, 1.442695
  %v1783 = vpow.pop %v1782
  %v1784 = vmul.f32 %v1781, 1.442695
  %v1785 = vpow.pop %v1784
  %v1786 = vadd.f32 %v1783, 1.0
  %v1787 = vadd.f32 %v1785, 1.0
  %v1788 = vrcp.pop %v1786
  %v1789 = vmul.f32 1.0, %v1788
  %v1790 = vrcp.pop %v1787
  %v1791 = vmul.f32 1.0, %v1790
  %v1792 = vmul.f32 %v1775, %v1438
  %v1793 = vmul.f32 %v1777, %v1439
  %v1794 = vmul.f32 %v1763, %v1778
  %v1795 = vmul.f32 %v1765, %v1779
  %v1796 = vadd.f32 %v1792, %v1794
  %v1797 = vadd.f32 %v1793, %v1795
  %v1798 = vtanh.pop %v1796
  %v1799 = vtanh.pop %v1797
  %v1800 = vmul.f32 %v1789, %v1798
  %v1801 = vmul.f32 %v1791, %v1799
  %v1802 = vpack.c.bf16 %v1801, %v1800
  %v1804 = vunpack.c.l.b16 %v1802
  %v1805 = vunpack.c.h.b16 %v1802
  %v1806 = vpack.c.b16 %v1804, %v1804
  %v1807 = vpack.c.b16 %v1805, %v1805
  %s1810 = scalar_lea.vmem %s2, 32
  %1811 = vst [vmem:[%s1810] sm:$0xf] %v1806
  %1812 = vst [vmem:[%s1810 + $0x4] sm:$0xf] %v1807
  %s1813 = scalar_lea.vmem %s0, 160
  %v1814 = vld [vmem:[%s1813] sm:$0xff]
  %v1815 = vld [vmem:[%s1813 + $0x8] sm:$0xff]
  %v1816 = vld [vmem:[%s1813 + $0x10] sm:$0xff]
  %v1817 = vld [vmem:[%s1813 + $0x18] sm:$0xff]
  %v1818 = vunpack.c.l.bf16 %v1814
  %v1819 = vunpack.c.h.bf16 %v1814
  %v1820 = vunpack.c.l.bf16 %v1815
  %v1821 = vunpack.c.h.bf16 %v1815
  %v1822 = vunpack.c.l.bf16 %v1816
  %v1823 = vunpack.c.h.bf16 %v1816
  %v1824 = vunpack.c.l.bf16 %v1817
  %v1825 = vunpack.c.h.bf16 %v1817
  %v1826 = vld [vmem:[%s1] sm:$0xff]
  %v1827 = vld [vmem:[%s1 + $0x8] sm:$0xff]
  %v1828 = vld [vmem:[%s1 + $0x10] sm:$0xff]
  %v1829 = vld [vmem:[%s1 + $0x18] sm:$0xff]
  %v1830 = vld [vmem:[%s1 + $0x20] sm:$0xff]
  %v1831 = vld [vmem:[%s1 + $0x28] sm:$0xff]
  %v1832 = vld [vmem:[%s1 + $0x30] sm:$0xff]
  %v1833 = vld [vmem:[%s1 + $0x38] sm:$0xff]
  %v1834 = vld [vmem:[%s1 + $0x40] sm:$0xff]
  %v1835 = vld [vmem:[%s1 + $0x48] sm:$0xff]
  %v1836 = vld [vmem:[%s1 + $0x50] sm:$0xff]
  %v1837 = vld [vmem:[%s1 + $0x58] sm:$0xff]
  %v1838 = vld [vmem:[%s1 + $0x60] sm:$0xff]
  %v1839 = vld [vmem:[%s1 + $0x68] sm:$0xff]
  %v1840 = vld [vmem:[%s1 + $0x70] sm:$0xff]
  %v1841 = vld [vmem:[%s1 + $0x78] sm:$0xff]
  %v1842 = vld [vmem:[%s1 + $0x80] sm:$0xff]
  %v1843 = vld [vmem:[%s1 + $0x88] sm:$0xff]
  %v1844 = vld [vmem:[%s1 + $0x90] sm:$0xff]
  %v1845 = vld [vmem:[%s1 + $0x98] sm:$0xff]
  %v1846 = vld [vmem:[%s1 + $0xa0] sm:$0xff]
  %v1847 = vld [vmem:[%s1 + $0xa8] sm:$0xff]
  %v1848 = vld [vmem:[%s1 + $0xb0] sm:$0xff]
  %v1849 = vld [vmem:[%s1 + $0xb8] sm:$0xff]
  %v1850 = vld [vmem:[%s1 + $0xc0] sm:$0xff]
  %v1851 = vld [vmem:[%s1 + $0xc8] sm:$0xff]
  %v1852 = vld [vmem:[%s1 + $0xd0] sm:$0xff]
  %v1853 = vld [vmem:[%s1 + $0xd8] sm:$0xff]
  %v1854 = vld [vmem:[%s1 + $0xe0] sm:$0xff]
  %v1855 = vld [vmem:[%s1 + $0xe8] sm:$0xff]
  %v1856 = vld [vmem:[%s1 + $0xf0] sm:$0xff]
  %v1857 = vld [vmem:[%s1 + $0xf8] sm:$0xff]
  %v1890 = vunpack.c.l.b16 %v1826
  %v1891 = vunpack.c.h.b16 %v1826
  %v1892 = vunpack.c.l.b16 %v1827
  %v1893 = vunpack.c.h.b16 %v1827
  %v1894 = vunpack.c.l.b16 %v1828
  %v1895 = vunpack.c.h.b16 %v1828
  %v1896 = vunpack.c.l.b16 %v1829
  %v1897 = vunpack.c.h.b16 %v1829
  %v1898 = vunpack.c.l.b16 %v1830
  %v1899 = vunpack.c.h.b16 %v1830
  %v1900 = vunpack.c.l.b16 %v1831
  %v1901 = vunpack.c.h.b16 %v1831
  %v1902 = vunpack.c.l.b16 %v1832
  %v1903 = vunpack.c.h.b16 %v1832
  %v1904 = vunpack.c.l.b16 %v1833
  %v1905 = vunpack.c.h.b16 %v1833
  %v1906 = vunpack.c.l.b16 %v1834
  %v1907 = vunpack.c.h.b16 %v1834
  %v1908 = vunpack.c.l.b16 %v1835
  %v1909 = vunpack.c.h.b16 %v1835
  %v1910 = vunpack.c.l.b16 %v1836
  %v1911 = vunpack.c.h.b16 %v1836
  %v1912 = vunpack.c.l.b16 %v1837
  %v1913 = vunpack.c.h.b16 %v1837
  %v1914 = vunpack.c.l.b16 %v1838
  %v1915 = vunpack.c.h.b16 %v1838
  %v1916 = vunpack.c.l.b16 %v1839
  %v1917 = vunpack.c.h.b16 %v1839
  %v1918 = vunpack.c.l.b16 %v1840
  %v1919 = vunpack.c.h.b16 %v1840
  %v1920 = vunpack.c.l.b16 %v1841
  %v1921 = vunpack.c.h.b16 %v1841
  %v1922 = vunpack.c.l.b16 %v1842
  %v1923 = vunpack.c.h.b16 %v1842
  %v1924 = vunpack.c.l.b16 %v1843
  %v1925 = vunpack.c.h.b16 %v1843
  %v1926 = vunpack.c.l.b16 %v1844
  %v1927 = vunpack.c.h.b16 %v1844
  %v1928 = vunpack.c.l.b16 %v1845
  %v1929 = vunpack.c.h.b16 %v1845
  %v1930 = vunpack.c.l.b16 %v1846
  %v1931 = vunpack.c.h.b16 %v1846
  %v1932 = vunpack.c.l.b16 %v1847
  %v1933 = vunpack.c.h.b16 %v1847
  %v1934 = vunpack.c.l.b16 %v1848
  %v1935 = vunpack.c.h.b16 %v1848
  %v1936 = vunpack.c.l.b16 %v1849
  %v1937 = vunpack.c.h.b16 %v1849
  %v1938 = vunpack.c.l.b16 %v1850
  %v1939 = vunpack.c.h.b16 %v1850
  %v1940 = vunpack.c.l.b16 %v1851
  %v1941 = vunpack.c.h.b16 %v1851
  %v1942 = vunpack.c.l.b16 %v1852
  %v1943 = vunpack.c.h.b16 %v1852
  %v1944 = vunpack.c.l.b16 %v1853
  %v1945 = vunpack.c.h.b16 %v1853
  %v1946 = vunpack.c.l.b16 %v1854
  %v1947 = vunpack.c.h.b16 %v1854
  %v1948 = vunpack.c.l.b16 %v1855
  %v1949 = vunpack.c.h.b16 %v1855
  %v1950 = vunpack.c.l.b16 %v1856
  %v1951 = vunpack.c.h.b16 %v1856
  %v1952 = vunpack.c.l.b16 %v1857
  %v1953 = vunpack.c.h.b16 %v1857
  %v1954 = vpack.c.b16 %v1894, %v1890
  %v1955 = vpack.c.b16 %v1895, %v1891
  %v1956 = vpack.c.b16 %v1896, %v1892
  %v1957 = vpack.c.b16 %v1897, %v1893
  %v1958 = vpack.c.b16 %v1902, %v1898
  %v1959 = vpack.c.b16 %v1903, %v1899
  %v1960 = vpack.c.b16 %v1904, %v1900
  %v1961 = vpack.c.b16 %v1905, %v1901
  %v1962 = vpack.c.b16 %v1910, %v1906
  %v1963 = vpack.c.b16 %v1911, %v1907
  %v1964 = vpack.c.b16 %v1912, %v1908
  %v1965 = vpack.c.b16 %v1913, %v1909
  %v1966 = vpack.c.b16 %v1918, %v1914
  %v1967 = vpack.c.b16 %v1919, %v1915
  %v1968 = vpack.c.b16 %v1920, %v1916
  %v1969 = vpack.c.b16 %v1921, %v1917
  %v1970 = vpack.c.b16 %v1926, %v1922
  %v1971 = vpack.c.b16 %v1927, %v1923
  %v1972 = vpack.c.b16 %v1928, %v1924
  %v1973 = vpack.c.b16 %v1929, %v1925
  %v1974 = vpack.c.b16 %v1934, %v1930
  %v1975 = vpack.c.b16 %v1935, %v1931
  %v1976 = vpack.c.b16 %v1936, %v1932
  %v1977 = vpack.c.b16 %v1937, %v1933
  %v1978 = vpack.c.b16 %v1942, %v1938
  %v1979 = vpack.c.b16 %v1943, %v1939
  %v1980 = vpack.c.b16 %v1944, %v1940
  %v1981 = vpack.c.b16 %v1945, %v1941
  %v1982 = vpack.c.b16 %v1950, %v1946
  %v1983 = vpack.c.b16 %v1951, %v1947
  %v1984 = vpack.c.b16 %v1952, %v1948
  %v1985 = vpack.c.b16 %v1953, %v1949
  %2018 = vmatprep.subr.bf16.mxu0 %v1955
  %2019 = vmatpush1.bf16.msra.mxu0 %v1954
  %2020 = vmatprep.subr.bf16.mxu0 %v1959
  %2021 = vmatpush1.bf16.msra.mxu0 %v1958
  %2022 = vmatprep.subr.bf16.mxu0 %v1963
  %2023 = vmatpush1.bf16.msra.mxu0 %v1962
  %2024 = vmatprep.subr.bf16.mxu0 %v1967
  %2025 = vmatpush1.bf16.msra.mxu0 %v1966
  %2026 = vmatprep.subr.bf16.mxu0 %v1971
  %2027 = vmatpush1.bf16.msra.mxu0 %v1970
  %2028 = vmatprep.subr.bf16.mxu0 %v1975
  %2029 = vmatpush1.bf16.msra.mxu0 %v1974
  %2030 = vmatprep.subr.bf16.mxu0 %v1979
  %2031 = vmatpush1.bf16.msra.mxu0 %v1978
  %2032 = vmatprep.subr.bf16.mxu0 %v1983
  %2033 = vmatpush1.bf16.msra.mxu0 %v1982
  %2034 = vmatprep.subr.bf16.mxu0 0
  %2035 = vmatpush1.bf16.msra.mxu0 0
  %2036 = vmatprep.subr.bf16.mxu0 0
  %2037 = vmatpush1.bf16.msra.mxu0 0
  %2038 = vmatprep.subr.bf16.mxu0 0
  %2039 = vmatpush1.bf16.msra.mxu0 0
  %2040 = vmatprep.subr.bf16.mxu0 0
  %2041 = vmatpush1.bf16.msra.mxu0 0
  %2042 = vmatprep.subr.bf16.mxu0 0
  %2043 = vmatpush1.bf16.msra.mxu0 0
  %2044 = vmatprep.subr.bf16.mxu0 0
  %2045 = vmatpush1.bf16.msra.mxu0 0
  %2046 = vmatprep.subr.bf16.mxu0 0
  %2047 = vmatpush1.bf16.msra.mxu0 0
  %2048 = vmatprep.subr.bf16.mxu0 0
  %2049 = vmatpush1.bf16.msra.mxu0 0
  %2050 = vmatprep.mubr.bf16.mxu0 0
  %2051 = vmatmul.mubr.bf16.gmra.mrb[0].mxu0 %v1802
  %v2052 = vpop.f32.mrb[0].mxu0
  %v2053 = vadd.f32 0.0, %v2052
  %v2054 = vpop.f32.mrb[0].mxu0
  %v2055 = vadd.f32 0.0, %v2054
  %v2056 = vpop.f32.mrb[0].mxu0
  %v2057 = vadd.f32 0.0, %v2056
  %v2058 = vpop.f32.mrb[0].mxu0
  %v2059 = vadd.f32 0.0, %v2058
  %2060 = vdwg.mxu0
  %2061 = vmatprep.subr.bf16.mxu0 %v1957
  %2062 = vmatpush1.bf16.msra.mxu0 %v1956
  %2063 = vmatprep.subr.bf16.mxu0 %v1961
  %2064 = vmatpush1.bf16.msra.mxu0 %v1960
  %2065 = vmatprep.subr.bf16.mxu0 %v1965
  %2066 = vmatpush1.bf16.msra.mxu0 %v1964
  %2067 = vmatprep.subr.bf16.mxu0 %v1969
  %2068 = vmatpush1.bf16.msra.mxu0 %v1968
  %2069 = vmatprep.subr.bf16.mxu0 %v1973
  %2070 = vmatpush1.bf16.msra.mxu0 %v1972
  %2071 = vmatprep.subr.bf16.mxu0 %v1977
  %2072 = vmatpush1.bf16.msra.mxu0 %v1976
  %2073 = vmatprep.subr.bf16.mxu0 %v1981
  %2074 = vmatpush1.bf16.msra.mxu0 %v1980
  %2075 = vmatprep.subr.bf16.mxu0 %v1985
  %2076 = vmatpush1.bf16.msra.mxu0 %v1984
  %2077 = vmatprep.subr.bf16.mxu0 0
  %2078 = vmatpush1.bf16.msra.mxu0 0
  %2079 = vmatprep.subr.bf16.mxu0 0
  %2080 = vmatpush1.bf16.msra.mxu0 0
  %2081 = vmatprep.subr.bf16.mxu0 0
  %2082 = vmatpush1.bf16.msra.mxu0 0
  %2083 = vmatprep.subr.bf16.mxu0 0
  %2084 = vmatpush1.bf16.msra.mxu0 0
  %2085 = vmatprep.subr.bf16.mxu0 0
  %2086 = vmatpush1.bf16.msra.mxu0 0
  %2087 = vmatprep.subr.bf16.mxu0 0
  %2088 = vmatpush1.bf16.msra.mxu0 0
  %2089 = vmatprep.subr.bf16.mxu0 0
  %2090 = vmatpush1.bf16.msra.mxu0 0
  %2091 = vmatprep.subr.bf16.mxu0 0
  %2092 = vmatpush1.bf16.msra.mxu0 0
  %2093 = vmatprep.mubr.bf16.mxu0 0
  %2094 = vmatmul.mubr.bf16.gmra.mrb[0].mxu0 %v1802
  %v2095 = vpop.f32.mrb[0].mxu0
  %v2096 = vadd.f32 0.0, %v2095
  %v2097 = vpop.f32.mrb[0].mxu0
  %v2098 = vadd.f32 0.0, %v2097
  %v2099 = vpop.f32.mrb[0].mxu0
  %v2100 = vadd.f32 0.0, %v2099
  %v2101 = vpop.f32.mrb[0].mxu0
  %v2102 = vadd.f32 0.0, %v2101
  %2103 = vdwg.mxu0
  %v2104 = vadd.f32 %v1818, %v2053
  %v2105 = vadd.f32 %v1819, %v2055
  %v2106 = vadd.f32 %v1820, %v2096
  %v2107 = vadd.f32 %v1821, %v2098
  %v2108 = vadd.f32 %v1822, %v2057
  %v2109 = vadd.f32 %v1823, %v2059
  %v2110 = vadd.f32 %v1824, %v2100
  %v2111 = vadd.f32 %v1825, %v2102
  %v2112 = vxor.u32 %v2104, 2147483648
  %v2113 = vxor.u32 %v2108, 2147483648
  %v2114 = vmul.f32 %v2112, 1.442695
  %v2115 = vpow.pop %v2114
  %v2116 = vmul.f32 %v2113, 1.442695
  %v2117 = vpow.pop %v2116
  %v2118 = vadd.f32 %v2115, 1.0
  %v2119 = vadd.f32 %v2117, 1.0
  %v2120 = vrcp.pop %v2118
  %v2121 = vmul.f32 1.0, %v2120
  %v2122 = vrcp.pop %v2119
  %v2123 = vmul.f32 1.0, %v2122
  %v2124 = vxor.u32 %v2105, 2147483648
  %v2125 = vxor.u32 %v2109, 2147483648
  %v2126 = vmul.f32 %v2124, 1.442695
  %v2127 = vpow.pop %v2126
  %v2128 = vmul.f32 %v2125, 1.442695
  %v2129 = vpow.pop %v2128
  %v2130 = vadd.f32 %v2127, 1.0
  %v2131 = vadd.f32 %v2129, 1.0
  %v2132 = vrcp.pop %v2130
  %v2133 = vmul.f32 1.0, %v2132
  %v2134 = vrcp.pop %v2131
  %v2135 = vmul.f32 1.0, %v2134
  %v2136 = vtanh.pop %v2106
  %v2137 = vtanh.pop %v2110
  %v2138 = vxor.u32 %v2107, 2147483648
  %v2139 = vxor.u32 %v2111, 2147483648
  %v2140 = vmul.f32 %v2138, 1.442695
  %v2141 = vpow.pop %v2140
  %v2142 = vmul.f32 %v2139, 1.442695
  %v2143 = vpow.pop %v2142
  %v2144 = vadd.f32 %v2141, 1.0
  %v2145 = vadd.f32 %v2143, 1.0
  %v2146 = vrcp.pop %v2144
  %v2147 = vmul.f32 1.0, %v2146
  %v2148 = vrcp.pop %v2145
  %v2149 = vmul.f32 1.0, %v2148
  %v2150 = vmul.f32 %v2133, %v1796
  %v2151 = vmul.f32 %v2135, %v1797
  %v2152 = vmul.f32 %v2121, %v2136
  %v2153 = vmul.f32 %v2123, %v2137
  %v2154 = vadd.f32 %v2150, %v2152
  %v2155 = vadd.f32 %v2151, %v2153
  %v2156 = vtanh.pop %v2154
  %v2157 = vtanh.pop %v2155
  %v2158 = vmul.f32 %v2147, %v2156
  %v2159 = vmul.f32 %v2149, %v2157
  %v2160 = vpack.c.bf16 %v2159, %v2158
  %v2162 = vunpack.c.l.b16 %v2160
  %v2163 = vunpack.c.h.b16 %v2160
  %v2164 = vpack.c.b16 %v2162, %v2162
  %v2165 = vpack.c.b16 %v2163, %v2163
  %s2168 = scalar_lea.vmem %s2, 40
  %2169 = vst [vmem:[%s2168] sm:$0xf] %v2164
  %2170 = vst [vmem:[%s2168 + $0x4] sm:$0xf] %v2165
  %s2171 = scalar_lea.vmem %s0, 192
  %v2172 = vld [vmem:[%s2171] sm:$0xff]
  %v2173 = vld [vmem:[%s2171 + $0x8] sm:$0xff]
  %v2174 = vld [vmem:[%s2171 + $0x10] sm:$0xff]
  %v2175 = vld [vmem:[%s2171 + $0x18] sm:$0xff]
  %v2176 = vunpack.c.l.bf16 %v2172
  %v2177 = vunpack.c.h.bf16 %v2172
  %v2178 = vunpack.c.l.bf16 %v2173
  %v2179 = vunpack.c.h.bf16 %v2173
  %v2180 = vunpack.c.l.bf16 %v2174
  %v2181 = vunpack.c.h.bf16 %v2174
  %v2182 = vunpack.c.l.bf16 %v2175
  %v2183 = vunpack.c.h.bf16 %v2175
  %v2184 = vld [vmem:[%s1] sm:$0xff]
  %v2185 = vld [vmem:[%s1 + $0x8] sm:$0xff]
  %v2186 = vld [vmem:[%s1 + $0x10] sm:$0xff]
  %v2187 = vld [vmem:[%s1 + $0x18] sm:$0xff]
  %v2188 = vld [vmem:[%s1 + $0x20] sm:$0xff]
  %v2189 = vld [vmem:[%s1 + $0x28] sm:$0xff]
  %v2190 = vld [vmem:[%s1 + $0x30] sm:$0xff]
  %v2191 = vld [vmem:[%s1 + $0x38] sm:$0xff]
  %v2192 = vld [vmem:[%s1 + $0x40] sm:$0xff]
  %v2193 = vld [vmem:[%s1 + $0x48] sm:$0xff]
  %v2194 = vld [vmem:[%s1 + $0x50] sm:$0xff]
  %v2195 = vld [vmem:[%s1 + $0x58] sm:$0xff]
  %v2196 = vld [vmem:[%s1 + $0x60] sm:$0xff]
  %v2197 = vld [vmem:[%s1 + $0x68] sm:$0xff]
  %v2198 = vld [vmem:[%s1 + $0x70] sm:$0xff]
  %v2199 = vld [vmem:[%s1 + $0x78] sm:$0xff]
  %v2200 = vld [vmem:[%s1 + $0x80] sm:$0xff]
  %v2201 = vld [vmem:[%s1 + $0x88] sm:$0xff]
  %v2202 = vld [vmem:[%s1 + $0x90] sm:$0xff]
  %v2203 = vld [vmem:[%s1 + $0x98] sm:$0xff]
  %v2204 = vld [vmem:[%s1 + $0xa0] sm:$0xff]
  %v2205 = vld [vmem:[%s1 + $0xa8] sm:$0xff]
  %v2206 = vld [vmem:[%s1 + $0xb0] sm:$0xff]
  %v2207 = vld [vmem:[%s1 + $0xb8] sm:$0xff]
  %v2208 = vld [vmem:[%s1 + $0xc0] sm:$0xff]
  %v2209 = vld [vmem:[%s1 + $0xc8] sm:$0xff]
  %v2210 = vld [vmem:[%s1 + $0xd0] sm:$0xff]
  %v2211 = vld [vmem:[%s1 + $0xd8] sm:$0xff]
  %v2212 = vld [vmem:[%s1 + $0xe0] sm:$0xff]
  %v2213 = vld [vmem:[%s1 + $0xe8] sm:$0xff]
  %v2214 = vld [vmem:[%s1 + $0xf0] sm:$0xff]
  %v2215 = vld [vmem:[%s1 + $0xf8] sm:$0xff]
  %v2248 = vunpack.c.l.b16 %v2184
  %v2249 = vunpack.c.h.b16 %v2184
  %v2250 = vunpack.c.l.b16 %v2185
  %v2251 = vunpack.c.h.b16 %v2185
  %v2252 = vunpack.c.l.b16 %v2186
  %v2253 = vunpack.c.h.b16 %v2186
  %v2254 = vunpack.c.l.b16 %v2187
  %v2255 = vunpack.c.h.b16 %v2187
  %v2256 = vunpack.c.l.b16 %v2188
  %v2257 = vunpack.c.h.b16 %v2188
  %v2258 = vunpack.c.l.b16 %v2189
  %v2259 = vunpack.c.h.b16 %v2189
  %v2260 = vunpack.c.l.b16 %v2190
  %v2261 = vunpack.c.h.b16 %v2190
  %v2262 = vunpack.c.l.b16 %v2191
  %v2263 = vunpack.c.h.b16 %v2191
  %v2264 = vunpack.c.l.b16 %v2192
  %v2265 = vunpack.c.h.b16 %v2192
  %v2266 = vunpack.c.l.b16 %v2193
  %v2267 = vunpack.c.h.b16 %v2193
  %v2268 = vunpack.c.l.b16 %v2194
  %v2269 = vunpack.c.h.b16 %v2194
  %v2270 = vunpack.c.l.b16 %v2195
  %v2271 = vunpack.c.h.b16 %v2195
  %v2272 = vunpack.c.l.b16 %v2196
  %v2273 = vunpack.c.h.b16 %v2196
  %v2274 = vunpack.c.l.b16 %v2197
  %v2275 = vunpack.c.h.b16 %v2197
  %v2276 = vunpack.c.l.b16 %v2198
  %v2277 = vunpack.c.h.b16 %v2198
  %v2278 = vunpack.c.l.b16 %v2199
  %v2279 = vunpack.c.h.b16 %v2199
  %v2280 = vunpack.c.l.b16 %v2200
  %v2281 = vunpack.c.h.b16 %v2200
  %v2282 = vunpack.c.l.b16 %v2201
  %v2283 = vunpack.c.h.b16 %v2201
  %v2284 = vunpack.c.l.b16 %v2202
  %v2285 = vunpack.c.h.b16 %v2202
  %v2286 = vunpack.c.l.b16 %v2203
  %v2287 = vunpack.c.h.b16 %v2203
  %v2288 = vunpack.c.l.b16 %v2204
  %v2289 = vunpack.c.h.b16 %v2204
  %v2290 = vunpack.c.l.b16 %v2205
  %v2291 = vunpack.c.h.b16 %v2205
  %v2292 = vunpack.c.l.b16 %v2206
  %v2293 = vunpack.c.h.b16 %v2206
  %v2294 = vunpack.c.l.b16 %v2207
  %v2295 = vunpack.c.h.b16 %v2207
  %v2296 = vunpack.c.l.b16 %v2208
  %v2297 = vunpack.c.h.b16 %v2208
  %v2298 = vunpack.c.l.b16 %v2209
  %v2299 = vunpack.c.h.b16 %v2209
  %v2300 = vunpack.c.l.b16 %v2210
  %v2301 = vunpack.c.h.b16 %v2210
  %v2302 = vunpack.c.l.b16 %v2211
  %v2303 = vunpack.c.h.b16 %v2211
  %v2304 = vunpack.c.l.b16 %v2212
  %v2305 = vunpack.c.h.b16 %v2212
  %v2306 = vunpack.c.l.b16 %v2213
  %v2307 = vunpack.c.h.b16 %v2213
  %v2308 = vunpack.c.l.b16 %v2214
  %v2309 = vunpack.c.h.b16 %v2214
  %v2310 = vunpack.c.l.b16 %v2215
  %v2311 = vunpack.c.h.b16 %v2215
  %v2312 = vpack.c.b16 %v2252, %v2248
  %v2313 = vpack.c.b16 %v2253, %v2249
  %v2314 = vpack.c.b16 %v2254, %v2250
  %v2315 = vpack.c.b16 %v2255, %v2251
  %v2316 = vpack.c.b16 %v2260, %v2256
  %v2317 = vpack.c.b16 %v2261, %v2257
  %v2318 = vpack.c.b16 %v2262, %v2258
  %v2319 = vpack.c.b16 %v2263, %v2259
  %v2320 = vpack.c.b16 %v2268, %v2264
  %v2321 = vpack.c.b16 %v2269, %v2265
  %v2322 = vpack.c.b16 %v2270, %v2266
  %v2323 = vpack.c.b16 %v2271, %v2267
  %v2324 = vpack.c.b16 %v2276, %v2272
  %v2325 = vpack.c.b16 %v2277, %v2273
  %v2326 = vpack.c.b16 %v2278, %v2274
  %v2327 = vpack.c.b16 %v2279, %v2275
  %v2328 = vpack.c.b16 %v2284, %v2280
  %v2329 = vpack.c.b16 %v2285, %v2281
  %v2330 = vpack.c.b16 %v2286, %v2282
  %v2331 = vpack.c.b16 %v2287, %v2283
  %v2332 = vpack.c.b16 %v2292, %v2288
  %v2333 = vpack.c.b16 %v2293, %v2289
  %v2334 = vpack.c.b16 %v2294, %v2290
  %v2335 = vpack.c.b16 %v2295, %v2291
  %v2336 = vpack.c.b16 %v2300, %v2296
  %v2337 = vpack.c.b16 %v2301, %v2297
  %v2338 = vpack.c.b16 %v2302, %v2298
  %v2339 = vpack.c.b16 %v2303, %v2299
  %v2340 = vpack.c.b16 %v2308, %v2304
  %v2341 = vpack.c.b16 %v2309, %v2305
  %v2342 = vpack.c.b16 %v2310, %v2306
  %v2343 = vpack.c.b16 %v2311, %v2307
  %2376 = vmatprep.subr.bf16.mxu0 %v2313
  %2377 = vmatpush1.bf16.msra.mxu0 %v2312
  %2378 = vmatprep.subr.bf16.mxu0 %v2317
  %2379 = vmatpush1.bf16.msra.mxu0 %v2316
  %2380 = vmatprep.subr.bf16.mxu0 %v2321
  %2381 = vmatpush1.bf16.msra.mxu0 %v2320
  %2382 = vmatprep.subr.bf16.mxu0 %v2325
  %2383 = vmatpush1.bf16.msra.mxu0 %v2324
  %2384 = vmatprep.subr.bf16.mxu0 %v2329
  %2385 = vmatpush1.bf16.msra.mxu0 %v2328
  %2386 = vmatprep.subr.bf16.mxu0 %v2333
  %2387 = vmatpush1.bf16.msra.mxu0 %v2332
  %2388 = vmatprep.subr.bf16.mxu0 %v2337
  %2389 = vmatpush1.bf16.msra.mxu0 %v2336
  %2390 = vmatprep.subr.bf16.mxu0 %v2341
  %2391 = vmatpush1.bf16.msra.mxu0 %v2340
  %2392 = vmatprep.subr.bf16.mxu0 0
  %2393 = vmatpush1.bf16.msra.mxu0 0
  %2394 = vmatprep.subr.bf16.mxu0 0
  %2395 = vmatpush1.bf16.msra.mxu0 0
  %2396 = vmatprep.subr.bf16.mxu0 0
  %2397 = vmatpush1.bf16.msra.mxu0 0
  %2398 = vmatprep.subr.bf16.mxu0 0
  %2399 = vmatpush1.bf16.msra.mxu0 0
  %2400 = vmatprep.subr.bf16.mxu0 0
  %2401 = vmatpush1.bf16.msra.mxu0 0
  %2402 = vmatprep.subr.bf16.mxu0 0
  %2403 = vmatpush1.bf16.msra.mxu0 0
  %2404 = vmatprep.subr.bf16.mxu0 0
  %2405 = vmatpush1.bf16.msra.mxu0 0
  %2406 = vmatprep.subr.bf16.mxu0 0
  %2407 = vmatpush1.bf16.msra.mxu0 0
  %2408 = vmatprep.mubr.bf16.mxu0 0
  %2409 = vmatmul.mubr.bf16.gmra.mrb[0].mxu0 %v2160
  %v2410 = vpop.f32.mrb[0].mxu0
  %v2411 = vadd.f32 0.0, %v2410
  %v2412 = vpop.f32.mrb[0].mxu0
  %v2413 = vadd.f32 0.0, %v2412
  %v2414 = vpop.f32.mrb[0].mxu0
  %v2415 = vadd.f32 0.0, %v2414
  %v2416 = vpop.f32.mrb[0].mxu0
  %v2417 = vadd.f32 0.0, %v2416
  %2418 = vdwg.mxu0
  %2419 = vmatprep.subr.bf16.mxu0 %v2315
  %2420 = vmatpush1.bf16.msra.mxu0 %v2314
  %2421 = vmatprep.subr.bf16.mxu0 %v2319
  %2422 = vmatpush1.bf16.msra.mxu0 %v2318
  %2423 = vmatprep.subr.bf16.mxu0 %v2323
  %2424 = vmatpush1.bf16.msra.mxu0 %v2322
  %2425 = vmatprep.subr.bf16.mxu0 %v2327
  %2426 = vmatpush1.bf16.msra.mxu0 %v2326
  %2427 = vmatprep.subr.bf16.mxu0 %v2331
  %2428 = vmatpush1.bf16.msra.mxu0 %v2330
  %2429 = vmatprep.subr.bf16.mxu0 %v2335
  %2430 = vmatpush1.bf16.msra.mxu0 %v2334
  %2431 = vmatprep.subr.bf16.mxu0 %v2339
  %2432 = vmatpush1.bf16.msra.mxu0 %v2338
  %2433 = vmatprep.subr.bf16.mxu0 %v2343
  %2434 = vmatpush1.bf16.msra.mxu0 %v2342
  %2435 = vmatprep.subr.bf16.mxu0 0
  %2436 = vmatpush1.bf16.msra.mxu0 0
  %2437 = vmatprep.subr.bf16.mxu0 0
  %2438 = vmatpush1.bf16.msra.mxu0 0
  %2439 = vmatprep.subr.bf16.mxu0 0
  %2440 = vmatpush1.bf16.msra.mxu0 0
  %2441 = vmatprep.subr.bf16.mxu0 0
  %2442 = vmatpush1.bf16.msra.mxu0 0
  %2443 = vmatprep.subr.bf16.mxu0 0
  %2444 = vmatpush1.bf16.msra.mxu0 0
  %2445 = vmatprep.subr.bf16.mxu0 0
  %2446 = vmatpush1.bf16.msra.mxu0 0
  %2447 = vmatprep.subr.bf16.mxu0 0
  %2448 = vmatpush1.bf16.msra.mxu0 0
  %2449 = vmatprep.subr.bf16.mxu0 0
  %2450 = vmatpush1.bf16.msra.mxu0 0
  %2451 = vmatprep.mubr.bf16.mxu0 0
  %2452 = vmatmul.mubr.bf16.gmra.mrb[0].mxu0 %v2160
  %v2453 = vpop.f32.mrb[0].mxu0
  %v2454 = vadd.f32 0.0, %v2453
  %v2455 = vpop.f32.mrb[0].mxu0
  %v2456 = vadd.f32 0.0, %v2455
  %v2457 = vpop.f32.mrb[0].mxu0
  %v2458 = vadd.f32 0.0, %v2457
  %v2459 = vpop.f32.mrb[0].mxu0
  %v2460 = vadd.f32 0.0, %v2459
  %2461 = vdwg.mxu0
  %v2462 = vadd.f32 %v2176, %v2411
  %v2463 = vadd.f32 %v2177, %v2413
  %v2464 = vadd.f32 %v2178, %v2454
  %v2465 = vadd.f32 %v2179, %v2456
  %v2466 = vadd.f32 %v2180, %v2415
  %v2467 = vadd.f32 %v2181, %v2417
  %v2468 = vadd.f32 %v2182, %v2458
  %v2469 = vadd.f32 %v2183, %v2460
  %v2470 = vxor.u32 %v2462, 2147483648
  %v2471 = vxor.u32 %v2466, 2147483648
  %v2472 = vmul.f32 %v2470, 1.442695
  %v2473 = vpow.pop %v2472
  %v2474 = vmul.f32 %v2471, 1.442695
  %v2475 = vpow.pop %v2474
  %v2476 = vadd.f32 %v2473, 1.0
  %v2477 = vadd.f32 %v2475, 1.0
  %v2478 = vrcp.pop %v2476
  %v2479 = vmul.f32 1.0, %v2478
  %v2480 = vrcp.pop %v2477
  %v2481 = vmul.f32 1.0, %v2480
  %v2482 = vxor.u32 %v2463, 2147483648
  %v2483 = vxor.u32 %v2467, 2147483648
  %v2484 = vmul.f32 %v2482, 1.442695
  %v2485 = vpow.pop %v2484
  %v2486 = vmul.f32 %v2483, 1.442695
  %v2487 = vpow.pop %v2486
  %v2488 = vadd.f32 %v2485, 1.0
  %v2489 = vadd.f32 %v2487, 1.0
  %v2490 = vrcp.pop %v2488
  %v2491 = vmul.f32 1.0, %v2490
  %v2492 = vrcp.pop %v2489
  %v2493 = vmul.f32 1.0, %v2492
  %v2494 = vtanh.pop %v2464
  %v2495 = vtanh.pop %v2468
  %v2496 = vxor.u32 %v2465, 2147483648
  %v2497 = vxor.u32 %v2469, 2147483648
  %v2498 = vmul.f32 %v2496, 1.442695
  %v2499 = vpow.pop %v2498
  %v2500 = vmul.f32 %v2497, 1.442695
  %v2501 = vpow.pop %v2500
  %v2502 = vadd.f32 %v2499, 1.0
  %v2503 = vadd.f32 %v2501, 1.0
  %v2504 = vrcp.pop %v2502
  %v2505 = vmul.f32 1.0, %v2504
  %v2506 = vrcp.pop %v2503
  %v2507 = vmul.f32 1.0, %v2506
  %v2508 = vmul.f32 %v2491, %v2154
  %v2509 = vmul.f32 %v2493, %v2155
  %v2510 = vmul.f32 %v2479, %v2494
  %v2511 = vmul.f32 %v2481, %v2495
  %v2512 = vadd.f32 %v2508, %v2510
  %v2513 = vadd.f32 %v2509, %v2511
  %v2514 = vtanh.pop %v2512
  %v2515 = vtanh.pop %v2513
  %v2516 = vmul.f32 %v2505, %v2514
  %v2517 = vmul.f32 %v2507, %v2515
  %v2518 = vpack.c.bf16 %v2517, %v2516
  %v2520 = vunpack.c.l.b16 %v2518
  %v2521 = vunpack.c.h.b16 %v2518
  %v2522 = vpack.c.b16 %v2520, %v2520
  %v2523 = vpack.c.b16 %v2521, %v2521
  %s2526 = scalar_lea.vmem %s2, 48
  %2527 = vst [vmem:[%s2526] sm:$0xf] %v2522
  %2528 = vst [vmem:[%s2526 + $0x4] sm:$0xf] %v2523
  %s2529 = scalar_lea.vmem %s0, 224
  %v2530 = vld [vmem:[%s2529] sm:$0xff]
  %v2531 = vld [vmem:[%s2529 + $0x8] sm:$0xff]
  %v2532 = vld [vmem:[%s2529 + $0x10] sm:$0xff]
  %v2533 = vld [vmem:[%s2529 + $0x18] sm:$0xff]
  %v2534 = vunpack.c.l.bf16 %v2530
  %v2535 = vunpack.c.h.bf16 %v2530
  %v2536 = vunpack.c.l.bf16 %v2531
  %v2537 = vunpack.c.h.bf16 %v2531
  %v2538 = vunpack.c.l.bf16 %v2532
  %v2539 = vunpack.c.h.bf16 %v2532
  %v2540 = vunpack.c.l.bf16 %v2533
  %v2541 = vunpack.c.h.bf16 %v2533
  %v2542 = vld [vmem:[%s1] sm:$0xff]
  %v2543 = vld [vmem:[%s1 + $0x8] sm:$0xff]
  %v2544 = vld [vmem:[%s1 + $0x10] sm:$0xff]
  %v2545 = vld [vmem:[%s1 + $0x18] sm:$0xff]
  %v2546 = vld [vmem:[%s1 + $0x20] sm:$0xff]
  %v2547 = vld [vmem:[%s1 + $0x28] sm:$0xff]
  %v2548 = vld [vmem:[%s1 + $0x30] sm:$0xff]
  %v2549 = vld [vmem:[%s1 + $0x38] sm:$0xff]
  %v2550 = vld [vmem:[%s1 + $0x40] sm:$0xff]
  %v2551 = vld [vmem:[%s1 + $0x48] sm:$0xff]
  %v2552 = vld [vmem:[%s1 + $0x50] sm:$0xff]
  %v2553 = vld [vmem:[%s1 + $0x58] sm:$0xff]
  %v2554 = vld [vmem:[%s1 + $0x60] sm:$0xff]
  %v2555 = vld [vmem:[%s1 + $0x68] sm:$0xff]
  %v2556 = vld [vmem:[%s1 + $0x70] sm:$0xff]
  %v2557 = vld [vmem:[%s1 + $0x78] sm:$0xff]
  %v2558 = vld [vmem:[%s1 + $0x80] sm:$0xff]
  %v2559 = vld [vmem:[%s1 + $0x88] sm:$0xff]
  %v2560 = vld [vmem:[%s1 + $0x90] sm:$0xff]
  %v2561 = vld [vmem:[%s1 + $0x98] sm:$0xff]
  %v2562 = vld [vmem:[%s1 + $0xa0] sm:$0xff]
  %v2563 = vld [vmem:[%s1 + $0xa8] sm:$0xff]
  %v2564 = vld [vmem:[%s1 + $0xb0] sm:$0xff]
  %v2565 = vld [vmem:[%s1 + $0xb8] sm:$0xff]
  %v2566 = vld [vmem:[%s1 + $0xc0] sm:$0xff]
  %v2567 = vld [vmem:[%s1 + $0xc8] sm:$0xff]
  %v2568 = vld [vmem:[%s1 + $0xd0] sm:$0xff]
  %v2569 = vld [vmem:[%s1 + $0xd8] sm:$0xff]
  %v2570 = vld [vmem:[%s1 + $0xe0] sm:$0xff]
  %v2571 = vld [vmem:[%s1 + $0xe8] sm:$0xff]
  %v2572 = vld [vmem:[%s1 + $0xf0] sm:$0xff]
  %v2573 = vld [vmem:[%s1 + $0xf8] sm:$0xff]
  %v2606 = vunpack.c.l.b16 %v2542
  %v2607 = vunpack.c.h.b16 %v2542
  %v2608 = vunpack.c.l.b16 %v2543
  %v2609 = vunpack.c.h.b16 %v2543
  %v2610 = vunpack.c.l.b16 %v2544
  %v2611 = vunpack.c.h.b16 %v2544
  %v2612 = vunpack.c.l.b16 %v2545
  %v2613 = vunpack.c.h.b16 %v2545
  %v2614 = vunpack.c.l.b16 %v2546
  %v2615 = vunpack.c.h.b16 %v2546
  %v2616 = vunpack.c.l.b16 %v2547
  %v2617 = vunpack.c.h.b16 %v2547
  %v2618 = vunpack.c.l.b16 %v2548
  %v2619 = vunpack.c.h.b16 %v2548
  %v2620 = vunpack.c.l.b16 %v2549
  %v2621 = vunpack.c.h.b16 %v2549
  %v2622 = vunpack.c.l.b16 %v2550
  %v2623 = vunpack.c.h.b16 %v2550
  %v2624 = vunpack.c.l.b16 %v2551
  %v2625 = vunpack.c.h.b16 %v2551
  %v2626 = vunpack.c.l.b16 %v2552
  %v2627 = vunpack.c.h.b16 %v2552
  %v2628 = vunpack.c.l.b16 %v2553
  %v2629 = vunpack.c.h.b16 %v2553
  %v2630 = vunpack.c.l.b16 %v2554
  %v2631 = vunpack.c.h.b16 %v2554
  %v2632 = vunpack.c.l.b16 %v2555
  %v2633 = vunpack.c.h.b16 %v2555
  %v2634 = vunpack.c.l.b16 %v2556
  %v2635 = vunpack.c.h.b16 %v2556
  %v2636 = vunpack.c.l.b16 %v2557
  %v2637 = vunpack.c.h.b16 %v2557
  %v2638 = vunpack.c.l.b16 %v2558
  %v2639 = vunpack.c.h.b16 %v2558
  %v2640 = vunpack.c.l.b16 %v2559
  %v2641 = vunpack.c.h.b16 %v2559
  %v2642 = vunpack.c.l.b16 %v2560
  %v2643 = vunpack.c.h.b16 %v2560
  %v2644 = vunpack.c.l.b16 %v2561
  %v2645 = vunpack.c.h.b16 %v2561
  %v2646 = vunpack.c.l.b16 %v2562
  %v2647 = vunpack.c.h.b16 %v2562
  %v2648 = vunpack.c.l.b16 %v2563
  %v2649 = vunpack.c.h.b16 %v2563
  %v2650 = vunpack.c.l.b16 %v2564
  %v2651 = vunpack.c.h.b16 %v2564
  %v2652 = vunpack.c.l.b16 %v2565
  %v2653 = vunpack.c.h.b16 %v2565
  %v2654 = vunpack.c.l.b16 %v2566
  %v2655 = vunpack.c.h.b16 %v2566
  %v2656 = vunpack.c.l.b16 %v2567
  %v2657 = vunpack.c.h.b16 %v2567
  %v2658 = vunpack.c.l.b16 %v2568
  %v2659 = vunpack.c.h.b16 %v2568
  %v2660 = vunpack.c.l.b16 %v2569
  %v2661 = vunpack.c.h.b16 %v2569
  %v2662 = vunpack.c.l.b16 %v2570
  %v2663 = vunpack.c.h.b16 %v2570
  %v2664 = vunpack.c.l.b16 %v2571
  %v2665 = vunpack.c.h.b16 %v2571
  %v2666 = vunpack.c.l.b16 %v2572
  %v2667 = vunpack.c.h.b16 %v2572
  %v2668 = vunpack.c.l.b16 %v2573
  %v2669 = vunpack.c.h.b16 %v2573
  %v2670 = vpack.c.b16 %v2610, %v2606
  %v2671 = vpack.c.b16 %v2611, %v2607
  %v2672 = vpack.c.b16 %v2612, %v2608
  %v2673 = vpack.c.b16 %v2613, %v2609
  %v2674 = vpack.c.b16 %v2618, %v2614
  %v2675 = vpack.c.b16 %v2619, %v2615
  %v2676 = vpack.c.b16 %v2620, %v2616
  %v2677 = vpack.c.b16 %v2621, %v2617
  %v2678 = vpack.c.b16 %v2626, %v2622
  %v2679 = vpack.c.b16 %v2627, %v2623
  %v2680 = vpack.c.b16 %v2628, %v2624
  %v2681 = vpack.c.b16 %v2629, %v2625
  %v2682 = vpack.c.b16 %v2634, %v2630
  %v2683 = vpack.c.b16 %v2635, %v2631
  %v2684 = vpack.c.b16 %v2636, %v2632
  %v2685 = vpack.c.b16 %v2637, %v2633
  %v2686 = vpack.c.b16 %v2642, %v2638
  %v2687 = vpack.c.b16 %v2643, %v2639
  %v2688 = vpack.c.b16 %v2644, %v2640
  %v2689 = vpack.c.b16 %v2645, %v2641
  %v2690 = vpack.c.b16 %v2650, %v2646
  %v2691 = vpack.c.b16 %v2651, %v2647
  %v2692 = vpack.c.b16 %v2652, %v2648
  %v2693 = vpack.c.b16 %v2653, %v2649
  %v2694 = vpack.c.b16 %v2658, %v2654
  %v2695 = vpack.c.b16 %v2659, %v2655
  %v2696 = vpack.c.b16 %v2660, %v2656
  %v2697 = vpack.c.b16 %v2661, %v2657
  %v2698 = vpack.c.b16 %v2666, %v2662
  %v2699 = vpack.c.b16 %v2667, %v2663
  %v2700 = vpack.c.b16 %v2668, %v2664
  %v2701 = vpack.c.b16 %v2669, %v2665
  %2734 = vmatprep.subr.bf16.mxu0 %v2671
  %2735 = vmatpush1.bf16.msra.mxu0 %v2670
  %2736 = vmatprep.subr.bf16.mxu0 %v2675
  %2737 = vmatpush1.bf16.msra.mxu0 %v2674
  %2738 = vmatprep.subr.bf16.mxu0 %v2679
  %2739 = vmatpush1.bf16.msra.mxu0 %v2678
  %2740 = vmatprep.subr.bf16.mxu0 %v2683
  %2741 = vmatpush1.bf16.msra.mxu0 %v2682
  %2742 = vmatprep.subr.bf16.mxu0 %v2687
  %2743 = vmatpush1.bf16.msra.mxu0 %v2686
  %2744 = vmatprep.subr.bf16.mxu0 %v2691
  %2745 = vmatpush1.bf16.msra.mxu0 %v2690
  %2746 = vmatprep.subr.bf16.mxu0 %v2695
  %2747 = vmatpush1.bf16.msra.mxu0 %v2694
  %2748 = vmatprep.subr.bf16.mxu0 %v2699
  %2749 = vmatpush1.bf16.msra.mxu0 %v2698
  %2750 = vmatprep.subr.bf16.mxu0 0
  %2751 = vmatpush1.bf16.msra.mxu0 0
  %2752 = vmatprep.subr.bf16.mxu0 0
  %2753 = vmatpush1.bf16.msra.mxu0 0
  %2754 = vmatprep.subr.bf16.mxu0 0
  %2755 = vmatpush1.bf16.msra.mxu0 0
  %2756 = vmatprep.subr.bf16.mxu0 0
  %2757 = vmatpush1.bf16.msra.mxu0 0
  %2758 = vmatprep.subr.bf16.mxu0 0
  %2759 = vmatpush1.bf16.msra.mxu0 0
  %2760 = vmatprep.subr.bf16.mxu0 0
  %2761 = vmatpush1.bf16.msra.mxu0 0
  %2762 = vmatprep.subr.bf16.mxu0 0
  %2763 = vmatpush1.bf16.msra.mxu0 0
  %2764 = vmatprep.subr.bf16.mxu0 0
  %2765 = vmatpush1.bf16.msra.mxu0 0
  %2766 = vmatprep.mubr.bf16.mxu0 0
  %2767 = vmatmul.mubr.bf16.gmra.mrb[0].mxu0 %v2518
  %v2768 = vpop.f32.mrb[0].mxu0
  %v2769 = vadd.f32 0.0, %v2768
  %v2770 = vpop.f32.mrb[0].mxu0
  %v2771 = vadd.f32 0.0, %v2770
  %v2772 = vpop.f32.mrb[0].mxu0
  %v2773 = vadd.f32 0.0, %v2772
  %v2774 = vpop.f32.mrb[0].mxu0
  %v2775 = vadd.f32 0.0, %v2774
  %2776 = vdwg.mxu0
  %2777 = vmatprep.subr.bf16.mxu0 %v2673
  %2778 = vmatpush1.bf16.msra.mxu0 %v2672
  %2779 = vmatprep.subr.bf16.mxu0 %v2677
  %2780 = vmatpush1.bf16.msra.mxu0 %v2676
  %2781 = vmatprep.subr.bf16.mxu0 %v2681
  %2782 = vmatpush1.bf16.msra.mxu0 %v2680
  %2783 = vmatprep.subr.bf16.mxu0 %v2685
  %2784 = vmatpush1.bf16.msra.mxu0 %v2684
  %2785 = vmatprep.subr.bf16.mxu0 %v2689
  %2786 = vmatpush1.bf16.msra.mxu0 %v2688
  %2787 = vmatprep.subr.bf16.mxu0 %v2693
  %2788 = vmatpush1.bf16.msra.mxu0 %v2692
  %2789 = vmatprep.subr.bf16.mxu0 %v2697
  %2790 = vmatpush1.bf16.msra.mxu0 %v2696
  %2791 = vmatprep.subr.bf16.mxu0 %v2701
  %2792 = vmatpush1.bf16.msra.mxu0 %v2700
  %2793 = vmatprep.subr.bf16.mxu0 0
  %2794 = vmatpush1.bf16.msra.mxu0 0
  %2795 = vmatprep.subr.bf16.mxu0 0
  %2796 = vmatpush1.bf16.msra.mxu0 0
  %2797 = vmatprep.subr.bf16.mxu0 0
  %2798 = vmatpush1.bf16.msra.mxu0 0
  %2799 = vmatprep.subr.bf16.mxu0 0
  %2800 = vmatpush1.bf16.msra.mxu0 0
  %2801 = vmatprep.subr.bf16.mxu0 0
  %2802 = vmatpush1.bf16.msra.mxu0 0
  %2803 = vmatprep.subr.bf16.mxu0 0
  %2804 = vmatpush1.bf16.msra.mxu0 0
  %2805 = vmatprep.subr.bf16.mxu0 0
  %2806 = vmatpush1.bf16.msra.mxu0 0
  %2807 = vmatprep.subr.bf16.mxu0 0
  %2808 = vmatpush1.bf16.msra.mxu0 0
  %2809 = vmatprep.mubr.bf16.mxu0 0
  %2810 = vmatmul.mubr.bf16.gmra.mrb[0].mxu0 %v2518
  %v2811 = vpop.f32.mrb[0].mxu0
  %v2812 = vadd.f32 0.0, %v2811
  %v2813 = vpop.f32.mrb[0].mxu0
  %v2814 = vadd.f32 0.0, %v2813
  %v2815 = vpop.f32.mrb[0].mxu0
  %v2816 = vadd.f32 0.0, %v2815
  %v2817 = vpop.f32.mrb[0].mxu0
  %v2818 = vadd.f32 0.0, %v2817
  %2819 = vdwg.mxu0
  %v2820 = vadd.f32 %v2534, %v2769
  %v2821 = vadd.f32 %v2535, %v2771
  %v2822 = vadd.f32 %v2536, %v2812
  %v2823 = vadd.f32 %v2537, %v2814
  %v2824 = vadd.f32 %v2538, %v2773
  %v2825 = vadd.f32 %v2539, %v2775
  %v2826 = vadd.f32 %v2540, %v2816
  %v2827 = vadd.f32 %v2541, %v2818
  %v2828 = vxor.u32 %v2820, 2147483648
  %v2829 = vxor.u32 %v2824, 2147483648
  %v2830 = vmul.f32 %v2828, 1.442695
  %v2831 = vpow.pop %v2830
  %v2832 = vmul.f32 %v2829, 1.442695
  %v2833 = vpow.pop %v2832
  %v2834 = vadd.f32 %v2831, 1.0
  %v2835 = vadd.f32 %v2833, 1.0
  %v2836 = vrcp.pop %v2834
  %v2837 = vmul.f32 1.0, %v2836
  %v2838 = vrcp.pop %v2835
  %v2839 = vmul.f32 1.0, %v2838
  %v2840 = vxor.u32 %v2821, 2147483648
  %v2841 = vxor.u32 %v2825, 2147483648
  %v2842 = vmul.f32 %v2840, 1.442695
  %v2843 = vpow.pop %v2842
  %v2844 = vmul.f32 %v2841, 1.442695
  %v2845 = vpow.pop %v2844
  %v2846 = vadd.f32 %v2843, 1.0
  %v2847 = vadd.f32 %v2845, 1.0
  %v2848 = vrcp.pop %v2846
  %v2849 = vmul.f32 1.0, %v2848
  %v2850 = vrcp.pop %v2847
  %v2851 = vmul.f32 1.0, %v2850
  %v2852 = vtanh.pop %v2822
  %v2853 = vtanh.pop %v2826
  %v2854 = vxor.u32 %v2823, 2147483648
  %v2855 = vxor.u32 %v2827, 2147483648
  %v2856 = vmul.f32 %v2854, 1.442695
  %v2857 = vpow.pop %v2856
  %v2858 = vmul.f32 %v2855, 1.442695
  %v2859 = vpow.pop %v2858
  %v2860 = vadd.f32 %v2857, 1.0
  %v2861 = vadd.f32 %v2859, 1.0
  %v2862 = vrcp.pop %v2860
  %v2863 = vmul.f32 1.0, %v2862
  %v2864 = vrcp.pop %v2861
  %v2865 = vmul.f32 1.0, %v2864
  %v2866 = vmul.f32 %v2849, %v2512
  %v2867 = vmul.f32 %v2851, %v2513
  %v2868 = vmul.f32 %v2837, %v2852
  %v2869 = vmul.f32 %v2839, %v2853
  %v2870 = vadd.f32 %v2866, %v2868
  %v2871 = vadd.f32 %v2867, %v2869
  %v2872 = vtanh.pop %v2870
  %v2873 = vtanh.pop %v2871
  %v2874 = vmul.f32 %v2863, %v2872
  %v2875 = vmul.f32 %v2865, %v2873
  %v2876 = vpack.c.bf16 %v2875, %v2874
  %v2878 = vunpack.c.l.b16 %v2876
  %v2879 = vunpack.c.h.b16 %v2876
  %v2880 = vpack.c.b16 %v2878, %v2878
  %v2881 = vpack.c.b16 %v2879, %v2879
  %s2884 = scalar_lea.vmem %s2, 56
  %2885 = vst [vmem:[%s2884] sm:$0xf] %v2880
  %2886 = vst [vmem:[%s2884 + $0x4] sm:$0xf] %v2881
  %2887 = vst [vmem:[#allocation2] sm:$0xff] %v2874
  %2888 = vst [vmem:[#allocation2 + $0x8] sm:$0xff] %v2875
  %2889 = vst [vmem:[#allocation3] sm:$0xff] %v2870
  %2890 = vst [vmem:[#allocation3 + $0x8] sm:$0xff] %v2871
  // Predicated region
  $region14: #{lstm_decoder_forward.7} parent=0 // pred_check
    _
  $region15: #{lstm_decoder_forward.7} parent=0 // pred_check_branch
    %2892 = sbr.rel (0) target = $region17
  $region16: #{lstm_decoder_forward.7} parent=0 // pred_region
    _
  $region17: #{lstm_decoder_forward.7} parent=0 // pred_fallthru
    _
  // Predicated region
  $region18: #{lstm_decoder_forward.7} parent=0 // pred_check
    _
  $region19: #{lstm_decoder_forward.7} parent=0 // pred_check_branch
    %2894 = sbr.rel (0) target = $region21
  $region20: #{lstm_decoder_forward.7} parent=0 // pred_region
    _
  $region21: #{lstm_decoder_forward.7} parent=0 // pred_fallthru
    _

</llo_original>
